<compile_context>
chip_gen: v7x
topology: tpu7x:2x2x1
jax: 0.10.0
libtpu: 0.0.40
codegen_flags: <defaults>
</compile_context>

<pallas_src>
import jax
import jax.numpy as jnp
from jax import lax
from jax.experimental import pallas as pl
from jax.experimental.pallas import tpu as pltpu


def _make_residual_block_kernel(N, H, W, C):
    HW = H * W
    NHW = N * HW

    def kernel(x_ref, w1_ref, b1_ref, w2_ref, b2_ref, rc_ref, out_ref):
        # x_ref  : (C, N*HW)   channels in sublanes, batch*flat-spatial in lanes
        # w*_ref : (9, C, C)   tap-major weights, w[t] = W_oihw[:, :, kh, kw], t=kh*3+kw
        # b*_ref : (C, 1)
        # rc_ref : (2, N*HW)   int32 per-lane (row, col) within its own image
        # out_ref: (C, N*HW)
        x = x_ref[...]                                       # (C, NHW) f32

        # ---- halo masks: computed once, reused by BOTH convs -----------------
        rc = rc_ref[...]                                     # (2, NHW) int32
        row = jnp.broadcast_to(rc[0:1, :], (C, NHW))         # hoisted broadcasts
        col = jnp.broadcast_to(rc[1:2, :], (C, NHW))
        masks = []
        for kh in range(3):
            for kw in range(3):
                dh, dw = kh - 1, kw - 1
                if dh == 0 and dw == 0:
                    masks.append(None)                       # center tap: always valid
                    continue
                ok = ((row + dh >= 0) & (row + dh < H) &
                      (col + dw >= 0) & (col + dw < W))
                masks.append(ok)

        def conv3x3(a, w_ref, b_ref):
            # 9 rolled+masked taps, each contracted directly against its (C, C)
            # tap matrix.  No VMEM scratch, no sub-tile stores; rolls run on the
            # XLU, compares/selects on the VPU, dots on the MXU.
            acc = None
            for kh in range(3):
                for kw in range(3):
                    t = kh * 3 + kw
                    off = (kh - 1) * W + (kw - 1)            # flat-lane offset
                    if off == 0:
                        tap = a
                    else:
                        # tap[c, i] = a[c, i + off]; any lane whose source lies
                        # outside its own image is zeroed by masks[t].
                        tap = pltpu.roll(a, (-off) % NHW, axis=1)
                    m = masks[t]
                    if m is not None:
                        tap = jnp.where(m, tap, 0.0)
                    d = jnp.dot(w_ref[t], tap,
                                preferred_element_type=jnp.float32)  # (C, NHW)
                    acc = d if acc is None else acc + d
            return acc + b_ref[...]                          # (C, 1) broadcasts

        y = jnp.maximum(conv3x3(x, w1_ref, b1_ref), 0.0)     # relu(conv1(x))
        z = conv3x3(y, w2_ref, b2_ref)                       # conv2(y) + b2
        out_ref[...] = jnp.maximum(x + z, 0.0).astype(out_ref.dtype)

    return kernel


def residual_block_forward(x_nchw, w1_oihw, b1, w2_oihw, b2):
    """Pallas implementation of ResidualBlock.forward (NCHW in/out, like PyTorch)."""
    N, C, H, W = x_nchw.shape
    HW = H * W
    NHW = N * HW

    # Channels -> sublanes, (batch, flat spatial) -> lanes.
    x2 = jnp.transpose(x_nchw, (1, 0, 2, 3)).reshape(C, NHW)
    # OIHW -> (kh*3+kw, O, I): one (C, C) tap matrix per 3x3 position.
    w1r = jnp.transpose(w1_oihw, (2, 3, 0, 1)).reshape(9, C, C)
    w2r = jnp.transpose(w2_oihw, (2, 3, 0, 1)).reshape(9, C, C)
    b1c = b1.reshape(C, 1).astype(jnp.float32)
    b2c = b2.reshape(C, 1).astype(jnp.float32)

    # Per-lane (row, col) within its own image; HW-periodic so a single table
    # covers the whole folded batch.  4 KiB int32, far below the old 36 KiB mask.
    i = jnp.arange(NHW, dtype=jnp.int32)
    p = i % HW
    rc = jnp.stack([p // W, p % W], axis=0)                  # (2, NHW) int32

    kernel = _make_residual_block_kernel(N, H, W, C)

    flops = int(2 * (2 * HW * 9 * C * C) * N)                # two 3x3 convs
    bytes_accessed = int(4 * (2 * x2.size + w1r.size + w2r.size
                              + b1c.size + b2c.size + rc.size))

    out = pl.pallas_call(
        kernel,
        out_shape=jax.ShapeDtypeStruct((C, NHW), x_nchw.dtype),
        grid=(1,),                                           # grid-less: one step
        in_specs=[
            pl.BlockSpec((C, NHW), lambda i: (0, 0)),        # x  (full array)
            pl.BlockSpec((9, C, C), lambda i: (0, 0, 0)),    # w1 taps
            pl.BlockSpec((C, 1), lambda i: (0, 0)),          # b1
            pl.BlockSpec((9, C, C), lambda i: (0, 0, 0)),    # w2 taps
            pl.BlockSpec((C, 1), lambda i: (0, 0)),          # b2
            pl.BlockSpec((2, NHW), lambda i: (0, 0)),        # row/col table
        ],
        out_specs=pl.BlockSpec((C, NHW), lambda i: (0, 0)),
        compiler_params=pltpu.CompilerParams(
            dimension_semantics=("arbitrary",)),
        cost_estimate=pl.CostEstimate(flops=flops, transcendentals=0,
                                      bytes_accessed=bytes_accessed),
    )(x2, w1r, b1c, w2r, b2c, rc)

    # (C, N*HW) -> NCHW.
    return jnp.transpose(out.reshape(C, N, H, W), (1, 0, 2, 3))


def _reference_forward(x_nchw, w1, b1, w2, b2):
    dn = lax.conv_dimension_numbers(x_nchw.shape, w1.shape,
                                    ("NCHW", "OIHW", "NCHW"))
    y = lax.conv_general_dilated(x_nchw, w1, (1, 1), ((1, 1), (1, 1)),
                                 dimension_numbers=dn)
    y = jax.nn.relu(y + b1.reshape(1, -1, 1, 1))
    y = lax.conv_general_dilated(y, w2, (1, 1), ((1, 1), (1, 1)),
                                 dimension_numbers=dn)
    y = y + b2.reshape(1, -1, 1, 1)
    return jax.nn.relu(x_nchw + y)


if __name__ == "__main__":
    N, C, H, W = 2, 4, 16, 16
    key = jax.random.PRNGKey(0)
    kx, k1, k2, k3, k4 = jax.random.split(key, 5)

    x = jax.random.normal(kx, (N, C, H, W), jnp.float32)
    # Deterministic init mimicking nn.Conv2d default (uniform in +-1/sqrt(fan_in)).
    bound = 1.0 / (C * 3 * 3) ** 0.5
    w1 = jax.random.uniform(k1, (C, C, 3, 3), jnp.float32, -bound, bound)
    b1 = jax.random.uniform(k2, (C,), jnp.float32, -bound, bound)
    w2 = jax.random.uniform(k3, (C, C, 3, 3), jnp.float32, -bound, bound)
    b2 = jax.random.uniform(k4, (C,), jnp.float32, -bound, bound)

    out = jax.block_until_ready(residual_block_forward(x, w1, b1, w2, b2))

    ref = _reference_forward(x, w1, b1, w2, b2)
    assert out.shape == ref.shape, (out.shape, ref.shape)
    max_err = float(jnp.max(jnp.abs(out - ref)))
    assert max_err < 1e-4, f"mismatch vs reference conv: {max_err}"

    print("KERNEL_OK")
</pallas_src>

<mosaic_0001>
module attributes {stable_mosaic.version = 11 : i64} {
  func.func @kernel(%arg0: i32, %arg1: memref<4x512xf32, #tpu.memory_space<vmem>>, %arg2: memref<9x4x4xf32, #tpu.memory_space<vmem>>, %arg3: memref<4x1xf32, #tpu.memory_space<vmem>>, %arg4: memref<9x4x4xf32, #tpu.memory_space<vmem>>, %arg5: memref<4x1xf32, #tpu.memory_space<vmem>>, %arg6: memref<2x512xi32, #tpu.memory_space<vmem>>, %arg7: memref<4x512xf32, #tpu.memory_space<vmem>>) attributes {dimension_semantics = [#tpu.dimension_semantics<arbitrary>], iteration_bounds = array<i64: 1>, scalar_prefetch = 0 : i64, scratch_operands = 0 : i64, tpu.core_type = #tpu.core_type<tc>, window_params = [{pipeline_mode = #tpu.pipeline_mode<synchronous>, transform_indices = @transform_0, window_bounds = array<i64: 4, 512>}, {pipeline_mode = #tpu.pipeline_mode<synchronous>, transform_indices = @transform_1, window_bounds = array<i64: 9, 4, 4>}, {pipeline_mode = #tpu.pipeline_mode<synchronous>, transform_indices = @transform_2, window_bounds = array<i64: 4, 1>}, {pipeline_mode = #tpu.pipeline_mode<synchronous>, transform_indices = @transform_3, window_bounds = array<i64: 9, 4, 4>}, {pipeline_mode = #tpu.pipeline_mode<synchronous>, transform_indices = @transform_4, window_bounds = array<i64: 4, 1>}, {pipeline_mode = #tpu.pipeline_mode<synchronous>, transform_indices = @transform_5, window_bounds = array<i64: 2, 512>}, {pipeline_mode = #tpu.pipeline_mode<synchronous>, transform_indices = @transform_6, window_bounds = array<i64: 4, 512>}]} {
    %c0 = arith.constant 0 : index
    %c0_0 = arith.constant 0 : index
    %0 = vector.load %arg1[%c0, %c0_0] : memref<4x512xf32, #tpu.memory_space<vmem>>, vector<4x512xf32>
    %c0_1 = arith.constant 0 : index
    %c0_2 = arith.constant 0 : index
    %1 = vector.load %arg6[%c0_1, %c0_2] : memref<2x512xi32, #tpu.memory_space<vmem>>, vector<2x512xi32>
    %2 = vector.extract_strided_slice %1 {offsets = [0, 0], sizes = [1, 512], strides = [1, 1]} : vector<2x512xi32> to vector<1x512xi32>
    %3 = vector.shape_cast %2 : vector<1x512xi32> to vector<1x512xi32>
    %4 = vector.broadcast %3 : vector<1x512xi32> to vector<4x512xi32>
    %5 = vector.extract_strided_slice %1 {offsets = [1, 0], sizes = [1, 512], strides = [1, 1]} : vector<2x512xi32> to vector<1x512xi32>
    %6 = vector.shape_cast %5 : vector<1x512xi32> to vector<1x512xi32>
    %7 = vector.broadcast %6 : vector<1x512xi32> to vector<4x512xi32>
    %c-1_i32 = arith.constant -1 : i32
    %8 = vector.broadcast %c-1_i32 : i32 to vector<4x512xi32>
    %9 = arith.addi %4, %8 : vector<4x512xi32>
    %c0_i32 = arith.constant 0 : i32
    %10 = vector.broadcast %c0_i32 : i32 to vector<4x512xi32>
    %11 = arith.cmpi sge, %9, %10 : vector<4x512xi32>
    %c-1_i32_3 = arith.constant -1 : i32
    %12 = vector.broadcast %c-1_i32_3 : i32 to vector<4x512xi32>
    %13 = arith.addi %4, %12 : vector<4x512xi32>
    %c16_i32 = arith.constant 16 : i32
    %14 = vector.broadcast %c16_i32 : i32 to vector<4x512xi32>
    %15 = arith.cmpi slt, %13, %14 : vector<4x512xi32>
    %16 = arith.andi %11, %15 : vector<4x512xi1>
    %c-1_i32_4 = arith.constant -1 : i32
    %17 = vector.broadcast %c-1_i32_4 : i32 to vector<4x512xi32>
    %18 = arith.addi %7, %17 : vector<4x512xi32>
    %c0_i32_5 = arith.constant 0 : i32
    %19 = vector.broadcast %c0_i32_5 : i32 to vector<4x512xi32>
    %20 = arith.cmpi sge, %18, %19 : vector<4x512xi32>
    %21 = arith.andi %16, %20 : vector<4x512xi1>
    %c-1_i32_6 = arith.constant -1 : i32
    %22 = vector.broadcast %c-1_i32_6 : i32 to vector<4x512xi32>
    %23 = arith.addi %7, %22 : vector<4x512xi32>
    %c16_i32_7 = arith.constant 16 : i32
    %24 = vector.broadcast %c16_i32_7 : i32 to vector<4x512xi32>
    %25 = arith.cmpi slt, %23, %24 : vector<4x512xi32>
    %26 = arith.andi %21, %25 : vector<4x512xi1>
    %c-1_i32_8 = arith.constant -1 : i32
    %27 = vector.broadcast %c-1_i32_8 : i32 to vector<4x512xi32>
    %28 = arith.addi %4, %27 : vector<4x512xi32>
    %c0_i32_9 = arith.constant 0 : i32
    %29 = vector.broadcast %c0_i32_9 : i32 to vector<4x512xi32>
    %30 = arith.cmpi sge, %28, %29 : vector<4x512xi32>
    %c-1_i32_10 = arith.constant -1 : i32
    %31 = vector.broadcast %c-1_i32_10 : i32 to vector<4x512xi32>
    %32 = arith.addi %4, %31 : vector<4x512xi32>
    %c16_i32_11 = arith.constant 16 : i32
    %33 = vector.broadcast %c16_i32_11 : i32 to vector<4x512xi32>
    %34 = arith.cmpi slt, %32, %33 : vector<4x512xi32>
    %35 = arith.andi %30, %34 : vector<4x512xi1>
    %c0_i32_12 = arith.constant 0 : i32
    %36 = vector.broadcast %c0_i32_12 : i32 to vector<4x512xi32>
    %37 = arith.addi %7, %36 : vector<4x512xi32>
    %c0_i32_13 = arith.constant 0 : i32
    %38 = vector.broadcast %c0_i32_13 : i32 to vector<4x512xi32>
    %39 = arith.cmpi sge, %37, %38 : vector<4x512xi32>
    %40 = arith.andi %35, %39 : vector<4x512xi1>
    %c0_i32_14 = arith.constant 0 : i32
    %41 = vector.broadcast %c0_i32_14 : i32 to vector<4x512xi32>
    %42 = arith.addi %7, %41 : vector<4x512xi32>
    %c16_i32_15 = arith.constant 16 : i32
    %43 = vector.broadcast %c16_i32_15 : i32 to vector<4x512xi32>
    %44 = arith.cmpi slt, %42, %43 : vector<4x512xi32>
    %45 = arith.andi %40, %44 : vector<4x512xi1>
    %c-1_i32_16 = arith.constant -1 : i32
    %46 = vector.broadcast %c-1_i32_16 : i32 to vector<4x512xi32>
    %47 = arith.addi %4, %46 : vector<4x512xi32>
    %c0_i32_17 = arith.constant 0 : i32
    %48 = vector.broadcast %c0_i32_17 : i32 to vector<4x512xi32>
    %49 = arith.cmpi sge, %47, %48 : vector<4x512xi32>
    %c-1_i32_18 = arith.constant -1 : i32
    %50 = vector.broadcast %c-1_i32_18 : i32 to vector<4x512xi32>
    %51 = arith.addi %4, %50 : vector<4x512xi32>
    %c16_i32_19 = arith.constant 16 : i32
    %52 = vector.broadcast %c16_i32_19 : i32 to vector<4x512xi32>
    %53 = arith.cmpi slt, %51, %52 : vector<4x512xi32>
    %54 = arith.andi %49, %53 : vector<4x512xi1>
    %c1_i32 = arith.constant 1 : i32
    %55 = vector.broadcast %c1_i32 : i32 to vector<4x512xi32>
    %56 = arith.addi %7, %55 : vector<4x512xi32>
    %c0_i32_20 = arith.constant 0 : i32
    %57 = vector.broadcast %c0_i32_20 : i32 to vector<4x512xi32>
    %58 = arith.cmpi sge, %56, %57 : vector<4x512xi32>
    %59 = arith.andi %54, %58 : vector<4x512xi1>
    %c1_i32_21 = arith.constant 1 : i32
    %60 = vector.broadcast %c1_i32_21 : i32 to vector<4x512xi32>
    %61 = arith.addi %7, %60 : vector<4x512xi32>
    %c16_i32_22 = arith.constant 16 : i32
    %62 = vector.broadcast %c16_i32_22 : i32 to vector<4x512xi32>
    %63 = arith.cmpi slt, %61, %62 : vector<4x512xi32>
    %64 = arith.andi %59, %63 : vector<4x512xi1>
    %c0_i32_23 = arith.constant 0 : i32
    %65 = vector.broadcast %c0_i32_23 : i32 to vector<4x512xi32>
    %66 = arith.addi %4, %65 : vector<4x512xi32>
    %c0_i32_24 = arith.constant 0 : i32
    %67 = vector.broadcast %c0_i32_24 : i32 to vector<4x512xi32>
    %68 = arith.cmpi sge, %66, %67 : vector<4x512xi32>
    %c0_i32_25 = arith.constant 0 : i32
    %69 = vector.broadcast %c0_i32_25 : i32 to vector<4x512xi32>
    %70 = arith.addi %4, %69 : vector<4x512xi32>
    %c16_i32_26 = arith.constant 16 : i32
    %71 = vector.broadcast %c16_i32_26 : i32 to vector<4x512xi32>
    %72 = arith.cmpi slt, %70, %71 : vector<4x512xi32>
    %73 = arith.andi %68, %72 : vector<4x512xi1>
    %c-1_i32_27 = arith.constant -1 : i32
    %74 = vector.broadcast %c-1_i32_27 : i32 to vector<4x512xi32>
    %75 = arith.addi %7, %74 : vector<4x512xi32>
    %c0_i32_28 = arith.constant 0 : i32
    %76 = vector.broadcast %c0_i32_28 : i32 to vector<4x512xi32>
    %77 = arith.cmpi sge, %75, %76 : vector<4x512xi32>
    %78 = arith.andi %73, %77 : vector<4x512xi1>
    %c-1_i32_29 = arith.constant -1 : i32
    %79 = vector.broadcast %c-1_i32_29 : i32 to vector<4x512xi32>
    %80 = arith.addi %7, %79 : vector<4x512xi32>
    %c16_i32_30 = arith.constant 16 : i32
    %81 = vector.broadcast %c16_i32_30 : i32 to vector<4x512xi32>
    %82 = arith.cmpi slt, %80, %81 : vector<4x512xi32>
    %83 = arith.andi %78, %82 : vector<4x512xi1>
    %c0_i32_31 = arith.constant 0 : i32
    %84 = vector.broadcast %c0_i32_31 : i32 to vector<4x512xi32>
    %85 = arith.addi %4, %84 : vector<4x512xi32>
    %c0_i32_32 = arith.constant 0 : i32
    %86 = vector.broadcast %c0_i32_32 : i32 to vector<4x512xi32>
    %87 = arith.cmpi sge, %85, %86 : vector<4x512xi32>
    %c0_i32_33 = arith.constant 0 : i32
    %88 = vector.broadcast %c0_i32_33 : i32 to vector<4x512xi32>
    %89 = arith.addi %4, %88 : vector<4x512xi32>
    %c16_i32_34 = arith.constant 16 : i32
    %90 = vector.broadcast %c16_i32_34 : i32 to vector<4x512xi32>
    %91 = arith.cmpi slt, %89, %90 : vector<4x512xi32>
    %92 = arith.andi %87, %91 : vector<4x512xi1>
    %c1_i32_35 = arith.constant 1 : i32
    %93 = vector.broadcast %c1_i32_35 : i32 to vector<4x512xi32>
    %94 = arith.addi %7, %93 : vector<4x512xi32>
    %c0_i32_36 = arith.constant 0 : i32
    %95 = vector.broadcast %c0_i32_36 : i32 to vector<4x512xi32>
    %96 = arith.cmpi sge, %94, %95 : vector<4x512xi32>
    %97 = arith.andi %92, %96 : vector<4x512xi1>
    %c1_i32_37 = arith.constant 1 : i32
    %98 = vector.broadcast %c1_i32_37 : i32 to vector<4x512xi32>
    %99 = arith.addi %7, %98 : vector<4x512xi32>
    %c16_i32_38 = arith.constant 16 : i32
    %100 = vector.broadcast %c16_i32_38 : i32 to vector<4x512xi32>
    %101 = arith.cmpi slt, %99, %100 : vector<4x512xi32>
    %102 = arith.andi %97, %101 : vector<4x512xi1>
    %c1_i32_39 = arith.constant 1 : i32
    %103 = vector.broadcast %c1_i32_39 : i32 to vector<4x512xi32>
    %104 = arith.addi %4, %103 : vector<4x512xi32>
    %c0_i32_40 = arith.constant 0 : i32
    %105 = vector.broadcast %c0_i32_40 : i32 to vector<4x512xi32>
    %106 = arith.cmpi sge, %104, %105 : vector<4x512xi32>
    %c1_i32_41 = arith.constant 1 : i32
    %107 = vector.broadcast %c1_i32_41 : i32 to vector<4x512xi32>
    %108 = arith.addi %4, %107 : vector<4x512xi32>
    %c16_i32_42 = arith.constant 16 : i32
    %109 = vector.broadcast %c16_i32_42 : i32 to vector<4x512xi32>
    %110 = arith.cmpi slt, %108, %109 : vector<4x512xi32>
    %111 = arith.andi %106, %110 : vector<4x512xi1>
    %c-1_i32_43 = arith.constant -1 : i32
    %112 = vector.broadcast %c-1_i32_43 : i32 to vector<4x512xi32>
    %113 = arith.addi %7, %112 : vector<4x512xi32>
    %c0_i32_44 = arith.constant 0 : i32
    %114 = vector.broadcast %c0_i32_44 : i32 to vector<4x512xi32>
    %115 = arith.cmpi sge, %113, %114 : vector<4x512xi32>
    %116 = arith.andi %111, %115 : vector<4x512xi1>
    %c-1_i32_45 = arith.constant -1 : i32
    %117 = vector.broadcast %c-1_i32_45 : i32 to vector<4x512xi32>
    %118 = arith.addi %7, %117 : vector<4x512xi32>
    %c16_i32_46 = arith.constant 16 : i32
    %119 = vector.broadcast %c16_i32_46 : i32 to vector<4x512xi32>
    %120 = arith.cmpi slt, %118, %119 : vector<4x512xi32>
    %121 = arith.andi %116, %120 : vector<4x512xi1>
    %c1_i32_47 = arith.constant 1 : i32
    %122 = vector.broadcast %c1_i32_47 : i32 to vector<4x512xi32>
    %123 = arith.addi %4, %122 : vector<4x512xi32>
    %c0_i32_48 = arith.constant 0 : i32
    %124 = vector.broadcast %c0_i32_48 : i32 to vector<4x512xi32>
    %125 = arith.cmpi sge, %123, %124 : vector<4x512xi32>
    %c1_i32_49 = arith.constant 1 : i32
    %126 = vector.broadcast %c1_i32_49 : i32 to vector<4x512xi32>
    %127 = arith.addi %4, %126 : vector<4x512xi32>
    %c16_i32_50 = arith.constant 16 : i32
    %128 = vector.broadcast %c16_i32_50 : i32 to vector<4x512xi32>
    %129 = arith.cmpi slt, %127, %128 : vector<4x512xi32>
    %130 = arith.andi %125, %129 : vector<4x512xi1>
    %c0_i32_51 = arith.constant 0 : i32
    %131 = vector.broadcast %c0_i32_51 : i32 to vector<4x512xi32>
    %132 = arith.addi %7, %131 : vector<4x512xi32>
    %c0_i32_52 = arith.constant 0 : i32
    %133 = vector.broadcast %c0_i32_52 : i32 to vector<4x512xi32>
    %134 = arith.cmpi sge, %132, %133 : vector<4x512xi32>
    %135 = arith.andi %130, %134 : vector<4x512xi1>
    %c0_i32_53 = arith.constant 0 : i32
    %136 = vector.broadcast %c0_i32_53 : i32 to vector<4x512xi32>
    %137 = arith.addi %7, %136 : vector<4x512xi32>
    %c16_i32_54 = arith.constant 16 : i32
    %138 = vector.broadcast %c16_i32_54 : i32 to vector<4x512xi32>
    %139 = arith.cmpi slt, %137, %138 : vector<4x512xi32>
    %140 = arith.andi %135, %139 : vector<4x512xi1>
    %c1_i32_55 = arith.constant 1 : i32
    %141 = vector.broadcast %c1_i32_55 : i32 to vector<4x512xi32>
    %142 = arith.addi %4, %141 : vector<4x512xi32>
    %c0_i32_56 = arith.constant 0 : i32
    %143 = vector.broadcast %c0_i32_56 : i32 to vector<4x512xi32>
    %144 = arith.cmpi sge, %142, %143 : vector<4x512xi32>
    %c1_i32_57 = arith.constant 1 : i32
    %145 = vector.broadcast %c1_i32_57 : i32 to vector<4x512xi32>
    %146 = arith.addi %4, %145 : vector<4x512xi32>
    %c16_i32_58 = arith.constant 16 : i32
    %147 = vector.broadcast %c16_i32_58 : i32 to vector<4x512xi32>
    %148 = arith.cmpi slt, %146, %147 : vector<4x512xi32>
    %149 = arith.andi %144, %148 : vector<4x512xi1>
    %c1_i32_59 = arith.constant 1 : i32
    %150 = vector.broadcast %c1_i32_59 : i32 to vector<4x512xi32>
    %151 = arith.addi %7, %150 : vector<4x512xi32>
    %c0_i32_60 = arith.constant 0 : i32
    %152 = vector.broadcast %c0_i32_60 : i32 to vector<4x512xi32>
    %153 = arith.cmpi sge, %151, %152 : vector<4x512xi32>
    %154 = arith.andi %149, %153 : vector<4x512xi1>
    %c1_i32_61 = arith.constant 1 : i32
    %155 = vector.broadcast %c1_i32_61 : i32 to vector<4x512xi32>
    %156 = arith.addi %7, %155 : vector<4x512xi32>
    %c16_i32_62 = arith.constant 16 : i32
    %157 = vector.broadcast %c16_i32_62 : i32 to vector<4x512xi32>
    %158 = arith.cmpi slt, %156, %157 : vector<4x512xi32>
    %159 = arith.andi %154, %158 : vector<4x512xi1>
    %c17_i32 = arith.constant 17 : i32
    %160 = tpu.dynamic_rotate %0 by %c17_i32 dim 1 : vector<4x512xf32>, i32 -> vector<4x512xf32>
    %cst = arith.constant 0.000000e+00 : f32
    %161 = vector.broadcast %cst : f32 to vector<4x512xf32>
    %162 = arith.select %26, %160, %161 : vector<4x512xi1>, vector<4x512xf32>
    %c0_63 = arith.constant 0 : index
    %c0_64 = arith.constant 0 : index
    %c0_65 = arith.constant 0 : index
    %163 = vector.load %arg2[%c0_63, %c0_64, %c0_65] : memref<9x4x4xf32, #tpu.memory_space<vmem>>, vector<1x4x4xf32>
    %164 = vector.shape_cast %163 : vector<1x4x4xf32> to vector<4x4xf32>
    %cst_66 = arith.constant dense<0.000000e+00> : vector<4x512xf32>
    %165 = tpu.matmul %164, %162, %cst_66 {dimension_numbers = #tpu.dot_dimension_numbers<[1], [0], [0], [1], [0, 0, 1, 1], [], []>} : vector<4x4xf32>, vector<4x512xf32>, vector<4x512xf32> -> vector<4x512xf32>
    %c16_i32_67 = arith.constant 16 : i32
    %166 = tpu.dynamic_rotate %0 by %c16_i32_67 dim 1 : vector<4x512xf32>, i32 -> vector<4x512xf32>
    %cst_68 = arith.constant 0.000000e+00 : f32
    %167 = vector.broadcast %cst_68 : f32 to vector<4x512xf32>
    %168 = arith.select %45, %166, %167 : vector<4x512xi1>, vector<4x512xf32>
    %c1 = arith.constant 1 : index
    %c0_69 = arith.constant 0 : index
    %c0_70 = arith.constant 0 : index
    %169 = vector.load %arg2[%c1, %c0_69, %c0_70] : memref<9x4x4xf32, #tpu.memory_space<vmem>>, vector<1x4x4xf32>
    %170 = vector.shape_cast %169 : vector<1x4x4xf32> to vector<4x4xf32>
    %cst_71 = arith.constant dense<0.000000e+00> : vector<4x512xf32>
    %171 = tpu.matmul %170, %168, %cst_71 {dimension_numbers = #tpu.dot_dimension_numbers<[1], [0], [0], [1], [0, 0, 1, 1], [], []>} : vector<4x4xf32>, vector<4x512xf32>, vector<4x512xf32> -> vector<4x512xf32>
    %172 = arith.addf %165, %171 : vector<4x512xf32>
    %c15_i32 = arith.constant 15 : i32
    %173 = tpu.dynamic_rotate %0 by %c15_i32 dim 1 : vector<4x512xf32>, i32 -> vector<4x512xf32>
    %cst_72 = arith.constant 0.000000e+00 : f32
    %174 = vector.broadcast %cst_72 : f32 to vector<4x512xf32>
    %175 = arith.select %64, %173, %174 : vector<4x512xi1>, vector<4x512xf32>
    %c2 = arith.constant 2 : index
    %c0_73 = arith.constant 0 : index
    %c0_74 = arith.constant 0 : index
    %176 = vector.load %arg2[%c2, %c0_73, %c0_74] : memref<9x4x4xf32, #tpu.memory_space<vmem>>, vector<1x4x4xf32>
    %177 = vector.shape_cast %176 : vector<1x4x4xf32> to vector<4x4xf32>
    %cst_75 = arith.constant dense<0.000000e+00> : vector<4x512xf32>
    %178 = tpu.matmul %177, %175, %cst_75 {dimension_numbers = #tpu.dot_dimension_numbers<[1], [0], [0], [1], [0, 0, 1, 1], [], []>} : vector<4x4xf32>, vector<4x512xf32>, vector<4x512xf32> -> vector<4x512xf32>
    %179 = arith.addf %172, %178 : vector<4x512xf32>
    %c1_i32_76 = arith.constant 1 : i32
    %180 = tpu.dynamic_rotate %0 by %c1_i32_76 dim 1 : vector<4x512xf32>, i32 -> vector<4x512xf32>
    %cst_77 = arith.constant 0.000000e+00 : f32
    %181 = vector.broadcast %cst_77 : f32 to vector<4x512xf32>
    %182 = arith.select %83, %180, %181 : vector<4x512xi1>, vector<4x512xf32>
    %c3 = arith.constant 3 : index
    %c0_78 = arith.constant 0 : index
    %c0_79 = arith.constant 0 : index
    %183 = vector.load %arg2[%c3, %c0_78, %c0_79] : memref<9x4x4xf32, #tpu.memory_space<vmem>>, vector<1x4x4xf32>
    %184 = vector.shape_cast %183 : vector<1x4x4xf32> to vector<4x4xf32>
    %cst_80 = arith.constant dense<0.000000e+00> : vector<4x512xf32>
    %185 = tpu.matmul %184, %182, %cst_80 {dimension_numbers = #tpu.dot_dimension_numbers<[1], [0], [0], [1], [0, 0, 1, 1], [], []>} : vector<4x4xf32>, vector<4x512xf32>, vector<4x512xf32> -> vector<4x512xf32>
    %186 = arith.addf %179, %185 : vector<4x512xf32>
    %c4 = arith.constant 4 : index
    %c0_81 = arith.constant 0 : index
    %c0_82 = arith.constant 0 : index
    %187 = vector.load %arg2[%c4, %c0_81, %c0_82] : memref<9x4x4xf32, #tpu.memory_space<vmem>>, vector<1x4x4xf32>
    %188 = vector.shape_cast %187 : vector<1x4x4xf32> to vector<4x4xf32>
    %cst_83 = arith.constant dense<0.000000e+00> : vector<4x512xf32>
    %189 = tpu.matmul %188, %0, %cst_83 {dimension_numbers = #tpu.dot_dimension_numbers<[1], [0], [0], [1], [0, 0, 1, 1], [], []>} : vector<4x4xf32>, vector<4x512xf32>, vector<4x512xf32> -> vector<4x512xf32>
    %190 = arith.addf %186, %189 : vector<4x512xf32>
    %c511_i32 = arith.constant 511 : i32
    %191 = tpu.dynamic_rotate %0 by %c511_i32 dim 1 : vector<4x512xf32>, i32 -> vector<4x512xf32>
    %cst_84 = arith.constant 0.000000e+00 : f32
    %192 = vector.broadcast %cst_84 : f32 to vector<4x512xf32>
    %193 = arith.select %102, %191, %192 : vector<4x512xi1>, vector<4x512xf32>
    %c5 = arith.constant 5 : index
    %c0_85 = arith.constant 0 : index
    %c0_86 = arith.constant 0 : index
    %194 = vector.load %arg2[%c5, %c0_85, %c0_86] : memref<9x4x4xf32, #tpu.memory_space<vmem>>, vector<1x4x4xf32>
    %195 = vector.shape_cast %194 : vector<1x4x4xf32> to vector<4x4xf32>
    %cst_87 = arith.constant dense<0.000000e+00> : vector<4x512xf32>
    %196 = tpu.matmul %195, %193, %cst_87 {dimension_numbers = #tpu.dot_dimension_numbers<[1], [0], [0], [1], [0, 0, 1, 1], [], []>} : vector<4x4xf32>, vector<4x512xf32>, vector<4x512xf32> -> vector<4x512xf32>
    %197 = arith.addf %190, %196 : vector<4x512xf32>
    %c497_i32 = arith.constant 497 : i32
    %198 = tpu.dynamic_rotate %0 by %c497_i32 dim 1 : vector<4x512xf32>, i32 -> vector<4x512xf32>
    %cst_88 = arith.constant 0.000000e+00 : f32
    %199 = vector.broadcast %cst_88 : f32 to vector<4x512xf32>
    %200 = arith.select %121, %198, %199 : vector<4x512xi1>, vector<4x512xf32>
    %c6 = arith.constant 6 : index
    %c0_89 = arith.constant 0 : index
    %c0_90 = arith.constant 0 : index
    %201 = vector.load %arg2[%c6, %c0_89, %c0_90] : memref<9x4x4xf32, #tpu.memory_space<vmem>>, vector<1x4x4xf32>
    %202 = vector.shape_cast %201 : vector<1x4x4xf32> to vector<4x4xf32>
    %cst_91 = arith.constant dense<0.000000e+00> : vector<4x512xf32>
    %203 = tpu.matmul %202, %200, %cst_91 {dimension_numbers = #tpu.dot_dimension_numbers<[1], [0], [0], [1], [0, 0, 1, 1], [], []>} : vector<4x4xf32>, vector<4x512xf32>, vector<4x512xf32> -> vector<4x512xf32>
    %204 = arith.addf %197, %203 : vector<4x512xf32>
    %c496_i32 = arith.constant 496 : i32
    %205 = tpu.dynamic_rotate %0 by %c496_i32 dim 1 : vector<4x512xf32>, i32 -> vector<4x512xf32>
    %cst_92 = arith.constant 0.000000e+00 : f32
    %206 = vector.broadcast %cst_92 : f32 to vector<4x512xf32>
    %207 = arith.select %140, %205, %206 : vector<4x512xi1>, vector<4x512xf32>
    %c7 = arith.constant 7 : index
    %c0_93 = arith.constant 0 : index
    %c0_94 = arith.constant 0 : index
    %208 = vector.load %arg2[%c7, %c0_93, %c0_94] : memref<9x4x4xf32, #tpu.memory_space<vmem>>, vector<1x4x4xf32>
    %209 = vector.shape_cast %208 : vector<1x4x4xf32> to vector<4x4xf32>
    %cst_95 = arith.constant dense<0.000000e+00> : vector<4x512xf32>
    %210 = tpu.matmul %209, %207, %cst_95 {dimension_numbers = #tpu.dot_dimension_numbers<[1], [0], [0], [1], [0, 0, 1, 1], [], []>} : vector<4x4xf32>, vector<4x512xf32>, vector<4x512xf32> -> vector<4x512xf32>
    %211 = arith.addf %204, %210 : vector<4x512xf32>
    %c495_i32 = arith.constant 495 : i32
    %212 = tpu.dynamic_rotate %0 by %c495_i32 dim 1 : vector<4x512xf32>, i32 -> vector<4x512xf32>
    %cst_96 = arith.constant 0.000000e+00 : f32
    %213 = vector.broadcast %cst_96 : f32 to vector<4x512xf32>
    %214 = arith.select %159, %212, %213 : vector<4x512xi1>, vector<4x512xf32>
    %c8 = arith.constant 8 : index
    %c0_97 = arith.constant 0 : index
    %c0_98 = arith.constant 0 : index
    %215 = vector.load %arg2[%c8, %c0_97, %c0_98] : memref<9x4x4xf32, #tpu.memory_space<vmem>>, vector<1x4x4xf32>
    %216 = vector.shape_cast %215 : vector<1x4x4xf32> to vector<4x4xf32>
    %cst_99 = arith.constant dense<0.000000e+00> : vector<4x512xf32>
    %217 = tpu.matmul %216, %214, %cst_99 {dimension_numbers = #tpu.dot_dimension_numbers<[1], [0], [0], [1], [0, 0, 1, 1], [], []>} : vector<4x4xf32>, vector<4x512xf32>, vector<4x512xf32> -> vector<4x512xf32>
    %218 = arith.addf %211, %217 : vector<4x512xf32>
    %c0_100 = arith.constant 0 : index
    %c0_101 = arith.constant 0 : index
    %219 = vector.load %arg3[%c0_100, %c0_101] : memref<4x1xf32, #tpu.memory_space<vmem>>, vector<4x1xf32>
    %220 = vector.broadcast %219 : vector<4x1xf32> to vector<4x512xf32>
    %221 = arith.addf %218, %220 : vector<4x512xf32>
    %cst_102 = arith.constant 0.000000e+00 : f32
    %222 = vector.broadcast %cst_102 : f32 to vector<4x512xf32>
    %223 = arith.maximumf %221, %222 : vector<4x512xf32>
    %c17_i32_103 = arith.constant 17 : i32
    %224 = tpu.dynamic_rotate %223 by %c17_i32_103 dim 1 : vector<4x512xf32>, i32 -> vector<4x512xf32>
    %cst_104 = arith.constant 0.000000e+00 : f32
    %225 = vector.broadcast %cst_104 : f32 to vector<4x512xf32>
    %226 = arith.select %26, %224, %225 : vector<4x512xi1>, vector<4x512xf32>
    %c0_105 = arith.constant 0 : index
    %c0_106 = arith.constant 0 : index
    %c0_107 = arith.constant 0 : index
    %227 = vector.load %arg4[%c0_105, %c0_106, %c0_107] : memref<9x4x4xf32, #tpu.memory_space<vmem>>, vector<1x4x4xf32>
    %228 = vector.shape_cast %227 : vector<1x4x4xf32> to vector<4x4xf32>
    %cst_108 = arith.constant dense<0.000000e+00> : vector<4x512xf32>
    %229 = tpu.matmul %228, %226, %cst_108 {dimension_numbers = #tpu.dot_dimension_numbers<[1], [0], [0], [1], [0, 0, 1, 1], [], []>} : vector<4x4xf32>, vector<4x512xf32>, vector<4x512xf32> -> vector<4x512xf32>
    %c16_i32_109 = arith.constant 16 : i32
    %230 = tpu.dynamic_rotate %223 by %c16_i32_109 dim 1 : vector<4x512xf32>, i32 -> vector<4x512xf32>
    %cst_110 = arith.constant 0.000000e+00 : f32
    %231 = vector.broadcast %cst_110 : f32 to vector<4x512xf32>
    %232 = arith.select %45, %230, %231 : vector<4x512xi1>, vector<4x512xf32>
    %c1_111 = arith.constant 1 : index
    %c0_112 = arith.constant 0 : index
    %c0_113 = arith.constant 0 : index
    %233 = vector.load %arg4[%c1_111, %c0_112, %c0_113] : memref<9x4x4xf32, #tpu.memory_space<vmem>>, vector<1x4x4xf32>
    %234 = vector.shape_cast %233 : vector<1x4x4xf32> to vector<4x4xf32>
    %cst_114 = arith.constant dense<0.000000e+00> : vector<4x512xf32>
    %235 = tpu.matmul %234, %232, %cst_114 {dimension_numbers = #tpu.dot_dimension_numbers<[1], [0], [0], [1], [0, 0, 1, 1], [], []>} : vector<4x4xf32>, vector<4x512xf32>, vector<4x512xf32> -> vector<4x512xf32>
    %236 = arith.addf %229, %235 : vector<4x512xf32>
    %c15_i32_115 = arith.constant 15 : i32
    %237 = tpu.dynamic_rotate %223 by %c15_i32_115 dim 1 : vector<4x512xf32>, i32 -> vector<4x512xf32>
    %cst_116 = arith.constant 0.000000e+00 : f32
    %238 = vector.broadcast %cst_116 : f32 to vector<4x512xf32>
    %239 = arith.select %64, %237, %238 : vector<4x512xi1>, vector<4x512xf32>
    %c2_117 = arith.constant 2 : index
    %c0_118 = arith.constant 0 : index
    %c0_119 = arith.constant 0 : index
    %240 = vector.load %arg4[%c2_117, %c0_118, %c0_119] : memref<9x4x4xf32, #tpu.memory_space<vmem>>, vector<1x4x4xf32>
    %241 = vector.shape_cast %240 : vector<1x4x4xf32> to vector<4x4xf32>
    %cst_120 = arith.constant dense<0.000000e+00> : vector<4x512xf32>
    %242 = tpu.matmul %241, %239, %cst_120 {dimension_numbers = #tpu.dot_dimension_numbers<[1], [0], [0], [1], [0, 0, 1, 1], [], []>} : vector<4x4xf32>, vector<4x512xf32>, vector<4x512xf32> -> vector<4x512xf32>
    %243 = arith.addf %236, %242 : vector<4x512xf32>
    %c1_i32_121 = arith.constant 1 : i32
    %244 = tpu.dynamic_rotate %223 by %c1_i32_121 dim 1 : vector<4x512xf32>, i32 -> vector<4x512xf32>
    %cst_122 = arith.constant 0.000000e+00 : f32
    %245 = vector.broadcast %cst_122 : f32 to vector<4x512xf32>
    %246 = arith.select %83, %244, %245 : vector<4x512xi1>, vector<4x512xf32>
    %c3_123 = arith.constant 3 : index
    %c0_124 = arith.constant 0 : index
    %c0_125 = arith.constant 0 : index
    %247 = vector.load %arg4[%c3_123, %c0_124, %c0_125] : memref<9x4x4xf32, #tpu.memory_space<vmem>>, vector<1x4x4xf32>
    %248 = vector.shape_cast %247 : vector<1x4x4xf32> to vector<4x4xf32>
    %cst_126 = arith.constant dense<0.000000e+00> : vector<4x512xf32>
    %249 = tpu.matmul %248, %246, %cst_126 {dimension_numbers = #tpu.dot_dimension_numbers<[1], [0], [0], [1], [0, 0, 1, 1], [], []>} : vector<4x4xf32>, vector<4x512xf32>, vector<4x512xf32> -> vector<4x512xf32>
    %250 = arith.addf %243, %249 : vector<4x512xf32>
    %c4_127 = arith.constant 4 : index
    %c0_128 = arith.constant 0 : index
    %c0_129 = arith.constant 0 : index
    %251 = vector.load %arg4[%c4_127, %c0_128, %c0_129] : memref<9x4x4xf32, #tpu.memory_space<vmem>>, vector<1x4x4xf32>
    %252 = vector.shape_cast %251 : vector<1x4x4xf32> to vector<4x4xf32>
    %cst_130 = arith.constant dense<0.000000e+00> : vector<4x512xf32>
    %253 = tpu.matmul %252, %223, %cst_130 {dimension_numbers = #tpu.dot_dimension_numbers<[1], [0], [0], [1], [0, 0, 1, 1], [], []>} : vector<4x4xf32>, vector<4x512xf32>, vector<4x512xf32> -> vector<4x512xf32>
    %254 = arith.addf %250, %253 : vector<4x512xf32>
    %c511_i32_131 = arith.constant 511 : i32
    %255 = tpu.dynamic_rotate %223 by %c511_i32_131 dim 1 : vector<4x512xf32>, i32 -> vector<4x512xf32>
    %cst_132 = arith.constant 0.000000e+00 : f32
    %256 = vector.broadcast %cst_132 : f32 to vector<4x512xf32>
    %257 = arith.select %102, %255, %256 : vector<4x512xi1>, vector<4x512xf32>
    %c5_133 = arith.constant 5 : index
    %c0_134 = arith.constant 0 : index
    %c0_135 = arith.constant 0 : index
    %258 = vector.load %arg4[%c5_133, %c0_134, %c0_135] : memref<9x4x4xf32, #tpu.memory_space<vmem>>, vector<1x4x4xf32>
    %259 = vector.shape_cast %258 : vector<1x4x4xf32> to vector<4x4xf32>
    %cst_136 = arith.constant dense<0.000000e+00> : vector<4x512xf32>
    %260 = tpu.matmul %259, %257, %cst_136 {dimension_numbers = #tpu.dot_dimension_numbers<[1], [0], [0], [1], [0, 0, 1, 1], [], []>} : vector<4x4xf32>, vector<4x512xf32>, vector<4x512xf32> -> vector<4x512xf32>
    %261 = arith.addf %254, %260 : vector<4x512xf32>
    %c497_i32_137 = arith.constant 497 : i32
    %262 = tpu.dynamic_rotate %223 by %c497_i32_137 dim 1 : vector<4x512xf32>, i32 -> vector<4x512xf32>
    %cst_138 = arith.constant 0.000000e+00 : f32
    %263 = vector.broadcast %cst_138 : f32 to vector<4x512xf32>
    %264 = arith.select %121, %262, %263 : vector<4x512xi1>, vector<4x512xf32>
    %c6_139 = arith.constant 6 : index
    %c0_140 = arith.constant 0 : index
    %c0_141 = arith.constant 0 : index
    %265 = vector.load %arg4[%c6_139, %c0_140, %c0_141] : memref<9x4x4xf32, #tpu.memory_space<vmem>>, vector<1x4x4xf32>
    %266 = vector.shape_cast %265 : vector<1x4x4xf32> to vector<4x4xf32>
    %cst_142 = arith.constant dense<0.000000e+00> : vector<4x512xf32>
    %267 = tpu.matmul %266, %264, %cst_142 {dimension_numbers = #tpu.dot_dimension_numbers<[1], [0], [0], [1], [0, 0, 1, 1], [], []>} : vector<4x4xf32>, vector<4x512xf32>, vector<4x512xf32> -> vector<4x512xf32>
    %268 = arith.addf %261, %267 : vector<4x512xf32>
    %c496_i32_143 = arith.constant 496 : i32
    %269 = tpu.dynamic_rotate %223 by %c496_i32_143 dim 1 : vector<4x512xf32>, i32 -> vector<4x512xf32>
    %cst_144 = arith.constant 0.000000e+00 : f32
    %270 = vector.broadcast %cst_144 : f32 to vector<4x512xf32>
    %271 = arith.select %140, %269, %270 : vector<4x512xi1>, vector<4x512xf32>
    %c7_145 = arith.constant 7 : index
    %c0_146 = arith.constant 0 : index
    %c0_147 = arith.constant 0 : index
    %272 = vector.load %arg4[%c7_145, %c0_146, %c0_147] : memref<9x4x4xf32, #tpu.memory_space<vmem>>, vector<1x4x4xf32>
    %273 = vector.shape_cast %272 : vector<1x4x4xf32> to vector<4x4xf32>
    %cst_148 = arith.constant dense<0.000000e+00> : vector<4x512xf32>
    %274 = tpu.matmul %273, %271, %cst_148 {dimension_numbers = #tpu.dot_dimension_numbers<[1], [0], [0], [1], [0, 0, 1, 1], [], []>} : vector<4x4xf32>, vector<4x512xf32>, vector<4x512xf32> -> vector<4x512xf32>
    %275 = arith.addf %268, %274 : vector<4x512xf32>
    %c495_i32_149 = arith.constant 495 : i32
    %276 = tpu.dynamic_rotate %223 by %c495_i32_149 dim 1 : vector<4x512xf32>, i32 -> vector<4x512xf32>
    %cst_150 = arith.constant 0.000000e+00 : f32
    %277 = vector.broadcast %cst_150 : f32 to vector<4x512xf32>
    %278 = arith.select %159, %276, %277 : vector<4x512xi1>, vector<4x512xf32>
    %c8_151 = arith.constant 8 : index
    %c0_152 = arith.constant 0 : index
    %c0_153 = arith.constant 0 : index
    %279 = vector.load %arg4[%c8_151, %c0_152, %c0_153] : memref<9x4x4xf32, #tpu.memory_space<vmem>>, vector<1x4x4xf32>
    %280 = vector.shape_cast %279 : vector<1x4x4xf32> to vector<4x4xf32>
    %cst_154 = arith.constant dense<0.000000e+00> : vector<4x512xf32>
    %281 = tpu.matmul %280, %278, %cst_154 {dimension_numbers = #tpu.dot_dimension_numbers<[1], [0], [0], [1], [0, 0, 1, 1], [], []>} : vector<4x4xf32>, vector<4x512xf32>, vector<4x512xf32> -> vector<4x512xf32>
    %282 = arith.addf %275, %281 : vector<4x512xf32>
    %c0_155 = arith.constant 0 : index
    %c0_156 = arith.constant 0 : index
    %283 = vector.load %arg5[%c0_155, %c0_156] : memref<4x1xf32, #tpu.memory_space<vmem>>, vector<4x1xf32>
    %284 = vector.broadcast %283 : vector<4x1xf32> to vector<4x512xf32>
    %285 = arith.addf %282, %284 : vector<4x512xf32>
    %286 = arith.addf %0, %285 : vector<4x512xf32>
    %cst_157 = arith.constant 0.000000e+00 : f32
    %287 = vector.broadcast %cst_157 : f32 to vector<4x512xf32>
    %288 = arith.maximumf %286, %287 : vector<4x512xf32>
    %c0_158 = arith.constant 0 : index
    %c0_159 = arith.constant 0 : index
    %289 = vector.load %arg7[%c0_158, %c0_159] : memref<4x512xf32, #tpu.memory_space<vmem>>, vector<4x512xf32>
    tpu.vector_store %arg7[%c0_158, %c0_159], %288 {strides = array<i32>} : memref<4x512xf32, #tpu.memory_space<vmem>>, vector<4x512xf32>,
    return
  }
  func.func @transform_0(%arg0: i32) -> (i32, i32) {
    %c0_i32 = arith.constant 0 : i32
    %c0_i32_0 = arith.constant 0 : i32
    %c0_i32_1 = arith.constant 0 : i32
    return %c0_i32, %c0_i32_0 : i32, i32
  }
  func.func @transform_1(%arg0: i32) -> (i32, i32, i32) {
    %c0_i32 = arith.constant 0 : i32
    %c0_i32_0 = arith.constant 0 : i32
    %c0_i32_1 = arith.constant 0 : i32
    %c0_i32_2 = arith.constant 0 : i32
    return %c0_i32, %c0_i32_0, %c0_i32_1 : i32, i32, i32
  }
  func.func @transform_2(%arg0: i32) -> (i32, i32) {
    %c0_i32 = arith.constant 0 : i32
    %c0_i32_0 = arith.constant 0 : i32
    %c0_i32_1 = arith.constant 0 : i32
    return %c0_i32, %c0_i32_0 : i32, i32
  }
  func.func @transform_3(%arg0: i32) -> (i32, i32, i32) {
    %c0_i32 = arith.constant 0 : i32
    %c0_i32_0 = arith.constant 0 : i32
    %c0_i32_1 = arith.constant 0 : i32
    %c0_i32_2 = arith.constant 0 : i32
    return %c0_i32, %c0_i32_0, %c0_i32_1 : i32, i32, i32
  }
  func.func @transform_4(%arg0: i32) -> (i32, i32) {
    %c0_i32 = arith.constant 0 : i32
    %c0_i32_0 = arith.constant 0 : i32
    %c0_i32_1 = arith.constant 0 : i32
    return %c0_i32, %c0_i32_0 : i32, i32
  }
  func.func @transform_5(%arg0: i32) -> (i32, i32) {
    %c0_i32 = arith.constant 0 : i32
    %c0_i32_0 = arith.constant 0 : i32
    %c0_i32_1 = arith.constant 0 : i32
    return %c0_i32, %c0_i32_0 : i32, i32
  }
  func.func @transform_6(%arg0: i32) -> (i32, i32) {
    %c0_i32 = arith.constant 0 : i32
    %c0_i32_0 = arith.constant 0 : i32
    %c0_i32_1 = arith.constant 0 : i32
    return %c0_i32, %c0_i32_0 : i32, i32
  }
}

</mosaic_0001>

<llo_original>
// kernel: tpu_custom_call.1
$region0: #{tpu_custom_call.1}
  #allocation0 [shape = 'u32[]', space=smem, size = 0x4, offset = 0x4, fixed_abs, tag = 'smem constant byte address 0x4 - core index']
  #allocation1 [shape = 'u32[144,128]{1,0:T(1,128)}', space=vmem, size = 0x12000, scoped, tag = 'internal scratch']
  %s0 = inlined_call_operand.vmem [shape: f32[4,512], index: 0, kind: input, shape index: {}]
  %s1 = inlined_call_operand.vmem [shape: f32[9,4,4], index: 1, kind: input, shape index: {}]
  %s2 = inlined_call_operand.vmem [shape: f32[4,1], index: 2, kind: input, shape index: {}]
  %s3 = inlined_call_operand.vmem [shape: f32[9,4,4], index: 3, kind: input, shape index: {}]
  %s4 = inlined_call_operand.vmem [shape: f32[4,1], index: 4, kind: input, shape index: {}]
  %s5 = inlined_call_operand.vmem [shape: s32[2,512], index: 5, kind: input, shape index: {}]
  %s6 = inlined_call_operand.hbm [shape: f32[4,512], index: 6, kind: output, shape index: {}]
  %s7 = sld [smem:[#allocation0]]
  $region34: #{tpu_custom_call.1} parent=0
    _
  %s9 = ssub.s32 1, %s7
  %s10 = scalar_select 0, %s9, %s7
  $region1: #{tpu_custom_call.1} parent=0
    #allocation2 [shape = 'u8[8192]{0}', space=vmem, size = 0x2000, scoped, tag = 'output window, operand 0, single buffered']
    #allocation3 [shape = 's32[1]{0}', space=sflag, size = 0x4, scoped, tag = 'scoped memory for tpu_custom_call.1']
    %11 = vsyncpa [#allocation3], 0
    // Predicated region
    $region2: #{tpu_custom_call.1} parent=1 // pred_check
      _
    $region3: #{tpu_custom_call.1} parent=1 // pred_check_branch
      %13 = sbr.rel (0) target = $region5
    $region4: #{tpu_custom_call.1} parent=1 // pred_region
      _
    $region5: #{tpu_custom_call.1} parent=1 // pred_fallthru
      _
    // Predicated region
    $region6: #{tpu_custom_call.1} parent=1 // pred_check
      _
    $region7: #{tpu_custom_call.1} parent=1 // pred_check_branch
      %15 = sbr.rel (0) target = $region9
    $region8: #{tpu_custom_call.1} parent=1 // pred_region
      _
    $region9: #{tpu_custom_call.1} parent=1 // pred_fallthru
      _
    // Predicated region
    $region10: #{tpu_custom_call.1} parent=1 // pred_check
      _
    $region11: #{tpu_custom_call.1} parent=1 // pred_check_branch
      %17 = sbr.rel (0) target = $region13
    $region12: #{tpu_custom_call.1} parent=1 // pred_region
      _
    $region13: #{tpu_custom_call.1} parent=1 // pred_fallthru
      _
    // Predicated region
    $region14: #{tpu_custom_call.1} parent=1 // pred_check
      _
    $region15: #{tpu_custom_call.1} parent=1 // pred_check_branch
      %19 = sbr.rel (0) target = $region17
    $region16: #{tpu_custom_call.1} parent=1 // pred_region
      _
    $region17: #{tpu_custom_call.1} parent=1 // pred_fallthru
      _
    // Predicated region
    $region18: #{tpu_custom_call.1} parent=1 // pred_check
      _
    $region19: #{tpu_custom_call.1} parent=1 // pred_check_branch
      %21 = sbr.rel (0) target = $region21
    $region20: #{tpu_custom_call.1} parent=1 // pred_region
      _
    $region21: #{tpu_custom_call.1} parent=1 // pred_fallthru
      _
    // Predicated region
    $region22: #{tpu_custom_call.1} parent=1 // pred_check
      _
    $region23: #{tpu_custom_call.1} parent=1 // pred_check_branch
      %23 = sbr.rel (0) target = $region25
    $region24: #{tpu_custom_call.1} parent=1 // pred_region
      _
    $region25: #{tpu_custom_call.1} parent=1 // pred_fallthru
      _
    %v24 = vld [vmem:[%s0] sm:$0xff]
    %v25 = vld [vmem:[%s0 + $0x8] sm:$0xff]
    %v26 = vld [vmem:[%s5] sm:$0xff]
    %v27 = vlaneseq
    %v28 = vshrl.u32 %v27, 7
    %v29 = vsub.s32 0, %v28
    %v30 = vrot.slane %v26, %v29
    %v31 = vlaneseq
    %v32 = vshrl.u32 %v31, 7
    %v33 = vsub.s32 2, %v32
    %v34 = vrot.slane %v26, %v33
    %v35 = vlaneseq
    %v36 = vshrl.u32 %v35, 7
    %v37 = vsub.s32 4, %v36
    %v38 = vrot.slane %v26, %v37
    %v39 = vlaneseq
    %v40 = vshrl.u32 %v39, 7
    %v41 = vsub.s32 6, %v40
    %v42 = vrot.slane %v26, %v41
    %v43 = vlaneseq
    %v44 = vshrl.u32 %v43, 7
    %v45 = vsub.s32 0, %v44
    %v46 = vrot.slane %v30, %v45
    %v47 = vlaneseq
    %v48 = vshrl.u32 %v47, 7
    %v49 = vsub.s32 0, %v48
    %v50 = vrot.slane %v34, %v49
    %v51 = vlaneseq
    %v52 = vshrl.u32 %v51, 7
    %v53 = vsub.s32 0, %v52
    %v54 = vrot.slane %v38, %v53
    %v55 = vlaneseq
    %v56 = vshrl.u32 %v55, 7
    %v57 = vsub.s32 0, %v56
    %v58 = vrot.slane %v42, %v57
    %v59 = vlaneseq
    %v60 = vshrl.u32 %v59, 7
    %v61 = vsub.s32 1, %v60
    %v62 = vrot.slane %v26, %v61
    %v63 = vlaneseq
    %v64 = vshrl.u32 %v63, 7
    %v65 = vsub.s32 3, %v64
    %v66 = vrot.slane %v26, %v65
    %v67 = vlaneseq
    %v68 = vshrl.u32 %v67, 7
    %v69 = vsub.s32 5, %v68
    %v70 = vrot.slane %v26, %v69
    %v71 = vlaneseq
    %v72 = vshrl.u32 %v71, 7
    %v73 = vsub.s32 7, %v72
    %v74 = vrot.slane %v26, %v73
    %v75 = vlaneseq
    %v76 = vshrl.u32 %v75, 7
    %v77 = vsub.s32 1, %v76
    %v78 = vrot.slane %v62, %v77
    %v79 = vlaneseq
    %v80 = vshrl.u32 %v79, 7
    %v81 = vsub.s32 1, %v80
    %v82 = vrot.slane %v66, %v81
    %v83 = vlaneseq
    %v84 = vshrl.u32 %v83, 7
    %v85 = vsub.s32 1, %v84
    %v86 = vrot.slane %v70, %v85
    %v87 = vlaneseq
    %v88 = vshrl.u32 %v87, 7
    %v89 = vsub.s32 1, %v88
    %v90 = vrot.slane %v74, %v89
    %v91 = vadd.s32 %v46, 4294967295
    %v92 = vadd.s32 %v50, 4294967295
    %v93 = vadd.s32 %v54, 4294967295
    %v94 = vadd.s32 %v58, 4294967295
    %vm95 = vcmp.ge.s32.totalorder %v91, 0
    %vm96 = vcmp.ge.s32.totalorder %v92, 0
    %vm97 = vcmp.ge.s32.totalorder %v93, 0
    %vm98 = vcmp.ge.s32.totalorder %v94, 0
    %vm99 = vcmp.lt.s32.totalorder %v91, 16
    %vm100 = vcmp.lt.s32.totalorder %v92, 16
    %vm101 = vcmp.lt.s32.totalorder %v93, 16
    %vm102 = vcmp.lt.s32.totalorder %v94, 16
    %vm103 = vmand %vm95, %vm99
    %vm104 = vmand %vm96, %vm100
    %vm105 = vmand %vm97, %vm101
    %vm106 = vmand %vm98, %vm102
    %v107 = vadd.s32 %v78, 4294967295
    %v108 = vadd.s32 %v82, 4294967295
    %v109 = vadd.s32 %v86, 4294967295
    %v110 = vadd.s32 %v90, 4294967295
    %vm111 = vcmp.ge.s32.totalorder %v107, 0
    %vm112 = vcmp.ge.s32.totalorder %v108, 0
    %vm113 = vcmp.ge.s32.totalorder %v109, 0
    %vm114 = vcmp.ge.s32.totalorder %v110, 0
    %vm115 = vmand %vm103, %vm111
    %vm116 = vmand %vm104, %vm112
    %vm117 = vmand %vm105, %vm113
    %vm118 = vmand %vm106, %vm114
    %vm119 = vcmp.lt.s32.totalorder %v107, 16
    %vm120 = vcmp.lt.s32.totalorder %v108, 16
    %vm121 = vcmp.lt.s32.totalorder %v109, 16
    %vm122 = vcmp.lt.s32.totalorder %v110, 16
    %vm123 = vmand %vm115, %vm119
    %vm124 = vmand %vm116, %vm120
    %vm125 = vmand %vm117, %vm121
    %vm126 = vmand %vm118, %vm122
    %vm127 = vcmp.ge.s32.totalorder %v78, 0
    %vm128 = vcmp.ge.s32.totalorder %v82, 0
    %vm129 = vcmp.ge.s32.totalorder %v86, 0
    %vm130 = vcmp.ge.s32.totalorder %v90, 0
    %vm131 = vmand %vm103, %vm127
    %vm132 = vmand %vm104, %vm128
    %vm133 = vmand %vm105, %vm129
    %vm134 = vmand %vm106, %vm130
    %vm135 = vcmp.lt.s32.totalorder %v78, 16
    %vm136 = vcmp.lt.s32.totalorder %v82, 16
    %vm137 = vcmp.lt.s32.totalorder %v86, 16
    %vm138 = vcmp.lt.s32.totalorder %v90, 16
    %vm139 = vmand %vm131, %vm135
    %vm140 = vmand %vm132, %vm136
    %vm141 = vmand %vm133, %vm137
    %vm142 = vmand %vm134, %vm138
    %v143 = vadd.s32 %v78, 1
    %v144 = vadd.s32 %v82, 1
    %v145 = vadd.s32 %v86, 1
    %v146 = vadd.s32 %v90, 1
    %vm147 = vcmp.ge.s32.totalorder %v143, 0
    %vm148 = vcmp.ge.s32.totalorder %v144, 0
    %vm149 = vcmp.ge.s32.totalorder %v145, 0
    %vm150 = vcmp.ge.s32.totalorder %v146, 0
    %vm151 = vmand %vm103, %vm147
    %vm152 = vmand %vm104, %vm148
    %vm153 = vmand %vm105, %vm149
    %vm154 = vmand %vm106, %vm150
    %vm155 = vcmp.lt.s32.totalorder %v143, 16
    %vm156 = vcmp.lt.s32.totalorder %v144, 16
    %vm157 = vcmp.lt.s32.totalorder %v145, 16
    %vm158 = vcmp.lt.s32.totalorder %v146, 16
    %vm159 = vmand %vm151, %vm155
    %vm160 = vmand %vm152, %vm156
    %vm161 = vmand %vm153, %vm157
    %vm162 = vmand %vm154, %vm158
    %vm163 = vcmp.ge.s32.totalorder %v46, 0
    %vm164 = vcmp.ge.s32.totalorder %v50, 0
    %vm165 = vcmp.ge.s32.totalorder %v54, 0
    %vm166 = vcmp.ge.s32.totalorder %v58, 0
    %vm167 = vcmp.lt.s32.totalorder %v46, 16
    %vm168 = vcmp.lt.s32.totalorder %v50, 16
    %vm169 = vcmp.lt.s32.totalorder %v54, 16
    %vm170 = vcmp.lt.s32.totalorder %v58, 16
    %vm171 = vmand %vm163, %vm167
    %vm172 = vmand %vm164, %vm168
    %vm173 = vmand %vm165, %vm169
    %vm174 = vmand %vm166, %vm170
    %vm175 = vmand %vm171, %vm111
    %vm176 = vmand %vm172, %vm112
    %vm177 = vmand %vm173, %vm113
    %vm178 = vmand %vm174, %vm114
    %vm179 = vmand %vm175, %vm119
    %vm180 = vmand %vm176, %vm120
    %vm181 = vmand %vm177, %vm121
    %vm182 = vmand %vm178, %vm122
    %vm183 = vmand %vm171, %vm147
    %vm184 = vmand %vm172, %vm148
    %vm185 = vmand %vm173, %vm149
    %vm186 = vmand %vm174, %vm150
    %vm187 = vmand %vm183, %vm155
    %vm188 = vmand %vm184, %vm156
    %vm189 = vmand %vm185, %vm157
    %vm190 = vmand %vm186, %vm158
    %v191 = vadd.s32 %v46, 1
    %v192 = vadd.s32 %v50, 1
    %v193 = vadd.s32 %v54, 1
    %v194 = vadd.s32 %v58, 1
    %vm195 = vcmp.ge.s32.totalorder %v191, 0
    %vm196 = vcmp.ge.s32.totalorder %v192, 0
    %vm197 = vcmp.ge.s32.totalorder %v193, 0
    %vm198 = vcmp.ge.s32.totalorder %v194, 0
    %vm199 = vcmp.lt.s32.totalorder %v191, 16
    %vm200 = vcmp.lt.s32.totalorder %v192, 16
    %vm201 = vcmp.lt.s32.totalorder %v193, 16
    %vm202 = vcmp.lt.s32.totalorder %v194, 16
    %vm203 = vmand %vm195, %vm199
    %vm204 = vmand %vm196, %vm200
    %vm205 = vmand %vm197, %vm201
    %vm206 = vmand %vm198, %vm202
    %vm207 = vmand %vm203, %vm111
    %vm208 = vmand %vm204, %vm112
    %vm209 = vmand %vm205, %vm113
    %vm210 = vmand %vm206, %vm114
    %vm211 = vmand %vm207, %vm119
    %vm212 = vmand %vm208, %vm120
    %vm213 = vmand %vm209, %vm121
    %vm214 = vmand %vm210, %vm122
    %vm215 = vmand %vm203, %vm127
    %vm216 = vmand %vm204, %vm128
    %vm217 = vmand %vm205, %vm129
    %vm218 = vmand %vm206, %vm130
    %vm219 = vmand %vm215, %vm135
    %vm220 = vmand %vm216, %vm136
    %vm221 = vmand %vm217, %vm137
    %vm222 = vmand %vm218, %vm138
    %vm223 = vmand %vm203, %vm147
    %vm224 = vmand %vm204, %vm148
    %vm225 = vmand %vm205, %vm149
    %vm226 = vmand %vm206, %vm150
    %vm227 = vmand %vm223, %vm155
    %vm228 = vmand %vm224, %vm156
    %vm229 = vmand %vm225, %vm157
    %vm230 = vmand %vm226, %vm158
    %v233 = vcombine.high %v24, %v24
    %v234 = vcombine.high %v25, %v25
    %237 = vrot.lane.b32.xlu0 %v24, 17
    %v238 = vpop.permute.xlu0 %237
    %239 = vrot.lane.b32.xlu0 %v233, 17
    %v240 = vpop.permute.xlu0 %239
    %241 = vrot.lane.b32.xlu0 %v25, 17
    %v242 = vpop.permute.xlu0 %241
    %243 = vrot.lane.b32.xlu0 %v234, 17
    %v244 = vpop.permute.xlu0 %243
    %v245 = vlaneseq
    %v246 = vand.u32 %v245, 127
    %vm247 = vcmp.lt.s32.totalorder %v246, 17
    %v248 = vsel %vm247, %v242, %v244
    %v249 = vsel %vm247, %v240, %v242
    %v250 = vsel %vm247, %v238, %v240
    %v251 = vsel %vm247, %v244, %v238
    %v252 = vsel %vm123, %v251, 0.0
    %v253 = vsel %vm124, %v250, 0.0
    %v254 = vsel %vm125, %v249, 0.0
    %v255 = vsel %vm126, %v248, 0.0
    %v256 = vld [vmem:[%s1] sm:$0xf]
    %257 = vrot.lane.b32.xlu0 %v24, 16
    %v258 = vpop.permute.xlu0 %257
    %259 = vrot.lane.b32.xlu0 %v233, 16
    %v260 = vpop.permute.xlu0 %259
    %261 = vrot.lane.b32.xlu0 %v25, 16
    %v262 = vpop.permute.xlu0 %261
    %263 = vrot.lane.b32.xlu0 %v234, 16
    %v264 = vpop.permute.xlu0 %263
    %vm265 = vcmp.lt.s32.totalorder %v246, 16
    %v266 = vsel %vm265, %v262, %v264
    %v267 = vsel %vm265, %v260, %v262
    %v268 = vsel %vm265, %v258, %v260
    %v269 = vsel %vm265, %v264, %v258
    %v270 = vsel %vm139, %v269, 0.0
    %v271 = vsel %vm140, %v268, 0.0
    %v272 = vsel %vm141, %v267, 0.0
    %v273 = vsel %vm142, %v266, 0.0
    %s274 = scalar_lea.vmem %s1, 4
    %v275 = vld [vmem:[%s274] sm:$0xf]
    %vm276 = vcmask 31744
    %v278 = vsel %vm276, %v275, 0
    %vm280 = vcmask 1043456
    %v282 = vsel %vm280, %v270, 0
    %v285 = vsel %vm280, %v271, 0
    %v288 = vsel %vm280, %v272, 0
    %v291 = vsel %vm280, %v273, 0
    %293 = vmatprep.subr.mxu0 %v285
    %294 = vmatpush1.msra.mxu0 %v282
    %295 = vmatprep.subr.mxu0 0.0
    %296 = vmatpush1.msra.mxu0 0.0
    %297 = vmatprep.subr.mxu0 0.0
    %298 = vmatpush1.msra.mxu0 0.0
    %299 = vmatprep.subr.mxu0 0.0
    %300 = vmatpush1.msra.mxu0 0.0
    %301 = vmatprep.subr.mxu0 0.0
    %302 = vmatpush1.msra.mxu0 0.0
    %303 = vmatprep.subr.mxu0 0.0
    %304 = vmatpush1.msra.mxu0 0.0
    %305 = vmatprep.subr.mxu0 0.0
    %306 = vmatpush1.msra.mxu0 0.0
    %307 = vmatprep.subr.mxu0 0.0
    %308 = vmatpush1.msra.mxu0 0.0
    %309 = vmatprep.subr.mxu0 0.0
    %310 = vmatpush1.msra.mxu0 0.0
    %311 = vmatprep.subr.mxu0 0.0
    %312 = vmatpush1.msra.mxu0 0.0
    %313 = vmatprep.subr.mxu0 0.0
    %314 = vmatpush1.msra.mxu0 0.0
    %315 = vmatprep.subr.mxu0 0.0
    %316 = vmatpush1.msra.mxu0 0.0
    %317 = vmatprep.subr.mxu0 0.0
    %318 = vmatpush1.msra.mxu0 0.0
    %319 = vmatprep.subr.mxu0 0.0
    %320 = vmatpush1.msra.mxu0 0.0
    %321 = vmatprep.subr.mxu0 0.0
    %322 = vmatpush1.msra.mxu0 0.0
    %323 = vmatprep.subr.mxu0 0.0
    %324 = vmatpush1.msra.mxu0 0.0
    %325 = vmatprep.subr.mxu0 0.0
    %326 = vmatpush1.msra.mxu0 0.0
    %327 = vmatprep.subr.mxu0 0.0
    %328 = vmatpush1.msra.mxu0 0.0
    %329 = vmatprep.subr.mxu0 0.0
    %330 = vmatpush1.msra.mxu0 0.0
    %331 = vmatprep.subr.mxu0 0.0
    %332 = vmatpush1.msra.mxu0 0.0
    %333 = vmatprep.subr.mxu0 0.0
    %334 = vmatpush1.msra.mxu0 0.0
    %335 = vmatprep.subr.mxu0 0.0
    %336 = vmatpush1.msra.mxu0 0.0
    %337 = vmatprep.subr.mxu0 0.0
    %338 = vmatpush1.msra.mxu0 0.0
    %339 = vmatprep.subr.mxu0 0.0
    %340 = vmatpush1.msra.mxu0 0.0
    %341 = vmatprep.subr.mxu0 0.0
    %342 = vmatpush1.msra.mxu0 0.0
    %343 = vmatprep.subr.mxu0 0.0
    %344 = vmatpush1.msra.mxu0 0.0
    %345 = vmatprep.subr.mxu0 0.0
    %346 = vmatpush1.msra.mxu0 0.0
    %347 = vmatprep.subr.mxu0 0.0
    %348 = vmatpush1.msra.mxu0 0.0
    %349 = vmatprep.subr.mxu0 0.0
    %350 = vmatpush1.msra.mxu0 0.0
    %351 = vmatprep.subr.mxu0 0.0
    %352 = vmatpush1.msra.mxu0 0.0
    %353 = vmatprep.subr.mxu0 0.0
    %354 = vmatpush1.msra.mxu0 0.0
    %355 = vmatprep.subr.mxu0 0.0
    %356 = vmatpush1.msra.mxu0 0.0
    %357 = vmatprep.mubr.f32.mxu0 0.0
    %358 = vmatmul.mubr.f32.gmra.mrb[0].mxu0 %v278
    %v359 = vpop.f32.mrb[0].mxu0
    %v360 = vadd.f32 0.0, %v359
    %v361 = vpop.f32.mrb[0].mxu0
    %v362 = vadd.f32 0.0, %v361
    %363 = vdwg.mxu0
    %364 = vmatprep.subr.mxu0 %v291
    %365 = vmatpush1.msra.mxu0 %v288
    %366 = vmatprep.subr.mxu0 0.0
    %367 = vmatpush1.msra.mxu0 0.0
    %368 = vmatprep.subr.mxu0 0.0
    %369 = vmatpush1.msra.mxu0 0.0
    %370 = vmatprep.subr.mxu0 0.0
    %371 = vmatpush1.msra.mxu0 0.0
    %372 = vmatprep.subr.mxu0 0.0
    %373 = vmatpush1.msra.mxu0 0.0
    %374 = vmatprep.subr.mxu0 0.0
    %375 = vmatpush1.msra.mxu0 0.0
    %376 = vmatprep.subr.mxu0 0.0
    %377 = vmatpush1.msra.mxu0 0.0
    %378 = vmatprep.subr.mxu0 0.0
    %379 = vmatpush1.msra.mxu0 0.0
    %380 = vmatprep.subr.mxu0 0.0
    %381 = vmatpush1.msra.mxu0 0.0
    %382 = vmatprep.subr.mxu0 0.0
    %383 = vmatpush1.msra.mxu0 0.0
    %384 = vmatprep.subr.mxu0 0.0
    %385 = vmatpush1.msra.mxu0 0.0
    %386 = vmatprep.subr.mxu0 0.0
    %387 = vmatpush1.msra.mxu0 0.0
    %388 = vmatprep.subr.mxu0 0.0
    %389 = vmatpush1.msra.mxu0 0.0
    %390 = vmatprep.subr.mxu0 0.0
    %391 = vmatpush1.msra.mxu0 0.0
    %392 = vmatprep.subr.mxu0 0.0
    %393 = vmatpush1.msra.mxu0 0.0
    %394 = vmatprep.subr.mxu0 0.0
    %395 = vmatpush1.msra.mxu0 0.0
    %396 = vmatprep.subr.mxu0 0.0
    %397 = vmatpush1.msra.mxu0 0.0
    %398 = vmatprep.subr.mxu0 0.0
    %399 = vmatpush1.msra.mxu0 0.0
    %400 = vmatprep.subr.mxu0 0.0
    %401 = vmatpush1.msra.mxu0 0.0
    %402 = vmatprep.subr.mxu0 0.0
    %403 = vmatpush1.msra.mxu0 0.0
    %404 = vmatprep.subr.mxu0 0.0
    %405 = vmatpush1.msra.mxu0 0.0
    %406 = vmatprep.subr.mxu0 0.0
    %407 = vmatpush1.msra.mxu0 0.0
    %408 = vmatprep.subr.mxu0 0.0
    %409 = vmatpush1.msra.mxu0 0.0
    %410 = vmatprep.subr.mxu0 0.0
    %411 = vmatpush1.msra.mxu0 0.0
    %412 = vmatprep.subr.mxu0 0.0
    %413 = vmatpush1.msra.mxu0 0.0
    %414 = vmatprep.subr.mxu0 0.0
    %415 = vmatpush1.msra.mxu0 0.0
    %416 = vmatprep.subr.mxu0 0.0
    %417 = vmatpush1.msra.mxu0 0.0
    %418 = vmatprep.subr.mxu0 0.0
    %419 = vmatpush1.msra.mxu0 0.0
    %420 = vmatprep.subr.mxu0 0.0
    %421 = vmatpush1.msra.mxu0 0.0
    %422 = vmatprep.subr.mxu0 0.0
    %423 = vmatpush1.msra.mxu0 0.0
    %424 = vmatprep.subr.mxu0 0.0
    %425 = vmatpush1.msra.mxu0 0.0
    %426 = vmatprep.subr.mxu0 0.0
    %427 = vmatpush1.msra.mxu0 0.0
    %428 = vmatprep.mubr.f32.mxu0 0.0
    %429 = vmatmul.mubr.f32.gmra.mrb[0].mxu0 %v278
    %v430 = vpop.f32.mrb[0].mxu0
    %v431 = vadd.f32 0.0, %v430
    %v432 = vpop.f32.mrb[0].mxu0
    %v433 = vadd.f32 0.0, %v432
    %434 = vdwg.mxu0
    %v436 = vsel %vm276, %v256, 0
    %v439 = vsel %vm280, %v252, 0
    %v442 = vsel %vm280, %v253, 0
    %v445 = vsel %vm280, %v254, 0
    %v448 = vsel %vm280, %v255, 0
    %450 = vmatprep.subr.mxu0 %v442
    %451 = vmatpush1.msra.mxu0 %v439
    %452 = vmatprep.subr.mxu0 0.0
    %453 = vmatpush1.msra.mxu0 0.0
    %454 = vmatprep.subr.mxu0 0.0
    %455 = vmatpush1.msra.mxu0 0.0
    %456 = vmatprep.subr.mxu0 0.0
    %457 = vmatpush1.msra.mxu0 0.0
    %458 = vmatprep.subr.mxu0 0.0
    %459 = vmatpush1.msra.mxu0 0.0
    %460 = vmatprep.subr.mxu0 0.0
    %461 = vmatpush1.msra.mxu0 0.0
    %462 = vmatprep.subr.mxu0 0.0
    %463 = vmatpush1.msra.mxu0 0.0
    %464 = vmatprep.subr.mxu0 0.0
    %465 = vmatpush1.msra.mxu0 0.0
    %466 = vmatprep.subr.mxu0 0.0
    %467 = vmatpush1.msra.mxu0 0.0
    %468 = vmatprep.subr.mxu0 0.0
    %469 = vmatpush1.msra.mxu0 0.0
    %470 = vmatprep.subr.mxu0 0.0
    %471 = vmatpush1.msra.mxu0 0.0
    %472 = vmatprep.subr.mxu0 0.0
    %473 = vmatpush1.msra.mxu0 0.0
    %474 = vmatprep.subr.mxu0 0.0
    %475 = vmatpush1.msra.mxu0 0.0
    %476 = vmatprep.subr.mxu0 0.0
    %477 = vmatpush1.msra.mxu0 0.0
    %478 = vmatprep.subr.mxu0 0.0
    %479 = vmatpush1.msra.mxu0 0.0
    %480 = vmatprep.subr.mxu0 0.0
    %481 = vmatpush1.msra.mxu0 0.0
    %482 = vmatprep.subr.mxu0 0.0
    %483 = vmatpush1.msra.mxu0 0.0
    %484 = vmatprep.subr.mxu0 0.0
    %485 = vmatpush1.msra.mxu0 0.0
    %486 = vmatprep.subr.mxu0 0.0
    %487 = vmatpush1.msra.mxu0 0.0
    %488 = vmatprep.subr.mxu0 0.0
    %489 = vmatpush1.msra.mxu0 0.0
    %490 = vmatprep.subr.mxu0 0.0
    %491 = vmatpush1.msra.mxu0 0.0
    %492 = vmatprep.subr.mxu0 0.0
    %493 = vmatpush1.msra.mxu0 0.0
    %494 = vmatprep.subr.mxu0 0.0
    %495 = vmatpush1.msra.mxu0 0.0
    %496 = vmatprep.subr.mxu0 0.0
    %497 = vmatpush1.msra.mxu0 0.0
    %498 = vmatprep.subr.mxu0 0.0
    %499 = vmatpush1.msra.mxu0 0.0
    %500 = vmatprep.subr.mxu0 0.0
    %501 = vmatpush1.msra.mxu0 0.0
    %502 = vmatprep.subr.mxu0 0.0
    %503 = vmatpush1.msra.mxu0 0.0
    %504 = vmatprep.subr.mxu0 0.0
    %505 = vmatpush1.msra.mxu0 0.0
    %506 = vmatprep.subr.mxu0 0.0
    %507 = vmatpush1.msra.mxu0 0.0
    %508 = vmatprep.subr.mxu0 0.0
    %509 = vmatpush1.msra.mxu0 0.0
    %510 = vmatprep.subr.mxu0 0.0
    %511 = vmatpush1.msra.mxu0 0.0
    %512 = vmatprep.subr.mxu0 0.0
    %513 = vmatpush1.msra.mxu0 0.0
    %514 = vmatprep.mubr.f32.mxu0 0.0
    %515 = vmatmul.mubr.f32.gmra.mrb[0].mxu0 %v436
    %v516 = vpop.f32.mrb[0].mxu0
    %v517 = vadd.f32 %v360, %v516
    %v518 = vpop.f32.mrb[0].mxu0
    %v519 = vadd.f32 %v362, %v518
    %520 = vdwg.mxu0
    %521 = vmatprep.subr.mxu0 %v448
    %522 = vmatpush1.msra.mxu0 %v445
    %523 = vmatprep.subr.mxu0 0.0
    %524 = vmatpush1.msra.mxu0 0.0
    %525 = vmatprep.subr.mxu0 0.0
    %526 = vmatpush1.msra.mxu0 0.0
    %527 = vmatprep.subr.mxu0 0.0
    %528 = vmatpush1.msra.mxu0 0.0
    %529 = vmatprep.subr.mxu0 0.0
    %530 = vmatpush1.msra.mxu0 0.0
    %531 = vmatprep.subr.mxu0 0.0
    %532 = vmatpush1.msra.mxu0 0.0
    %533 = vmatprep.subr.mxu0 0.0
    %534 = vmatpush1.msra.mxu0 0.0
    %535 = vmatprep.subr.mxu0 0.0
    %536 = vmatpush1.msra.mxu0 0.0
    %537 = vmatprep.subr.mxu0 0.0
    %538 = vmatpush1.msra.mxu0 0.0
    %539 = vmatprep.subr.mxu0 0.0
    %540 = vmatpush1.msra.mxu0 0.0
    %541 = vmatprep.subr.mxu0 0.0
    %542 = vmatpush1.msra.mxu0 0.0
    %543 = vmatprep.subr.mxu0 0.0
    %544 = vmatpush1.msra.mxu0 0.0
    %545 = vmatprep.subr.mxu0 0.0
    %546 = vmatpush1.msra.mxu0 0.0
    %547 = vmatprep.subr.mxu0 0.0
    %548 = vmatpush1.msra.mxu0 0.0
    %549 = vmatprep.subr.mxu0 0.0
    %550 = vmatpush1.msra.mxu0 0.0
    %551 = vmatprep.subr.mxu0 0.0
    %552 = vmatpush1.msra.mxu0 0.0
    %553 = vmatprep.subr.mxu0 0.0
    %554 = vmatpush1.msra.mxu0 0.0
    %555 = vmatprep.subr.mxu0 0.0
    %556 = vmatpush1.msra.mxu0 0.0
    %557 = vmatprep.subr.mxu0 0.0
    %558 = vmatpush1.msra.mxu0 0.0
    %559 = vmatprep.subr.mxu0 0.0
    %560 = vmatpush1.msra.mxu0 0.0
    %561 = vmatprep.subr.mxu0 0.0
    %562 = vmatpush1.msra.mxu0 0.0
    %563 = vmatprep.subr.mxu0 0.0
    %564 = vmatpush1.msra.mxu0 0.0
    %565 = vmatprep.subr.mxu0 0.0
    %566 = vmatpush1.msra.mxu0 0.0
    %567 = vmatprep.subr.mxu0 0.0
    %568 = vmatpush1.msra.mxu0 0.0
    %569 = vmatprep.subr.mxu0 0.0
    %570 = vmatpush1.msra.mxu0 0.0
    %571 = vmatprep.subr.mxu0 0.0
    %572 = vmatpush1.msra.mxu0 0.0
    %573 = vmatprep.subr.mxu0 0.0
    %574 = vmatpush1.msra.mxu0 0.0
    %575 = vmatprep.subr.mxu0 0.0
    %576 = vmatpush1.msra.mxu0 0.0
    %577 = vmatprep.subr.mxu0 0.0
    %578 = vmatpush1.msra.mxu0 0.0
    %579 = vmatprep.subr.mxu0 0.0
    %580 = vmatpush1.msra.mxu0 0.0
    %581 = vmatprep.subr.mxu0 0.0
    %582 = vmatpush1.msra.mxu0 0.0
    %583 = vmatprep.subr.mxu0 0.0
    %584 = vmatpush1.msra.mxu0 0.0
    %585 = vmatprep.mubr.f32.mxu0 0.0
    %586 = vmatmul.mubr.f32.gmra.mrb[0].mxu0 %v436
    %v587 = vpop.f32.mrb[0].mxu0
    %v588 = vadd.f32 %v431, %v587
    %v589 = vpop.f32.mrb[0].mxu0
    %v590 = vadd.f32 %v433, %v589
    %591 = vdwg.mxu0
    %592 = vrot.lane.b32.xlu0 %v24, 15
    %v593 = vpop.permute.xlu0 %592
    %594 = vrot.lane.b32.xlu0 %v233, 15
    %v595 = vpop.permute.xlu0 %594
    %596 = vrot.lane.b32.xlu0 %v25, 15
    %v597 = vpop.permute.xlu0 %596
    %598 = vrot.lane.b32.xlu0 %v234, 15
    %v599 = vpop.permute.xlu0 %598
    %vm600 = vcmp.lt.s32.totalorder %v246, 15
    %v601 = vsel %vm600, %v597, %v599
    %v602 = vsel %vm600, %v595, %v597
    %v603 = vsel %vm600, %v593, %v595
    %v604 = vsel %vm600, %v599, %v593
    %v605 = vsel %vm159, %v604, 0.0
    %v606 = vsel %vm160, %v603, 0.0
    %v607 = vsel %vm161, %v602, 0.0
    %v608 = vsel %vm162, %v601, 0.0
    %s609 = scalar_lea.vmem %s1, 8
    %v610 = vld [vmem:[%s609] sm:$0xf]
    %v612 = vsel %vm276, %v610, 0
    %v615 = vsel %vm280, %v605, 0
    %v618 = vsel %vm280, %v606, 0
    %v621 = vsel %vm280, %v607, 0
    %v624 = vsel %vm280, %v608, 0
    %626 = vmatprep.subr.mxu0 %v618
    %627 = vmatpush1.msra.mxu0 %v615
    %628 = vmatprep.subr.mxu0 0.0
    %629 = vmatpush1.msra.mxu0 0.0
    %630 = vmatprep.subr.mxu0 0.0
    %631 = vmatpush1.msra.mxu0 0.0
    %632 = vmatprep.subr.mxu0 0.0
    %633 = vmatpush1.msra.mxu0 0.0
    %634 = vmatprep.subr.mxu0 0.0
    %635 = vmatpush1.msra.mxu0 0.0
    %636 = vmatprep.subr.mxu0 0.0
    %637 = vmatpush1.msra.mxu0 0.0
    %638 = vmatprep.subr.mxu0 0.0
    %639 = vmatpush1.msra.mxu0 0.0
    %640 = vmatprep.subr.mxu0 0.0
    %641 = vmatpush1.msra.mxu0 0.0
    %642 = vmatprep.subr.mxu0 0.0
    %643 = vmatpush1.msra.mxu0 0.0
    %644 = vmatprep.subr.mxu0 0.0
    %645 = vmatpush1.msra.mxu0 0.0
    %646 = vmatprep.subr.mxu0 0.0
    %647 = vmatpush1.msra.mxu0 0.0
    %648 = vmatprep.subr.mxu0 0.0
    %649 = vmatpush1.msra.mxu0 0.0
    %650 = vmatprep.subr.mxu0 0.0
    %651 = vmatpush1.msra.mxu0 0.0
    %652 = vmatprep.subr.mxu0 0.0
    %653 = vmatpush1.msra.mxu0 0.0
    %654 = vmatprep.subr.mxu0 0.0
    %655 = vmatpush1.msra.mxu0 0.0
    %656 = vmatprep.subr.mxu0 0.0
    %657 = vmatpush1.msra.mxu0 0.0
    %658 = vmatprep.subr.mxu0 0.0
    %659 = vmatpush1.msra.mxu0 0.0
    %660 = vmatprep.subr.mxu0 0.0
    %661 = vmatpush1.msra.mxu0 0.0
    %662 = vmatprep.subr.mxu0 0.0
    %663 = vmatpush1.msra.mxu0 0.0
    %664 = vmatprep.subr.mxu0 0.0
    %665 = vmatpush1.msra.mxu0 0.0
    %666 = vmatprep.subr.mxu0 0.0
    %667 = vmatpush1.msra.mxu0 0.0
    %668 = vmatprep.subr.mxu0 0.0
    %669 = vmatpush1.msra.mxu0 0.0
    %670 = vmatprep.subr.mxu0 0.0
    %671 = vmatpush1.msra.mxu0 0.0
    %672 = vmatprep.subr.mxu0 0.0
    %673 = vmatpush1.msra.mxu0 0.0
    %674 = vmatprep.subr.mxu0 0.0
    %675 = vmatpush1.msra.mxu0 0.0
    %676 = vmatprep.subr.mxu0 0.0
    %677 = vmatpush1.msra.mxu0 0.0
    %678 = vmatprep.subr.mxu0 0.0
    %679 = vmatpush1.msra.mxu0 0.0
    %680 = vmatprep.subr.mxu0 0.0
    %681 = vmatpush1.msra.mxu0 0.0
    %682 = vmatprep.subr.mxu0 0.0
    %683 = vmatpush1.msra.mxu0 0.0
    %684 = vmatprep.subr.mxu0 0.0
    %685 = vmatpush1.msra.mxu0 0.0
    %686 = vmatprep.subr.mxu0 0.0
    %687 = vmatpush1.msra.mxu0 0.0
    %688 = vmatprep.subr.mxu0 0.0
    %689 = vmatpush1.msra.mxu0 0.0
    %690 = vmatprep.mubr.f32.mxu0 0.0
    %691 = vmatmul.mubr.f32.gmra.mrb[0].mxu0 %v612
    %v692 = vpop.f32.mrb[0].mxu0
    %v693 = vadd.f32 0.0, %v692
    %v694 = vpop.f32.mrb[0].mxu0
    %v695 = vadd.f32 0.0, %v694
    %696 = vdwg.mxu0
    %697 = vmatprep.subr.mxu0 %v624
    %698 = vmatpush1.msra.mxu0 %v621
    %699 = vmatprep.subr.mxu0 0.0
    %700 = vmatpush1.msra.mxu0 0.0
    %701 = vmatprep.subr.mxu0 0.0
    %702 = vmatpush1.msra.mxu0 0.0
    %703 = vmatprep.subr.mxu0 0.0
    %704 = vmatpush1.msra.mxu0 0.0
    %705 = vmatprep.subr.mxu0 0.0
    %706 = vmatpush1.msra.mxu0 0.0
    %707 = vmatprep.subr.mxu0 0.0
    %708 = vmatpush1.msra.mxu0 0.0
    %709 = vmatprep.subr.mxu0 0.0
    %710 = vmatpush1.msra.mxu0 0.0
    %711 = vmatprep.subr.mxu0 0.0
    %712 = vmatpush1.msra.mxu0 0.0
    %713 = vmatprep.subr.mxu0 0.0
    %714 = vmatpush1.msra.mxu0 0.0
    %715 = vmatprep.subr.mxu0 0.0
    %716 = vmatpush1.msra.mxu0 0.0
    %717 = vmatprep.subr.mxu0 0.0
    %718 = vmatpush1.msra.mxu0 0.0
    %719 = vmatprep.subr.mxu0 0.0
    %720 = vmatpush1.msra.mxu0 0.0
    %721 = vmatprep.subr.mxu0 0.0
    %722 = vmatpush1.msra.mxu0 0.0
    %723 = vmatprep.subr.mxu0 0.0
    %724 = vmatpush1.msra.mxu0 0.0
    %725 = vmatprep.subr.mxu0 0.0
    %726 = vmatpush1.msra.mxu0 0.0
    %727 = vmatprep.subr.mxu0 0.0
    %728 = vmatpush1.msra.mxu0 0.0
    %729 = vmatprep.subr.mxu0 0.0
    %730 = vmatpush1.msra.mxu0 0.0
    %731 = vmatprep.subr.mxu0 0.0
    %732 = vmatpush1.msra.mxu0 0.0
    %733 = vmatprep.subr.mxu0 0.0
    %734 = vmatpush1.msra.mxu0 0.0
    %735 = vmatprep.subr.mxu0 0.0
    %736 = vmatpush1.msra.mxu0 0.0
    %737 = vmatprep.subr.mxu0 0.0
    %738 = vmatpush1.msra.mxu0 0.0
    %739 = vmatprep.subr.mxu0 0.0
    %740 = vmatpush1.msra.mxu0 0.0
    %741 = vmatprep.subr.mxu0 0.0
    %742 = vmatpush1.msra.mxu0 0.0
    %743 = vmatprep.subr.mxu0 0.0
    %744 = vmatpush1.msra.mxu0 0.0
    %745 = vmatprep.subr.mxu0 0.0
    %746 = vmatpush1.msra.mxu0 0.0
    %747 = vmatprep.subr.mxu0 0.0
    %748 = vmatpush1.msra.mxu0 0.0
    %749 = vmatprep.subr.mxu0 0.0
    %750 = vmatpush1.msra.mxu0 0.0
    %751 = vmatprep.subr.mxu0 0.0
    %752 = vmatpush1.msra.mxu0 0.0
    %753 = vmatprep.subr.mxu0 0.0
    %754 = vmatpush1.msra.mxu0 0.0
    %755 = vmatprep.subr.mxu0 0.0
    %756 = vmatpush1.msra.mxu0 0.0
    %757 = vmatprep.subr.mxu0 0.0
    %758 = vmatpush1.msra.mxu0 0.0
    %759 = vmatprep.subr.mxu0 0.0
    %760 = vmatpush1.msra.mxu0 0.0
    %761 = vmatprep.mubr.f32.mxu0 0.0
    %762 = vmatmul.mubr.f32.gmra.mrb[0].mxu0 %v612
    %v763 = vpop.f32.mrb[0].mxu0
    %v764 = vadd.f32 0.0, %v763
    %v765 = vpop.f32.mrb[0].mxu0
    %v766 = vadd.f32 0.0, %v765
    %767 = vdwg.mxu0
    %v768 = vadd.f32 %v517, %v693
    %v769 = vadd.f32 %v519, %v695
    %v770 = vadd.f32 %v588, %v764
    %v771 = vadd.f32 %v590, %v766
    %772 = vrot.lane.b32.xlu0 %v24, 1
    %v773 = vpop.permute.xlu0 %772
    %774 = vrot.lane.b32.xlu0 %v233, 1
    %v775 = vpop.permute.xlu0 %774
    %776 = vrot.lane.b32.xlu0 %v25, 1
    %v777 = vpop.permute.xlu0 %776
    %778 = vrot.lane.b32.xlu0 %v234, 1
    %v779 = vpop.permute.xlu0 %778
    %vm780 = vcmp.lt.s32.totalorder %v246, 1
    %v781 = vsel %vm780, %v777, %v779
    %v782 = vsel %vm780, %v775, %v777
    %v783 = vsel %vm780, %v773, %v775
    %v784 = vsel %vm780, %v779, %v773
    %v785 = vsel %vm179, %v784, 0.0
    %v786 = vsel %vm180, %v783, 0.0
    %v787 = vsel %vm181, %v782, 0.0
    %v788 = vsel %vm182, %v781, 0.0
    %s789 = scalar_lea.vmem %s1, 12
    %v790 = vld [vmem:[%s789] sm:$0xf]
    %v792 = vsel %vm276, %v790, 0
    %v795 = vsel %vm280, %v785, 0
    %v798 = vsel %vm280, %v786, 0
    %v801 = vsel %vm280, %v787, 0
    %v804 = vsel %vm280, %v788, 0
    %806 = vmatprep.subr.mxu0 %v798
    %807 = vmatpush1.msra.mxu0 %v795
    %808 = vmatprep.subr.mxu0 0.0
    %809 = vmatpush1.msra.mxu0 0.0
    %810 = vmatprep.subr.mxu0 0.0
    %811 = vmatpush1.msra.mxu0 0.0
    %812 = vmatprep.subr.mxu0 0.0
    %813 = vmatpush1.msra.mxu0 0.0
    %814 = vmatprep.subr.mxu0 0.0
    %815 = vmatpush1.msra.mxu0 0.0
    %816 = vmatprep.subr.mxu0 0.0
    %817 = vmatpush1.msra.mxu0 0.0
    %818 = vmatprep.subr.mxu0 0.0
    %819 = vmatpush1.msra.mxu0 0.0
    %820 = vmatprep.subr.mxu0 0.0
    %821 = vmatpush1.msra.mxu0 0.0
    %822 = vmatprep.subr.mxu0 0.0
    %823 = vmatpush1.msra.mxu0 0.0
    %824 = vmatprep.subr.mxu0 0.0
    %825 = vmatpush1.msra.mxu0 0.0
    %826 = vmatprep.subr.mxu0 0.0
    %827 = vmatpush1.msra.mxu0 0.0
    %828 = vmatprep.subr.mxu0 0.0
    %829 = vmatpush1.msra.mxu0 0.0
    %830 = vmatprep.subr.mxu0 0.0
    %831 = vmatpush1.msra.mxu0 0.0
    %832 = vmatprep.subr.mxu0 0.0
    %833 = vmatpush1.msra.mxu0 0.0
    %834 = vmatprep.subr.mxu0 0.0
    %835 = vmatpush1.msra.mxu0 0.0
    %836 = vmatprep.subr.mxu0 0.0
    %837 = vmatpush1.msra.mxu0 0.0
    %838 = vmatprep.subr.mxu0 0.0
    %839 = vmatpush1.msra.mxu0 0.0
    %840 = vmatprep.subr.mxu0 0.0
    %841 = vmatpush1.msra.mxu0 0.0
    %842 = vmatprep.subr.mxu0 0.0
    %843 = vmatpush1.msra.mxu0 0.0
    %844 = vmatprep.subr.mxu0 0.0
    %845 = vmatpush1.msra.mxu0 0.0
    %846 = vmatprep.subr.mxu0 0.0
    %847 = vmatpush1.msra.mxu0 0.0
    %848 = vmatprep.subr.mxu0 0.0
    %849 = vmatpush1.msra.mxu0 0.0
    %850 = vmatprep.subr.mxu0 0.0
    %851 = vmatpush1.msra.mxu0 0.0
    %852 = vmatprep.subr.mxu0 0.0
    %853 = vmatpush1.msra.mxu0 0.0
    %854 = vmatprep.subr.mxu0 0.0
    %855 = vmatpush1.msra.mxu0 0.0
    %856 = vmatprep.subr.mxu0 0.0
    %857 = vmatpush1.msra.mxu0 0.0
    %858 = vmatprep.subr.mxu0 0.0
    %859 = vmatpush1.msra.mxu0 0.0
    %860 = vmatprep.subr.mxu0 0.0
    %861 = vmatpush1.msra.mxu0 0.0
    %862 = vmatprep.subr.mxu0 0.0
    %863 = vmatpush1.msra.mxu0 0.0
    %864 = vmatprep.subr.mxu0 0.0
    %865 = vmatpush1.msra.mxu0 0.0
    %866 = vmatprep.subr.mxu0 0.0
    %867 = vmatpush1.msra.mxu0 0.0
    %868 = vmatprep.subr.mxu0 0.0
    %869 = vmatpush1.msra.mxu0 0.0
    %870 = vmatprep.mubr.f32.mxu0 0.0
    %871 = vmatmul.mubr.f32.gmra.mrb[0].mxu0 %v792
    %v872 = vpop.f32.mrb[0].mxu0
    %v873 = vadd.f32 0.0, %v872
    %v874 = vpop.f32.mrb[0].mxu0
    %v875 = vadd.f32 0.0, %v874
    %876 = vdwg.mxu0
    %877 = vmatprep.subr.mxu0 %v804
    %878 = vmatpush1.msra.mxu0 %v801
    %879 = vmatprep.subr.mxu0 0.0
    %880 = vmatpush1.msra.mxu0 0.0
    %881 = vmatprep.subr.mxu0 0.0
    %882 = vmatpush1.msra.mxu0 0.0
    %883 = vmatprep.subr.mxu0 0.0
    %884 = vmatpush1.msra.mxu0 0.0
    %885 = vmatprep.subr.mxu0 0.0
    %886 = vmatpush1.msra.mxu0 0.0
    %887 = vmatprep.subr.mxu0 0.0
    %888 = vmatpush1.msra.mxu0 0.0
    %889 = vmatprep.subr.mxu0 0.0
    %890 = vmatpush1.msra.mxu0 0.0
    %891 = vmatprep.subr.mxu0 0.0
    %892 = vmatpush1.msra.mxu0 0.0
    %893 = vmatprep.subr.mxu0 0.0
    %894 = vmatpush1.msra.mxu0 0.0
    %895 = vmatprep.subr.mxu0 0.0
    %896 = vmatpush1.msra.mxu0 0.0
    %897 = vmatprep.subr.mxu0 0.0
    %898 = vmatpush1.msra.mxu0 0.0
    %899 = vmatprep.subr.mxu0 0.0
    %900 = vmatpush1.msra.mxu0 0.0
    %901 = vmatprep.subr.mxu0 0.0
    %902 = vmatpush1.msra.mxu0 0.0
    %903 = vmatprep.subr.mxu0 0.0
    %904 = vmatpush1.msra.mxu0 0.0
    %905 = vmatprep.subr.mxu0 0.0
    %906 = vmatpush1.msra.mxu0 0.0
    %907 = vmatprep.subr.mxu0 0.0
    %908 = vmatpush1.msra.mxu0 0.0
    %909 = vmatprep.subr.mxu0 0.0
    %910 = vmatpush1.msra.mxu0 0.0
    %911 = vmatprep.subr.mxu0 0.0
    %912 = vmatpush1.msra.mxu0 0.0
    %913 = vmatprep.subr.mxu0 0.0
    %914 = vmatpush1.msra.mxu0 0.0
    %915 = vmatprep.subr.mxu0 0.0
    %916 = vmatpush1.msra.mxu0 0.0
    %917 = vmatprep.subr.mxu0 0.0
    %918 = vmatpush1.msra.mxu0 0.0
    %919 = vmatprep.subr.mxu0 0.0
    %920 = vmatpush1.msra.mxu0 0.0
    %921 = vmatprep.subr.mxu0 0.0
    %922 = vmatpush1.msra.mxu0 0.0
    %923 = vmatprep.subr.mxu0 0.0
    %924 = vmatpush1.msra.mxu0 0.0
    %925 = vmatprep.subr.mxu0 0.0
    %926 = vmatpush1.msra.mxu0 0.0
    %927 = vmatprep.subr.mxu0 0.0
    %928 = vmatpush1.msra.mxu0 0.0
    %929 = vmatprep.subr.mxu0 0.0
    %930 = vmatpush1.msra.mxu0 0.0
    %931 = vmatprep.subr.mxu0 0.0
    %932 = vmatpush1.msra.mxu0 0.0
    %933 = vmatprep.subr.mxu0 0.0
    %934 = vmatpush1.msra.mxu0 0.0
    %935 = vmatprep.subr.mxu0 0.0
    %936 = vmatpush1.msra.mxu0 0.0
    %937 = vmatprep.subr.mxu0 0.0
    %938 = vmatpush1.msra.mxu0 0.0
    %939 = vmatprep.subr.mxu0 0.0
    %940 = vmatpush1.msra.mxu0 0.0
    %941 = vmatprep.mubr.f32.mxu0 0.0
    %942 = vmatmul.mubr.f32.gmra.mrb[0].mxu0 %v792
    %v943 = vpop.f32.mrb[0].mxu0
    %v944 = vadd.f32 0.0, %v943
    %v945 = vpop.f32.mrb[0].mxu0
    %v946 = vadd.f32 0.0, %v945
    %947 = vdwg.mxu0
    %v948 = vadd.f32 %v768, %v873
    %v949 = vadd.f32 %v769, %v875
    %v950 = vadd.f32 %v770, %v944
    %v951 = vadd.f32 %v771, %v946
    %s952 = scalar_lea.vmem %s1, 16
    %v953 = vld [vmem:[%s952] sm:$0xf]
    %v955 = vsel %vm276, %v953, 0
    %v957 = vsel %vm280, %v24, 0
    %v959 = vsel %vm280, %v233, 0
    %v961 = vsel %vm280, %v25, 0
    %v963 = vsel %vm280, %v234, 0
    %965 = vmatprep.subr.mxu0 %v959
    %966 = vmatpush1.msra.mxu0 %v957
    %967 = vmatprep.subr.mxu0 0.0
    %968 = vmatpush1.msra.mxu0 0.0
    %969 = vmatprep.subr.mxu0 0.0
    %970 = vmatpush1.msra.mxu0 0.0
    %971 = vmatprep.subr.mxu0 0.0
    %972 = vmatpush1.msra.mxu0 0.0
    %973 = vmatprep.subr.mxu0 0.0
    %974 = vmatpush1.msra.mxu0 0.0
    %975 = vmatprep.subr.mxu0 0.0
    %976 = vmatpush1.msra.mxu0 0.0
    %977 = vmatprep.subr.mxu0 0.0
    %978 = vmatpush1.msra.mxu0 0.0
    %979 = vmatprep.subr.mxu0 0.0
    %980 = vmatpush1.msra.mxu0 0.0
    %981 = vmatprep.subr.mxu0 0.0
    %982 = vmatpush1.msra.mxu0 0.0
    %983 = vmatprep.subr.mxu0 0.0
    %984 = vmatpush1.msra.mxu0 0.0
    %985 = vmatprep.subr.mxu0 0.0
    %986 = vmatpush1.msra.mxu0 0.0
    %987 = vmatprep.subr.mxu0 0.0
    %988 = vmatpush1.msra.mxu0 0.0
    %989 = vmatprep.subr.mxu0 0.0
    %990 = vmatpush1.msra.mxu0 0.0
    %991 = vmatprep.subr.mxu0 0.0
    %992 = vmatpush1.msra.mxu0 0.0
    %993 = vmatprep.subr.mxu0 0.0
    %994 = vmatpush1.msra.mxu0 0.0
    %995 = vmatprep.subr.mxu0 0.0
    %996 = vmatpush1.msra.mxu0 0.0
    %997 = vmatprep.subr.mxu0 0.0
    %998 = vmatpush1.msra.mxu0 0.0
    %999 = vmatprep.subr.mxu0 0.0
    %1000 = vmatpush1.msra.mxu0 0.0
    %1001 = vmatprep.subr.mxu0 0.0
    %1002 = vmatpush1.msra.mxu0 0.0
    %1003 = vmatprep.subr.mxu0 0.0
    %1004 = vmatpush1.msra.mxu0 0.0
    %1005 = vmatprep.subr.mxu0 0.0
    %1006 = vmatpush1.msra.mxu0 0.0
    %1007 = vmatprep.subr.mxu0 0.0
    %1008 = vmatpush1.msra.mxu0 0.0
    %1009 = vmatprep.subr.mxu0 0.0
    %1010 = vmatpush1.msra.mxu0 0.0
    %1011 = vmatprep.subr.mxu0 0.0
    %1012 = vmatpush1.msra.mxu0 0.0
    %1013 = vmatprep.subr.mxu0 0.0
    %1014 = vmatpush1.msra.mxu0 0.0
    %1015 = vmatprep.subr.mxu0 0.0
    %1016 = vmatpush1.msra.mxu0 0.0
    %1017 = vmatprep.subr.mxu0 0.0
    %1018 = vmatpush1.msra.mxu0 0.0
    %1019 = vmatprep.subr.mxu0 0.0
    %1020 = vmatpush1.msra.mxu0 0.0
    %1021 = vmatprep.subr.mxu0 0.0
    %1022 = vmatpush1.msra.mxu0 0.0
    %1023 = vmatprep.subr.mxu0 0.0
    %1024 = vmatpush1.msra.mxu0 0.0
    %1025 = vmatprep.subr.mxu0 0.0
    %1026 = vmatpush1.msra.mxu0 0.0
    %1027 = vmatprep.subr.mxu0 0.0
    %1028 = vmatpush1.msra.mxu0 0.0
    %1029 = vmatprep.mubr.f32.mxu0 0.0
    %1030 = vmatmul.mubr.f32.gmra.mrb[0].mxu0 %v955
    %v1031 = vpop.f32.mrb[0].mxu0
    %v1032 = vadd.f32 0.0, %v1031
    %v1033 = vpop.f32.mrb[0].mxu0
    %v1034 = vadd.f32 0.0, %v1033
    %1035 = vdwg.mxu0
    %1036 = vmatprep.subr.mxu0 %v963
    %1037 = vmatpush1.msra.mxu0 %v961
    %1038 = vmatprep.subr.mxu0 0.0
    %1039 = vmatpush1.msra.mxu0 0.0
    %1040 = vmatprep.subr.mxu0 0.0
    %1041 = vmatpush1.msra.mxu0 0.0
    %1042 = vmatprep.subr.mxu0 0.0
    %1043 = vmatpush1.msra.mxu0 0.0
    %1044 = vmatprep.subr.mxu0 0.0
    %1045 = vmatpush1.msra.mxu0 0.0
    %1046 = vmatprep.subr.mxu0 0.0
    %1047 = vmatpush1.msra.mxu0 0.0
    %1048 = vmatprep.subr.mxu0 0.0
    %1049 = vmatpush1.msra.mxu0 0.0
    %1050 = vmatprep.subr.mxu0 0.0
    %1051 = vmatpush1.msra.mxu0 0.0
    %1052 = vmatprep.subr.mxu0 0.0
    %1053 = vmatpush1.msra.mxu0 0.0
    %1054 = vmatprep.subr.mxu0 0.0
    %1055 = vmatpush1.msra.mxu0 0.0
    %1056 = vmatprep.subr.mxu0 0.0
    %1057 = vmatpush1.msra.mxu0 0.0
    %1058 = vmatprep.subr.mxu0 0.0
    %1059 = vmatpush1.msra.mxu0 0.0
    %1060 = vmatprep.subr.mxu0 0.0
    %1061 = vmatpush1.msra.mxu0 0.0
    %1062 = vmatprep.subr.mxu0 0.0
    %1063 = vmatpush1.msra.mxu0 0.0
    %1064 = vmatprep.subr.mxu0 0.0
    %1065 = vmatpush1.msra.mxu0 0.0
    %1066 = vmatprep.subr.mxu0 0.0
    %1067 = vmatpush1.msra.mxu0 0.0
    %1068 = vmatprep.subr.mxu0 0.0
    %1069 = vmatpush1.msra.mxu0 0.0
    %1070 = vmatprep.subr.mxu0 0.0
    %1071 = vmatpush1.msra.mxu0 0.0
    %1072 = vmatprep.subr.mxu0 0.0
    %1073 = vmatpush1.msra.mxu0 0.0
    %1074 = vmatprep.subr.mxu0 0.0
    %1075 = vmatpush1.msra.mxu0 0.0
    %1076 = vmatprep.subr.mxu0 0.0
    %1077 = vmatpush1.msra.mxu0 0.0
    %1078 = vmatprep.subr.mxu0 0.0
    %1079 = vmatpush1.msra.mxu0 0.0
    %1080 = vmatprep.subr.mxu0 0.0
    %1081 = vmatpush1.msra.mxu0 0.0
    %1082 = vmatprep.subr.mxu0 0.0
    %1083 = vmatpush1.msra.mxu0 0.0
    %1084 = vmatprep.subr.mxu0 0.0
    %1085 = vmatpush1.msra.mxu0 0.0
    %1086 = vmatprep.subr.mxu0 0.0
    %1087 = vmatpush1.msra.mxu0 0.0
    %1088 = vmatprep.subr.mxu0 0.0
    %1089 = vmatpush1.msra.mxu0 0.0
    %1090 = vmatprep.subr.mxu0 0.0
    %1091 = vmatpush1.msra.mxu0 0.0
    %1092 = vmatprep.subr.mxu0 0.0
    %1093 = vmatpush1.msra.mxu0 0.0
    %1094 = vmatprep.subr.mxu0 0.0
    %1095 = vmatpush1.msra.mxu0 0.0
    %1096 = vmatprep.subr.mxu0 0.0
    %1097 = vmatpush1.msra.mxu0 0.0
    %1098 = vmatprep.subr.mxu0 0.0
    %1099 = vmatpush1.msra.mxu0 0.0
    %1100 = vmatprep.mubr.f32.mxu0 0.0
    %1101 = vmatmul.mubr.f32.gmra.mrb[0].mxu0 %v955
    %v1102 = vpop.f32.mrb[0].mxu0
    %v1103 = vadd.f32 0.0, %v1102
    %v1104 = vpop.f32.mrb[0].mxu0
    %v1105 = vadd.f32 0.0, %v1104
    %1106 = vdwg.mxu0
    %v1107 = vadd.f32 %v948, %v1032
    %v1108 = vadd.f32 %v949, %v1034
    %v1109 = vadd.f32 %v950, %v1103
    %v1110 = vadd.f32 %v951, %v1105
    %1111 = vrot.lane.b32.xlu0 %v24, 127
    %v1112 = vpop.permute.xlu0 %1111
    %1113 = vrot.lane.b32.xlu0 %v233, 127
    %v1114 = vpop.permute.xlu0 %1113
    %1115 = vrot.lane.b32.xlu0 %v25, 127
    %v1116 = vpop.permute.xlu0 %1115
    %1117 = vrot.lane.b32.xlu0 %v234, 127
    %v1118 = vpop.permute.xlu0 %1117
    %vm1119 = vcmp.lt.s32.totalorder %v246, 127
    %v1120 = vsel %vm1119, %v1116, %v1118
    %v1121 = vsel %vm1119, %v1114, %v1116
    %v1122 = vsel %vm1119, %v1112, %v1114
    %v1123 = vsel %vm1119, %v1118, %v1112
    %v1124 = vsel %vm187, %v1122, 0.0
    %v1125 = vsel %vm188, %v1121, 0.0
    %v1126 = vsel %vm189, %v1120, 0.0
    %v1127 = vsel %vm190, %v1123, 0.0
    %s1128 = scalar_lea.vmem %s1, 20
    %v1129 = vld [vmem:[%s1128] sm:$0xf]
    %v1131 = vsel %vm276, %v1129, 0
    %v1134 = vsel %vm280, %v1124, 0
    %v1137 = vsel %vm280, %v1125, 0
    %v1140 = vsel %vm280, %v1126, 0
    %v1143 = vsel %vm280, %v1127, 0
    %1145 = vmatprep.subr.mxu0 %v1137
    %1146 = vmatpush1.msra.mxu0 %v1134
    %1147 = vmatprep.subr.mxu0 0.0
    %1148 = vmatpush1.msra.mxu0 0.0
    %1149 = vmatprep.subr.mxu0 0.0
    %1150 = vmatpush1.msra.mxu0 0.0
    %1151 = vmatprep.subr.mxu0 0.0
    %1152 = vmatpush1.msra.mxu0 0.0
    %1153 = vmatprep.subr.mxu0 0.0
    %1154 = vmatpush1.msra.mxu0 0.0
    %1155 = vmatprep.subr.mxu0 0.0
    %1156 = vmatpush1.msra.mxu0 0.0
    %1157 = vmatprep.subr.mxu0 0.0
    %1158 = vmatpush1.msra.mxu0 0.0
    %1159 = vmatprep.subr.mxu0 0.0
    %1160 = vmatpush1.msra.mxu0 0.0
    %1161 = vmatprep.subr.mxu0 0.0
    %1162 = vmatpush1.msra.mxu0 0.0
    %1163 = vmatprep.subr.mxu0 0.0
    %1164 = vmatpush1.msra.mxu0 0.0
    %1165 = vmatprep.subr.mxu0 0.0
    %1166 = vmatpush1.msra.mxu0 0.0
    %1167 = vmatprep.subr.mxu0 0.0
    %1168 = vmatpush1.msra.mxu0 0.0
    %1169 = vmatprep.subr.mxu0 0.0
    %1170 = vmatpush1.msra.mxu0 0.0
    %1171 = vmatprep.subr.mxu0 0.0
    %1172 = vmatpush1.msra.mxu0 0.0
    %1173 = vmatprep.subr.mxu0 0.0
    %1174 = vmatpush1.msra.mxu0 0.0
    %1175 = vmatprep.subr.mxu0 0.0
    %1176 = vmatpush1.msra.mxu0 0.0
    %1177 = vmatprep.subr.mxu0 0.0
    %1178 = vmatpush1.msra.mxu0 0.0
    %1179 = vmatprep.subr.mxu0 0.0
    %1180 = vmatpush1.msra.mxu0 0.0
    %1181 = vmatprep.subr.mxu0 0.0
    %1182 = vmatpush1.msra.mxu0 0.0
    %1183 = vmatprep.subr.mxu0 0.0
    %1184 = vmatpush1.msra.mxu0 0.0
    %1185 = vmatprep.subr.mxu0 0.0
    %1186 = vmatpush1.msra.mxu0 0.0
    %1187 = vmatprep.subr.mxu0 0.0
    %1188 = vmatpush1.msra.mxu0 0.0
    %1189 = vmatprep.subr.mxu0 0.0
    %1190 = vmatpush1.msra.mxu0 0.0
    %1191 = vmatprep.subr.mxu0 0.0
    %1192 = vmatpush1.msra.mxu0 0.0
    %1193 = vmatprep.subr.mxu0 0.0
    %1194 = vmatpush1.msra.mxu0 0.0
    %1195 = vmatprep.subr.mxu0 0.0
    %1196 = vmatpush1.msra.mxu0 0.0
    %1197 = vmatprep.subr.mxu0 0.0
    %1198 = vmatpush1.msra.mxu0 0.0
    %1199 = vmatprep.subr.mxu0 0.0
    %1200 = vmatpush1.msra.mxu0 0.0
    %1201 = vmatprep.subr.mxu0 0.0
    %1202 = vmatpush1.msra.mxu0 0.0
    %1203 = vmatprep.subr.mxu0 0.0
    %1204 = vmatpush1.msra.mxu0 0.0
    %1205 = vmatprep.subr.mxu0 0.0
    %1206 = vmatpush1.msra.mxu0 0.0
    %1207 = vmatprep.subr.mxu0 0.0
    %1208 = vmatpush1.msra.mxu0 0.0
    %1209 = vmatprep.mubr.f32.mxu0 0.0
    %1210 = vmatmul.mubr.f32.gmra.mrb[0].mxu0 %v1131
    %v1211 = vpop.f32.mrb[0].mxu0
    %v1212 = vadd.f32 0.0, %v1211
    %v1213 = vpop.f32.mrb[0].mxu0
    %v1214 = vadd.f32 0.0, %v1213
    %1215 = vdwg.mxu0
    %1216 = vmatprep.subr.mxu0 %v1143
    %1217 = vmatpush1.msra.mxu0 %v1140
    %1218 = vmatprep.subr.mxu0 0.0
    %1219 = vmatpush1.msra.mxu0 0.0
    %1220 = vmatprep.subr.mxu0 0.0
    %1221 = vmatpush1.msra.mxu0 0.0
    %1222 = vmatprep.subr.mxu0 0.0
    %1223 = vmatpush1.msra.mxu0 0.0
    %1224 = vmatprep.subr.mxu0 0.0
    %1225 = vmatpush1.msra.mxu0 0.0
    %1226 = vmatprep.subr.mxu0 0.0
    %1227 = vmatpush1.msra.mxu0 0.0
    %1228 = vmatprep.subr.mxu0 0.0
    %1229 = vmatpush1.msra.mxu0 0.0
    %1230 = vmatprep.subr.mxu0 0.0
    %1231 = vmatpush1.msra.mxu0 0.0
    %1232 = vmatprep.subr.mxu0 0.0
    %1233 = vmatpush1.msra.mxu0 0.0
    %1234 = vmatprep.subr.mxu0 0.0
    %1235 = vmatpush1.msra.mxu0 0.0
    %1236 = vmatprep.subr.mxu0 0.0
    %1237 = vmatpush1.msra.mxu0 0.0
    %1238 = vmatprep.subr.mxu0 0.0
    %1239 = vmatpush1.msra.mxu0 0.0
    %1240 = vmatprep.subr.mxu0 0.0
    %1241 = vmatpush1.msra.mxu0 0.0
    %1242 = vmatprep.subr.mxu0 0.0
    %1243 = vmatpush1.msra.mxu0 0.0
    %1244 = vmatprep.subr.mxu0 0.0
    %1245 = vmatpush1.msra.mxu0 0.0
    %1246 = vmatprep.subr.mxu0 0.0
    %1247 = vmatpush1.msra.mxu0 0.0
    %1248 = vmatprep.subr.mxu0 0.0
    %1249 = vmatpush1.msra.mxu0 0.0
    %1250 = vmatprep.subr.mxu0 0.0
    %1251 = vmatpush1.msra.mxu0 0.0
    %1252 = vmatprep.subr.mxu0 0.0
    %1253 = vmatpush1.msra.mxu0 0.0
    %1254 = vmatprep.subr.mxu0 0.0
    %1255 = vmatpush1.msra.mxu0 0.0
    %1256 = vmatprep.subr.mxu0 0.0
    %1257 = vmatpush1.msra.mxu0 0.0
    %1258 = vmatprep.subr.mxu0 0.0
    %1259 = vmatpush1.msra.mxu0 0.0
    %1260 = vmatprep.subr.mxu0 0.0
    %1261 = vmatpush1.msra.mxu0 0.0
    %1262 = vmatprep.subr.mxu0 0.0
    %1263 = vmatpush1.msra.mxu0 0.0
    %1264 = vmatprep.subr.mxu0 0.0
    %1265 = vmatpush1.msra.mxu0 0.0
    %1266 = vmatprep.subr.mxu0 0.0
    %1267 = vmatpush1.msra.mxu0 0.0
    %1268 = vmatprep.subr.mxu0 0.0
    %1269 = vmatpush1.msra.mxu0 0.0
    %1270 = vmatprep.subr.mxu0 0.0
    %1271 = vmatpush1.msra.mxu0 0.0
    %1272 = vmatprep.subr.mxu0 0.0
    %1273 = vmatpush1.msra.mxu0 0.0
    %1274 = vmatprep.subr.mxu0 0.0
    %1275 = vmatpush1.msra.mxu0 0.0
    %1276 = vmatprep.subr.mxu0 0.0
    %1277 = vmatpush1.msra.mxu0 0.0
    %1278 = vmatprep.subr.mxu0 0.0
    %1279 = vmatpush1.msra.mxu0 0.0
    %1280 = vmatprep.mubr.f32.mxu0 0.0
    %1281 = vmatmul.mubr.f32.gmra.mrb[0].mxu0 %v1131
    %v1282 = vpop.f32.mrb[0].mxu0
    %v1283 = vadd.f32 0.0, %v1282
    %v1284 = vpop.f32.mrb[0].mxu0
    %v1285 = vadd.f32 0.0, %v1284
    %1286 = vdwg.mxu0
    %v1287 = vadd.f32 %v1107, %v1212
    %v1288 = vadd.f32 %v1108, %v1214
    %v1289 = vadd.f32 %v1109, %v1283
    %v1290 = vadd.f32 %v1110, %v1285
    %1291 = vrot.lane.b32.xlu0 %v24, 113
    %v1292 = vpop.permute.xlu0 %1291
    %1293 = vrot.lane.b32.xlu0 %v233, 113
    %v1294 = vpop.permute.xlu0 %1293
    %1295 = vrot.lane.b32.xlu0 %v25, 113
    %v1296 = vpop.permute.xlu0 %1295
    %1297 = vrot.lane.b32.xlu0 %v234, 113
    %v1298 = vpop.permute.xlu0 %1297
    %vm1299 = vcmp.lt.s32.totalorder %v246, 113
    %v1300 = vsel %vm1299, %v1296, %v1298
    %v1301 = vsel %vm1299, %v1294, %v1296
    %v1302 = vsel %vm1299, %v1292, %v1294
    %v1303 = vsel %vm1299, %v1298, %v1292
    %v1304 = vsel %vm211, %v1302, 0.0
    %v1305 = vsel %vm212, %v1301, 0.0
    %v1306 = vsel %vm213, %v1300, 0.0
    %v1307 = vsel %vm214, %v1303, 0.0
    %s1308 = scalar_lea.vmem %s1, 24
    %v1309 = vld [vmem:[%s1308] sm:$0xf]
    %v1311 = vsel %vm276, %v1309, 0
    %v1314 = vsel %vm280, %v1304, 0
    %v1317 = vsel %vm280, %v1305, 0
    %v1320 = vsel %vm280, %v1306, 0
    %v1323 = vsel %vm280, %v1307, 0
    %1325 = vmatprep.subr.mxu0 %v1317
    %1326 = vmatpush1.msra.mxu0 %v1314
    %1327 = vmatprep.subr.mxu0 0.0
    %1328 = vmatpush1.msra.mxu0 0.0
    %1329 = vmatprep.subr.mxu0 0.0
    %1330 = vmatpush1.msra.mxu0 0.0
    %1331 = vmatprep.subr.mxu0 0.0
    %1332 = vmatpush1.msra.mxu0 0.0
    %1333 = vmatprep.subr.mxu0 0.0
    %1334 = vmatpush1.msra.mxu0 0.0
    %1335 = vmatprep.subr.mxu0 0.0
    %1336 = vmatpush1.msra.mxu0 0.0
    %1337 = vmatprep.subr.mxu0 0.0
    %1338 = vmatpush1.msra.mxu0 0.0
    %1339 = vmatprep.subr.mxu0 0.0
    %1340 = vmatpush1.msra.mxu0 0.0
    %1341 = vmatprep.subr.mxu0 0.0
    %1342 = vmatpush1.msra.mxu0 0.0
    %1343 = vmatprep.subr.mxu0 0.0
    %1344 = vmatpush1.msra.mxu0 0.0
    %1345 = vmatprep.subr.mxu0 0.0
    %1346 = vmatpush1.msra.mxu0 0.0
    %1347 = vmatprep.subr.mxu0 0.0
    %1348 = vmatpush1.msra.mxu0 0.0
    %1349 = vmatprep.subr.mxu0 0.0
    %1350 = vmatpush1.msra.mxu0 0.0
    %1351 = vmatprep.subr.mxu0 0.0
    %1352 = vmatpush1.msra.mxu0 0.0
    %1353 = vmatprep.subr.mxu0 0.0
    %1354 = vmatpush1.msra.mxu0 0.0
    %1355 = vmatprep.subr.mxu0 0.0
    %1356 = vmatpush1.msra.mxu0 0.0
    %1357 = vmatprep.subr.mxu0 0.0
    %1358 = vmatpush1.msra.mxu0 0.0
    %1359 = vmatprep.subr.mxu0 0.0
    %1360 = vmatpush1.msra.mxu0 0.0
    %1361 = vmatprep.subr.mxu0 0.0
    %1362 = vmatpush1.msra.mxu0 0.0
    %1363 = vmatprep.subr.mxu0 0.0
    %1364 = vmatpush1.msra.mxu0 0.0
    %1365 = vmatprep.subr.mxu0 0.0
    %1366 = vmatpush1.msra.mxu0 0.0
    %1367 = vmatprep.subr.mxu0 0.0
    %1368 = vmatpush1.msra.mxu0 0.0
    %1369 = vmatprep.subr.mxu0 0.0
    %1370 = vmatpush1.msra.mxu0 0.0
    %1371 = vmatprep.subr.mxu0 0.0
    %1372 = vmatpush1.msra.mxu0 0.0
    %1373 = vmatprep.subr.mxu0 0.0
    %1374 = vmatpush1.msra.mxu0 0.0
    %1375 = vmatprep.subr.mxu0 0.0
    %1376 = vmatpush1.msra.mxu0 0.0
    %1377 = vmatprep.subr.mxu0 0.0
    %1378 = vmatpush1.msra.mxu0 0.0
    %1379 = vmatprep.subr.mxu0 0.0
    %1380 = vmatpush1.msra.mxu0 0.0
    %1381 = vmatprep.subr.mxu0 0.0
    %1382 = vmatpush1.msra.mxu0 0.0
    %1383 = vmatprep.subr.mxu0 0.0
    %1384 = vmatpush1.msra.mxu0 0.0
    %1385 = vmatprep.subr.mxu0 0.0
    %1386 = vmatpush1.msra.mxu0 0.0
    %1387 = vmatprep.subr.mxu0 0.0
    %1388 = vmatpush1.msra.mxu0 0.0
    %1389 = vmatprep.mubr.f32.mxu0 0.0
    %1390 = vmatmul.mubr.f32.gmra.mrb[0].mxu0 %v1311
    %v1391 = vpop.f32.mrb[0].mxu0
    %v1392 = vadd.f32 0.0, %v1391
    %v1393 = vpop.f32.mrb[0].mxu0
    %v1394 = vadd.f32 0.0, %v1393
    %1395 = vdwg.mxu0
    %1396 = vmatprep.subr.mxu0 %v1323
    %1397 = vmatpush1.msra.mxu0 %v1320
    %1398 = vmatprep.subr.mxu0 0.0
    %1399 = vmatpush1.msra.mxu0 0.0
    %1400 = vmatprep.subr.mxu0 0.0
    %1401 = vmatpush1.msra.mxu0 0.0
    %1402 = vmatprep.subr.mxu0 0.0
    %1403 = vmatpush1.msra.mxu0 0.0
    %1404 = vmatprep.subr.mxu0 0.0
    %1405 = vmatpush1.msra.mxu0 0.0
    %1406 = vmatprep.subr.mxu0 0.0
    %1407 = vmatpush1.msra.mxu0 0.0
    %1408 = vmatprep.subr.mxu0 0.0
    %1409 = vmatpush1.msra.mxu0 0.0
    %1410 = vmatprep.subr.mxu0 0.0
    %1411 = vmatpush1.msra.mxu0 0.0
    %1412 = vmatprep.subr.mxu0 0.0
    %1413 = vmatpush1.msra.mxu0 0.0
    %1414 = vmatprep.subr.mxu0 0.0
    %1415 = vmatpush1.msra.mxu0 0.0
    %1416 = vmatprep.subr.mxu0 0.0
    %1417 = vmatpush1.msra.mxu0 0.0
    %1418 = vmatprep.subr.mxu0 0.0
    %1419 = vmatpush1.msra.mxu0 0.0
    %1420 = vmatprep.subr.mxu0 0.0
    %1421 = vmatpush1.msra.mxu0 0.0
    %1422 = vmatprep.subr.mxu0 0.0
    %1423 = vmatpush1.msra.mxu0 0.0
    %1424 = vmatprep.subr.mxu0 0.0
    %1425 = vmatpush1.msra.mxu0 0.0
    %1426 = vmatprep.subr.mxu0 0.0
    %1427 = vmatpush1.msra.mxu0 0.0
    %1428 = vmatprep.subr.mxu0 0.0
    %1429 = vmatpush1.msra.mxu0 0.0
    %1430 = vmatprep.subr.mxu0 0.0
    %1431 = vmatpush1.msra.mxu0 0.0
    %1432 = vmatprep.subr.mxu0 0.0
    %1433 = vmatpush1.msra.mxu0 0.0
    %1434 = vmatprep.subr.mxu0 0.0
    %1435 = vmatpush1.msra.mxu0 0.0
    %1436 = vmatprep.subr.mxu0 0.0
    %1437 = vmatpush1.msra.mxu0 0.0
    %1438 = vmatprep.subr.mxu0 0.0
    %1439 = vmatpush1.msra.mxu0 0.0
    %1440 = vmatprep.subr.mxu0 0.0
    %1441 = vmatpush1.msra.mxu0 0.0
    %1442 = vmatprep.subr.mxu0 0.0
    %1443 = vmatpush1.msra.mxu0 0.0
    %1444 = vmatprep.subr.mxu0 0.0
    %1445 = vmatpush1.msra.mxu0 0.0
    %1446 = vmatprep.subr.mxu0 0.0
    %1447 = vmatpush1.msra.mxu0 0.0
    %1448 = vmatprep.subr.mxu0 0.0
    %1449 = vmatpush1.msra.mxu0 0.0
    %1450 = vmatprep.subr.mxu0 0.0
    %1451 = vmatpush1.msra.mxu0 0.0
    %1452 = vmatprep.subr.mxu0 0.0
    %1453 = vmatpush1.msra.mxu0 0.0
    %1454 = vmatprep.subr.mxu0 0.0
    %1455 = vmatpush1.msra.mxu0 0.0
    %1456 = vmatprep.subr.mxu0 0.0
    %1457 = vmatpush1.msra.mxu0 0.0
    %1458 = vmatprep.subr.mxu0 0.0
    %1459 = vmatpush1.msra.mxu0 0.0
    %1460 = vmatprep.mubr.f32.mxu0 0.0
    %1461 = vmatmul.mubr.f32.gmra.mrb[0].mxu0 %v1311
    %v1462 = vpop.f32.mrb[0].mxu0
    %v1463 = vadd.f32 0.0, %v1462
    %v1464 = vpop.f32.mrb[0].mxu0
    %v1465 = vadd.f32 0.0, %v1464
    %1466 = vdwg.mxu0
    %v1467 = vadd.f32 %v1287, %v1392
    %v1468 = vadd.f32 %v1288, %v1394
    %v1469 = vadd.f32 %v1289, %v1463
    %v1470 = vadd.f32 %v1290, %v1465
    %1471 = vrot.lane.b32.xlu0 %v24, 112
    %v1472 = vpop.permute.xlu0 %1471
    %1473 = vrot.lane.b32.xlu0 %v233, 112
    %v1474 = vpop.permute.xlu0 %1473
    %1475 = vrot.lane.b32.xlu0 %v25, 112
    %v1476 = vpop.permute.xlu0 %1475
    %1477 = vrot.lane.b32.xlu0 %v234, 112
    %v1478 = vpop.permute.xlu0 %1477
    %vm1479 = vcmp.lt.s32.totalorder %v246, 112
    %v1480 = vsel %vm1479, %v1476, %v1478
    %v1481 = vsel %vm1479, %v1474, %v1476
    %v1482 = vsel %vm1479, %v1472, %v1474
    %v1483 = vsel %vm1479, %v1478, %v1472
    %v1484 = vsel %vm219, %v1482, 0.0
    %v1485 = vsel %vm220, %v1481, 0.0
    %v1486 = vsel %vm221, %v1480, 0.0
    %v1487 = vsel %vm222, %v1483, 0.0
    %s1488 = scalar_lea.vmem %s1, 28
    %v1489 = vld [vmem:[%s1488] sm:$0xf]
    %v1491 = vsel %vm276, %v1489, 0
    %v1494 = vsel %vm280, %v1484, 0
    %v1497 = vsel %vm280, %v1485, 0
    %v1500 = vsel %vm280, %v1486, 0
    %v1503 = vsel %vm280, %v1487, 0
    %1505 = vmatprep.subr.mxu0 %v1497
    %1506 = vmatpush1.msra.mxu0 %v1494
    %1507 = vmatprep.subr.mxu0 0.0
    %1508 = vmatpush1.msra.mxu0 0.0
    %1509 = vmatprep.subr.mxu0 0.0
    %1510 = vmatpush1.msra.mxu0 0.0
    %1511 = vmatprep.subr.mxu0 0.0
    %1512 = vmatpush1.msra.mxu0 0.0
    %1513 = vmatprep.subr.mxu0 0.0
    %1514 = vmatpush1.msra.mxu0 0.0
    %1515 = vmatprep.subr.mxu0 0.0
    %1516 = vmatpush1.msra.mxu0 0.0
    %1517 = vmatprep.subr.mxu0 0.0
    %1518 = vmatpush1.msra.mxu0 0.0
    %1519 = vmatprep.subr.mxu0 0.0
    %1520 = vmatpush1.msra.mxu0 0.0
    %1521 = vmatprep.subr.mxu0 0.0
    %1522 = vmatpush1.msra.mxu0 0.0
    %1523 = vmatprep.subr.mxu0 0.0
    %1524 = vmatpush1.msra.mxu0 0.0
    %1525 = vmatprep.subr.mxu0 0.0
    %1526 = vmatpush1.msra.mxu0 0.0
    %1527 = vmatprep.subr.mxu0 0.0
    %1528 = vmatpush1.msra.mxu0 0.0
    %1529 = vmatprep.subr.mxu0 0.0
    %1530 = vmatpush1.msra.mxu0 0.0
    %1531 = vmatprep.subr.mxu0 0.0
    %1532 = vmatpush1.msra.mxu0 0.0
    %1533 = vmatprep.subr.mxu0 0.0
    %1534 = vmatpush1.msra.mxu0 0.0
    %1535 = vmatprep.subr.mxu0 0.0
    %1536 = vmatpush1.msra.mxu0 0.0
    %1537 = vmatprep.subr.mxu0 0.0
    %1538 = vmatpush1.msra.mxu0 0.0
    %1539 = vmatprep.subr.mxu0 0.0
    %1540 = vmatpush1.msra.mxu0 0.0
    %1541 = vmatprep.subr.mxu0 0.0
    %1542 = vmatpush1.msra.mxu0 0.0
    %1543 = vmatprep.subr.mxu0 0.0
    %1544 = vmatpush1.msra.mxu0 0.0
    %1545 = vmatprep.subr.mxu0 0.0
    %1546 = vmatpush1.msra.mxu0 0.0
    %1547 = vmatprep.subr.mxu0 0.0
    %1548 = vmatpush1.msra.mxu0 0.0
    %1549 = vmatprep.subr.mxu0 0.0
    %1550 = vmatpush1.msra.mxu0 0.0
    %1551 = vmatprep.subr.mxu0 0.0
    %1552 = vmatpush1.msra.mxu0 0.0
    %1553 = vmatprep.subr.mxu0 0.0
    %1554 = vmatpush1.msra.mxu0 0.0
    %1555 = vmatprep.subr.mxu0 0.0
    %1556 = vmatpush1.msra.mxu0 0.0
    %1557 = vmatprep.subr.mxu0 0.0
    %1558 = vmatpush1.msra.mxu0 0.0
    %1559 = vmatprep.subr.mxu0 0.0
    %1560 = vmatpush1.msra.mxu0 0.0
    %1561 = vmatprep.subr.mxu0 0.0
    %1562 = vmatpush1.msra.mxu0 0.0
    %1563 = vmatprep.subr.mxu0 0.0
    %1564 = vmatpush1.msra.mxu0 0.0
    %1565 = vmatprep.subr.mxu0 0.0
    %1566 = vmatpush1.msra.mxu0 0.0
    %1567 = vmatprep.subr.mxu0 0.0
    %1568 = vmatpush1.msra.mxu0 0.0
    %1569 = vmatprep.mubr.f32.mxu0 0.0
    %1570 = vmatmul.mubr.f32.gmra.mrb[0].mxu0 %v1491
    %v1571 = vpop.f32.mrb[0].mxu0
    %v1572 = vadd.f32 0.0, %v1571
    %v1573 = vpop.f32.mrb[0].mxu0
    %v1574 = vadd.f32 0.0, %v1573
    %1575 = vdwg.mxu0
    %1576 = vmatprep.subr.mxu0 %v1503
    %1577 = vmatpush1.msra.mxu0 %v1500
    %1578 = vmatprep.subr.mxu0 0.0
    %1579 = vmatpush1.msra.mxu0 0.0
    %1580 = vmatprep.subr.mxu0 0.0
    %1581 = vmatpush1.msra.mxu0 0.0
    %1582 = vmatprep.subr.mxu0 0.0
    %1583 = vmatpush1.msra.mxu0 0.0
    %1584 = vmatprep.subr.mxu0 0.0
    %1585 = vmatpush1.msra.mxu0 0.0
    %1586 = vmatprep.subr.mxu0 0.0
    %1587 = vmatpush1.msra.mxu0 0.0
    %1588 = vmatprep.subr.mxu0 0.0
    %1589 = vmatpush1.msra.mxu0 0.0
    %1590 = vmatprep.subr.mxu0 0.0
    %1591 = vmatpush1.msra.mxu0 0.0
    %1592 = vmatprep.subr.mxu0 0.0
    %1593 = vmatpush1.msra.mxu0 0.0
    %1594 = vmatprep.subr.mxu0 0.0
    %1595 = vmatpush1.msra.mxu0 0.0
    %1596 = vmatprep.subr.mxu0 0.0
    %1597 = vmatpush1.msra.mxu0 0.0
    %1598 = vmatprep.subr.mxu0 0.0
    %1599 = vmatpush1.msra.mxu0 0.0
    %1600 = vmatprep.subr.mxu0 0.0
    %1601 = vmatpush1.msra.mxu0 0.0
    %1602 = vmatprep.subr.mxu0 0.0
    %1603 = vmatpush1.msra.mxu0 0.0
    %1604 = vmatprep.subr.mxu0 0.0
    %1605 = vmatpush1.msra.mxu0 0.0
    %1606 = vmatprep.subr.mxu0 0.0
    %1607 = vmatpush1.msra.mxu0 0.0
    %1608 = vmatprep.subr.mxu0 0.0
    %1609 = vmatpush1.msra.mxu0 0.0
    %1610 = vmatprep.subr.mxu0 0.0
    %1611 = vmatpush1.msra.mxu0 0.0
    %1612 = vmatprep.subr.mxu0 0.0
    %1613 = vmatpush1.msra.mxu0 0.0
    %1614 = vmatprep.subr.mxu0 0.0
    %1615 = vmatpush1.msra.mxu0 0.0
    %1616 = vmatprep.subr.mxu0 0.0
    %1617 = vmatpush1.msra.mxu0 0.0
    %1618 = vmatprep.subr.mxu0 0.0
    %1619 = vmatpush1.msra.mxu0 0.0
    %1620 = vmatprep.subr.mxu0 0.0
    %1621 = vmatpush1.msra.mxu0 0.0
    %1622 = vmatprep.subr.mxu0 0.0
    %1623 = vmatpush1.msra.mxu0 0.0
    %1624 = vmatprep.subr.mxu0 0.0
    %1625 = vmatpush1.msra.mxu0 0.0
    %1626 = vmatprep.subr.mxu0 0.0
    %1627 = vmatpush1.msra.mxu0 0.0
    %1628 = vmatprep.subr.mxu0 0.0
    %1629 = vmatpush1.msra.mxu0 0.0
    %1630 = vmatprep.subr.mxu0 0.0
    %1631 = vmatpush1.msra.mxu0 0.0
    %1632 = vmatprep.subr.mxu0 0.0
    %1633 = vmatpush1.msra.mxu0 0.0
    %1634 = vmatprep.subr.mxu0 0.0
    %1635 = vmatpush1.msra.mxu0 0.0
    %1636 = vmatprep.subr.mxu0 0.0
    %1637 = vmatpush1.msra.mxu0 0.0
    %1638 = vmatprep.subr.mxu0 0.0
    %1639 = vmatpush1.msra.mxu0 0.0
    %1640 = vmatprep.mubr.f32.mxu0 0.0
    %1641 = vmatmul.mubr.f32.gmra.mrb[0].mxu0 %v1491
    %v1642 = vpop.f32.mrb[0].mxu0
    %v1643 = vadd.f32 0.0, %v1642
    %v1644 = vpop.f32.mrb[0].mxu0
    %v1645 = vadd.f32 0.0, %v1644
    %1646 = vdwg.mxu0
    %v1647 = vadd.f32 %v1467, %v1572
    %v1648 = vadd.f32 %v1468, %v1574
    %v1649 = vadd.f32 %v1469, %v1643
    %v1650 = vadd.f32 %v1470, %v1645
    %1651 = vrot.lane.b32.xlu0 %v24, 111
    %v1652 = vpop.permute.xlu0 %1651
    %1653 = vrot.lane.b32.xlu0 %v233, 111
    %v1654 = vpop.permute.xlu0 %1653
    %1655 = vrot.lane.b32.xlu0 %v25, 111
    %v1656 = vpop.permute.xlu0 %1655
    %1657 = vrot.lane.b32.xlu0 %v234, 111
    %v1658 = vpop.permute.xlu0 %1657
    %vm1659 = vcmp.lt.s32.totalorder %v246, 111
    %v1660 = vsel %vm1659, %v1656, %v1658
    %v1661 = vsel %vm1659, %v1654, %v1656
    %v1662 = vsel %vm1659, %v1652, %v1654
    %v1663 = vsel %vm1659, %v1658, %v1652
    %v1664 = vsel %vm227, %v1662, 0.0
    %v1665 = vsel %vm228, %v1661, 0.0
    %v1666 = vsel %vm229, %v1660, 0.0
    %v1667 = vsel %vm230, %v1663, 0.0
    %s1668 = scalar_lea.vmem %s1, 32
    %v1669 = vld [vmem:[%s1668] sm:$0xf]
    %v1671 = vsel %vm276, %v1669, 0
    %v1674 = vsel %vm280, %v1664, 0
    %v1677 = vsel %vm280, %v1665, 0
    %v1680 = vsel %vm280, %v1666, 0
    %v1683 = vsel %vm280, %v1667, 0
    %1685 = vmatprep.subr.mxu0 %v1677
    %1686 = vmatpush1.msra.mxu0 %v1674
    %1687 = vmatprep.subr.mxu0 0.0
    %1688 = vmatpush1.msra.mxu0 0.0
    %1689 = vmatprep.subr.mxu0 0.0
    %1690 = vmatpush1.msra.mxu0 0.0
    %1691 = vmatprep.subr.mxu0 0.0
    %1692 = vmatpush1.msra.mxu0 0.0
    %1693 = vmatprep.subr.mxu0 0.0
    %1694 = vmatpush1.msra.mxu0 0.0
    %1695 = vmatprep.subr.mxu0 0.0
    %1696 = vmatpush1.msra.mxu0 0.0
    %1697 = vmatprep.subr.mxu0 0.0
    %1698 = vmatpush1.msra.mxu0 0.0
    %1699 = vmatprep.subr.mxu0 0.0
    %1700 = vmatpush1.msra.mxu0 0.0
    %1701 = vmatprep.subr.mxu0 0.0
    %1702 = vmatpush1.msra.mxu0 0.0
    %1703 = vmatprep.subr.mxu0 0.0
    %1704 = vmatpush1.msra.mxu0 0.0
    %1705 = vmatprep.subr.mxu0 0.0
    %1706 = vmatpush1.msra.mxu0 0.0
    %1707 = vmatprep.subr.mxu0 0.0
    %1708 = vmatpush1.msra.mxu0 0.0
    %1709 = vmatprep.subr.mxu0 0.0
    %1710 = vmatpush1.msra.mxu0 0.0
    %1711 = vmatprep.subr.mxu0 0.0
    %1712 = vmatpush1.msra.mxu0 0.0
    %1713 = vmatprep.subr.mxu0 0.0
    %1714 = vmatpush1.msra.mxu0 0.0
    %1715 = vmatprep.subr.mxu0 0.0
    %1716 = vmatpush1.msra.mxu0 0.0
    %1717 = vmatprep.subr.mxu0 0.0
    %1718 = vmatpush1.msra.mxu0 0.0
    %1719 = vmatprep.subr.mxu0 0.0
    %1720 = vmatpush1.msra.mxu0 0.0
    %1721 = vmatprep.subr.mxu0 0.0
    %1722 = vmatpush1.msra.mxu0 0.0
    %1723 = vmatprep.subr.mxu0 0.0
    %1724 = vmatpush1.msra.mxu0 0.0
    %1725 = vmatprep.subr.mxu0 0.0
    %1726 = vmatpush1.msra.mxu0 0.0
    %1727 = vmatprep.subr.mxu0 0.0
    %1728 = vmatpush1.msra.mxu0 0.0
    %1729 = vmatprep.subr.mxu0 0.0
    %1730 = vmatpush1.msra.mxu0 0.0
    %1731 = vmatprep.subr.mxu0 0.0
    %1732 = vmatpush1.msra.mxu0 0.0
    %1733 = vmatprep.subr.mxu0 0.0
    %1734 = vmatpush1.msra.mxu0 0.0
    %1735 = vmatprep.subr.mxu0 0.0
    %1736 = vmatpush1.msra.mxu0 0.0
    %1737 = vmatprep.subr.mxu0 0.0
    %1738 = vmatpush1.msra.mxu0 0.0
    %1739 = vmatprep.subr.mxu0 0.0
    %1740 = vmatpush1.msra.mxu0 0.0
    %1741 = vmatprep.subr.mxu0 0.0
    %1742 = vmatpush1.msra.mxu0 0.0
    %1743 = vmatprep.subr.mxu0 0.0
    %1744 = vmatpush1.msra.mxu0 0.0
    %1745 = vmatprep.subr.mxu0 0.0
    %1746 = vmatpush1.msra.mxu0 0.0
    %1747 = vmatprep.subr.mxu0 0.0
    %1748 = vmatpush1.msra.mxu0 0.0
    %1749 = vmatprep.mubr.f32.mxu0 0.0
    %1750 = vmatmul.mubr.f32.gmra.mrb[0].mxu0 %v1671
    %v1751 = vpop.f32.mrb[0].mxu0
    %v1752 = vadd.f32 0.0, %v1751
    %v1753 = vpop.f32.mrb[0].mxu0
    %v1754 = vadd.f32 0.0, %v1753
    %1755 = vdwg.mxu0
    %1756 = vmatprep.subr.mxu0 %v1683
    %1757 = vmatpush1.msra.mxu0 %v1680
    %1758 = vmatprep.subr.mxu0 0.0
    %1759 = vmatpush1.msra.mxu0 0.0
    %1760 = vmatprep.subr.mxu0 0.0
    %1761 = vmatpush1.msra.mxu0 0.0
    %1762 = vmatprep.subr.mxu0 0.0
    %1763 = vmatpush1.msra.mxu0 0.0
    %1764 = vmatprep.subr.mxu0 0.0
    %1765 = vmatpush1.msra.mxu0 0.0
    %1766 = vmatprep.subr.mxu0 0.0
    %1767 = vmatpush1.msra.mxu0 0.0
    %1768 = vmatprep.subr.mxu0 0.0
    %1769 = vmatpush1.msra.mxu0 0.0
    %1770 = vmatprep.subr.mxu0 0.0
    %1771 = vmatpush1.msra.mxu0 0.0
    %1772 = vmatprep.subr.mxu0 0.0
    %1773 = vmatpush1.msra.mxu0 0.0
    %1774 = vmatprep.subr.mxu0 0.0
    %1775 = vmatpush1.msra.mxu0 0.0
    %1776 = vmatprep.subr.mxu0 0.0
    %1777 = vmatpush1.msra.mxu0 0.0
    %1778 = vmatprep.subr.mxu0 0.0
    %1779 = vmatpush1.msra.mxu0 0.0
    %1780 = vmatprep.subr.mxu0 0.0
    %1781 = vmatpush1.msra.mxu0 0.0
    %1782 = vmatprep.subr.mxu0 0.0
    %1783 = vmatpush1.msra.mxu0 0.0
    %1784 = vmatprep.subr.mxu0 0.0
    %1785 = vmatpush1.msra.mxu0 0.0
    %1786 = vmatprep.subr.mxu0 0.0
    %1787 = vmatpush1.msra.mxu0 0.0
    %1788 = vmatprep.subr.mxu0 0.0
    %1789 = vmatpush1.msra.mxu0 0.0
    %1790 = vmatprep.subr.mxu0 0.0
    %1791 = vmatpush1.msra.mxu0 0.0
    %1792 = vmatprep.subr.mxu0 0.0
    %1793 = vmatpush1.msra.mxu0 0.0
    %1794 = vmatprep.subr.mxu0 0.0
    %1795 = vmatpush1.msra.mxu0 0.0
    %1796 = vmatprep.subr.mxu0 0.0
    %1797 = vmatpush1.msra.mxu0 0.0
    %1798 = vmatprep.subr.mxu0 0.0
    %1799 = vmatpush1.msra.mxu0 0.0
    %1800 = vmatprep.subr.mxu0 0.0
    %1801 = vmatpush1.msra.mxu0 0.0
    %1802 = vmatprep.subr.mxu0 0.0
    %1803 = vmatpush1.msra.mxu0 0.0
    %1804 = vmatprep.subr.mxu0 0.0
    %1805 = vmatpush1.msra.mxu0 0.0
    %1806 = vmatprep.subr.mxu0 0.0
    %1807 = vmatpush1.msra.mxu0 0.0
    %1808 = vmatprep.subr.mxu0 0.0
    %1809 = vmatpush1.msra.mxu0 0.0
    %1810 = vmatprep.subr.mxu0 0.0
    %1811 = vmatpush1.msra.mxu0 0.0
    %1812 = vmatprep.subr.mxu0 0.0
    %1813 = vmatpush1.msra.mxu0 0.0
    %1814 = vmatprep.subr.mxu0 0.0
    %1815 = vmatpush1.msra.mxu0 0.0
    %1816 = vmatprep.subr.mxu0 0.0
    %1817 = vmatpush1.msra.mxu0 0.0
    %1818 = vmatprep.subr.mxu0 0.0
    %1819 = vmatpush1.msra.mxu0 0.0
    %1820 = vmatprep.mubr.f32.mxu0 0.0
    %1821 = vmatmul.mubr.f32.gmra.mrb[0].mxu0 %v1671
    %v1822 = vpop.f32.mrb[0].mxu0
    %v1823 = vadd.f32 0.0, %v1822
    %v1824 = vpop.f32.mrb[0].mxu0
    %v1825 = vadd.f32 0.0, %v1824
    %1826 = vdwg.mxu0
    %v1827 = vadd.f32 %v1647, %v1752
    %v1828 = vadd.f32 %v1648, %v1754
    %v1829 = vadd.f32 %v1649, %v1823
    %v1830 = vadd.f32 %v1650, %v1825
    %v1831 = vld [vmem:[%s2] sm:$0xf]
    %1833 = vset.pattern.permute.xlu0 0
    %1834 = vperm.xlu0 %1833, %v1831
    %v1835 = vpop.permute.xlu0 %1834
    %v1837 = vadd.f32 %v1827, %v1835
    %v1838 = vadd.f32 %v1828, %v1835
    %v1839 = vadd.f32 %v1829, %v1835
    %v1840 = vadd.f32 %v1830, %v1835
    %v1841 = vmax.f32 %v1837, 0.0
    %v1842 = vmax.f32 %v1838, 0.0
    %v1843 = vmax.f32 %v1839, 0.0
    %v1844 = vmax.f32 %v1840, 0.0
    %1845 = vrot.lane.b32.xlu0 %v1841, 17
    %v1846 = vpop.permute.xlu0 %1845
    %1847 = vrot.lane.b32.xlu0 %v1842, 17
    %v1848 = vpop.permute.xlu0 %1847
    %1849 = vrot.lane.b32.xlu0 %v1843, 17
    %v1850 = vpop.permute.xlu0 %1849
    %1851 = vrot.lane.b32.xlu0 %v1844, 17
    %v1852 = vpop.permute.xlu0 %1851
    %v1853 = vsel %vm247, %v1850, %v1852
    %v1854 = vsel %vm247, %v1848, %v1850
    %v1855 = vsel %vm247, %v1846, %v1848
    %v1856 = vsel %vm247, %v1852, %v1846
    %v1857 = vsel %vm123, %v1856, 0.0
    %v1858 = vsel %vm124, %v1855, 0.0
    %v1859 = vsel %vm125, %v1854, 0.0
    %v1860 = vsel %vm126, %v1853, 0.0
    %v1861 = vld [vmem:[%s3] sm:$0xf]
    %1862 = vrot.lane.b32.xlu0 %v1841, 16
    %v1863 = vpop.permute.xlu0 %1862
    %1864 = vrot.lane.b32.xlu0 %v1842, 16
    %v1865 = vpop.permute.xlu0 %1864
    %1866 = vrot.lane.b32.xlu0 %v1843, 16
    %v1867 = vpop.permute.xlu0 %1866
    %1868 = vrot.lane.b32.xlu0 %v1844, 16
    %v1869 = vpop.permute.xlu0 %1868
    %v1870 = vsel %vm265, %v1867, %v1869
    %v1871 = vsel %vm265, %v1865, %v1867
    %v1872 = vsel %vm265, %v1863, %v1865
    %v1873 = vsel %vm265, %v1869, %v1863
    %v1874 = vsel %vm139, %v1873, 0.0
    %v1875 = vsel %vm140, %v1872, 0.0
    %v1876 = vsel %vm141, %v1871, 0.0
    %v1877 = vsel %vm142, %v1870, 0.0
    %s1878 = scalar_lea.vmem %s3, 4
    %v1879 = vld [vmem:[%s1878] sm:$0xf]
    %v1881 = vsel %vm276, %v1879, 0
    %v1884 = vsel %vm280, %v1874, 0
    %v1887 = vsel %vm280, %v1875, 0
    %v1890 = vsel %vm280, %v1876, 0
    %v1893 = vsel %vm280, %v1877, 0
    %1895 = vmatprep.subr.mxu0 %v1887
    %1896 = vmatpush1.msra.mxu0 %v1884
    %1897 = vmatprep.subr.mxu0 0.0
    %1898 = vmatpush1.msra.mxu0 0.0
    %1899 = vmatprep.subr.mxu0 0.0
    %1900 = vmatpush1.msra.mxu0 0.0
    %1901 = vmatprep.subr.mxu0 0.0
    %1902 = vmatpush1.msra.mxu0 0.0
    %1903 = vmatprep.subr.mxu0 0.0
    %1904 = vmatpush1.msra.mxu0 0.0
    %1905 = vmatprep.subr.mxu0 0.0
    %1906 = vmatpush1.msra.mxu0 0.0
    %1907 = vmatprep.subr.mxu0 0.0
    %1908 = vmatpush1.msra.mxu0 0.0
    %1909 = vmatprep.subr.mxu0 0.0
    %1910 = vmatpush1.msra.mxu0 0.0
    %1911 = vmatprep.subr.mxu0 0.0
    %1912 = vmatpush1.msra.mxu0 0.0
    %1913 = vmatprep.subr.mxu0 0.0
    %1914 = vmatpush1.msra.mxu0 0.0
    %1915 = vmatprep.subr.mxu0 0.0
    %1916 = vmatpush1.msra.mxu0 0.0
    %1917 = vmatprep.subr.mxu0 0.0
    %1918 = vmatpush1.msra.mxu0 0.0
    %1919 = vmatprep.subr.mxu0 0.0
    %1920 = vmatpush1.msra.mxu0 0.0
    %1921 = vmatprep.subr.mxu0 0.0
    %1922 = vmatpush1.msra.mxu0 0.0
    %1923 = vmatprep.subr.mxu0 0.0
    %1924 = vmatpush1.msra.mxu0 0.0
    %1925 = vmatprep.subr.mxu0 0.0
    %1926 = vmatpush1.msra.mxu0 0.0
    %1927 = vmatprep.subr.mxu0 0.0
    %1928 = vmatpush1.msra.mxu0 0.0
    %1929 = vmatprep.subr.mxu0 0.0
    %1930 = vmatpush1.msra.mxu0 0.0
    %1931 = vmatprep.subr.mxu0 0.0
    %1932 = vmatpush1.msra.mxu0 0.0
    %1933 = vmatprep.subr.mxu0 0.0
    %1934 = vmatpush1.msra.mxu0 0.0
    %1935 = vmatprep.subr.mxu0 0.0
    %1936 = vmatpush1.msra.mxu0 0.0
    %1937 = vmatprep.subr.mxu0 0.0
    %1938 = vmatpush1.msra.mxu0 0.0
    %1939 = vmatprep.subr.mxu0 0.0
    %1940 = vmatpush1.msra.mxu0 0.0
    %1941 = vmatprep.subr.mxu0 0.0
    %1942 = vmatpush1.msra.mxu0 0.0
    %1943 = vmatprep.subr.mxu0 0.0
    %1944 = vmatpush1.msra.mxu0 0.0
    %1945 = vmatprep.subr.mxu0 0.0
    %1946 = vmatpush1.msra.mxu0 0.0
    %1947 = vmatprep.subr.mxu0 0.0
    %1948 = vmatpush1.msra.mxu0 0.0
    %1949 = vmatprep.subr.mxu0 0.0
    %1950 = vmatpush1.msra.mxu0 0.0
    %1951 = vmatprep.subr.mxu0 0.0
    %1952 = vmatpush1.msra.mxu0 0.0
    %1953 = vmatprep.subr.mxu0 0.0
    %1954 = vmatpush1.msra.mxu0 0.0
    %1955 = vmatprep.subr.mxu0 0.0
    %1956 = vmatpush1.msra.mxu0 0.0
    %1957 = vmatprep.subr.mxu0 0.0
    %1958 = vmatpush1.msra.mxu0 0.0
    %1959 = vmatprep.mubr.f32.mxu0 0.0
    %1960 = vmatmul.mubr.f32.gmra.mrb[0].mxu0 %v1881
    %v1961 = vpop.f32.mrb[0].mxu0
    %v1962 = vadd.f32 0.0, %v1961
    %v1963 = vpop.f32.mrb[0].mxu0
    %v1964 = vadd.f32 0.0, %v1963
    %1965 = vdwg.mxu0
    %1966 = vmatprep.subr.mxu0 %v1893
    %1967 = vmatpush1.msra.mxu0 %v1890
    %1968 = vmatprep.subr.mxu0 0.0
    %1969 = vmatpush1.msra.mxu0 0.0
    %1970 = vmatprep.subr.mxu0 0.0
    %1971 = vmatpush1.msra.mxu0 0.0
    %1972 = vmatprep.subr.mxu0 0.0
    %1973 = vmatpush1.msra.mxu0 0.0
    %1974 = vmatprep.subr.mxu0 0.0
    %1975 = vmatpush1.msra.mxu0 0.0
    %1976 = vmatprep.subr.mxu0 0.0
    %1977 = vmatpush1.msra.mxu0 0.0
    %1978 = vmatprep.subr.mxu0 0.0
    %1979 = vmatpush1.msra.mxu0 0.0
    %1980 = vmatprep.subr.mxu0 0.0
    %1981 = vmatpush1.msra.mxu0 0.0
    %1982 = vmatprep.subr.mxu0 0.0
    %1983 = vmatpush1.msra.mxu0 0.0
    %1984 = vmatprep.subr.mxu0 0.0
    %1985 = vmatpush1.msra.mxu0 0.0
    %1986 = vmatprep.subr.mxu0 0.0
    %1987 = vmatpush1.msra.mxu0 0.0
    %1988 = vmatprep.subr.mxu0 0.0
    %1989 = vmatpush1.msra.mxu0 0.0
    %1990 = vmatprep.subr.mxu0 0.0
    %1991 = vmatpush1.msra.mxu0 0.0
    %1992 = vmatprep.subr.mxu0 0.0
    %1993 = vmatpush1.msra.mxu0 0.0
    %1994 = vmatprep.subr.mxu0 0.0
    %1995 = vmatpush1.msra.mxu0 0.0
    %1996 = vmatprep.subr.mxu0 0.0
    %1997 = vmatpush1.msra.mxu0 0.0
    %1998 = vmatprep.subr.mxu0 0.0
    %1999 = vmatpush1.msra.mxu0 0.0
    %2000 = vmatprep.subr.mxu0 0.0
    %2001 = vmatpush1.msra.mxu0 0.0
    %2002 = vmatprep.subr.mxu0 0.0
    %2003 = vmatpush1.msra.mxu0 0.0
    %2004 = vmatprep.subr.mxu0 0.0
    %2005 = vmatpush1.msra.mxu0 0.0
    %2006 = vmatprep.subr.mxu0 0.0
    %2007 = vmatpush1.msra.mxu0 0.0
    %2008 = vmatprep.subr.mxu0 0.0
    %2009 = vmatpush1.msra.mxu0 0.0
    %2010 = vmatprep.subr.mxu0 0.0
    %2011 = vmatpush1.msra.mxu0 0.0
    %2012 = vmatprep.subr.mxu0 0.0
    %2013 = vmatpush1.msra.mxu0 0.0
    %2014 = vmatprep.subr.mxu0 0.0
    %2015 = vmatpush1.msra.mxu0 0.0
    %2016 = vmatprep.subr.mxu0 0.0
    %2017 = vmatpush1.msra.mxu0 0.0
    %2018 = vmatprep.subr.mxu0 0.0
    %2019 = vmatpush1.msra.mxu0 0.0
    %2020 = vmatprep.subr.mxu0 0.0
    %2021 = vmatpush1.msra.mxu0 0.0
    %2022 = vmatprep.subr.mxu0 0.0
    %2023 = vmatpush1.msra.mxu0 0.0
    %2024 = vmatprep.subr.mxu0 0.0
    %2025 = vmatpush1.msra.mxu0 0.0
    %2026 = vmatprep.subr.mxu0 0.0
    %2027 = vmatpush1.msra.mxu0 0.0
    %2028 = vmatprep.subr.mxu0 0.0
    %2029 = vmatpush1.msra.mxu0 0.0
    %2030 = vmatprep.mubr.f32.mxu0 0.0
    %2031 = vmatmul.mubr.f32.gmra.mrb[0].mxu0 %v1881
    %v2032 = vpop.f32.mrb[0].mxu0
    %v2033 = vadd.f32 0.0, %v2032
    %v2034 = vpop.f32.mrb[0].mxu0
    %v2035 = vadd.f32 0.0, %v2034
    %2036 = vdwg.mxu0
    %v2038 = vsel %vm276, %v1861, 0
    %v2041 = vsel %vm280, %v1857, 0
    %v2044 = vsel %vm280, %v1858, 0
    %v2047 = vsel %vm280, %v1859, 0
    %v2050 = vsel %vm280, %v1860, 0
    %2052 = vmatprep.subr.mxu0 %v2044
    %2053 = vmatpush1.msra.mxu0 %v2041
    %2054 = vmatprep.subr.mxu0 0.0
    %2055 = vmatpush1.msra.mxu0 0.0
    %2056 = vmatprep.subr.mxu0 0.0
    %2057 = vmatpush1.msra.mxu0 0.0
    %2058 = vmatprep.subr.mxu0 0.0
    %2059 = vmatpush1.msra.mxu0 0.0
    %2060 = vmatprep.subr.mxu0 0.0
    %2061 = vmatpush1.msra.mxu0 0.0
    %2062 = vmatprep.subr.mxu0 0.0
    %2063 = vmatpush1.msra.mxu0 0.0
    %2064 = vmatprep.subr.mxu0 0.0
    %2065 = vmatpush1.msra.mxu0 0.0
    %2066 = vmatprep.subr.mxu0 0.0
    %2067 = vmatpush1.msra.mxu0 0.0
    %2068 = vmatprep.subr.mxu0 0.0
    %2069 = vmatpush1.msra.mxu0 0.0
    %2070 = vmatprep.subr.mxu0 0.0
    %2071 = vmatpush1.msra.mxu0 0.0
    %2072 = vmatprep.subr.mxu0 0.0
    %2073 = vmatpush1.msra.mxu0 0.0
    %2074 = vmatprep.subr.mxu0 0.0
    %2075 = vmatpush1.msra.mxu0 0.0
    %2076 = vmatprep.subr.mxu0 0.0
    %2077 = vmatpush1.msra.mxu0 0.0
    %2078 = vmatprep.subr.mxu0 0.0
    %2079 = vmatpush1.msra.mxu0 0.0
    %2080 = vmatprep.subr.mxu0 0.0
    %2081 = vmatpush1.msra.mxu0 0.0
    %2082 = vmatprep.subr.mxu0 0.0
    %2083 = vmatpush1.msra.mxu0 0.0
    %2084 = vmatprep.subr.mxu0 0.0
    %2085 = vmatpush1.msra.mxu0 0.0
    %2086 = vmatprep.subr.mxu0 0.0
    %2087 = vmatpush1.msra.mxu0 0.0
    %2088 = vmatprep.subr.mxu0 0.0
    %2089 = vmatpush1.msra.mxu0 0.0
    %2090 = vmatprep.subr.mxu0 0.0
    %2091 = vmatpush1.msra.mxu0 0.0
    %2092 = vmatprep.subr.mxu0 0.0
    %2093 = vmatpush1.msra.mxu0 0.0
    %2094 = vmatprep.subr.mxu0 0.0
    %2095 = vmatpush1.msra.mxu0 0.0
    %2096 = vmatprep.subr.mxu0 0.0
    %2097 = vmatpush1.msra.mxu0 0.0
    %2098 = vmatprep.subr.mxu0 0.0
    %2099 = vmatpush1.msra.mxu0 0.0
    %2100 = vmatprep.subr.mxu0 0.0
    %2101 = vmatpush1.msra.mxu0 0.0
    %2102 = vmatprep.subr.mxu0 0.0
    %2103 = vmatpush1.msra.mxu0 0.0
    %2104 = vmatprep.subr.mxu0 0.0
    %2105 = vmatpush1.msra.mxu0 0.0
    %2106 = vmatprep.subr.mxu0 0.0
    %2107 = vmatpush1.msra.mxu0 0.0
    %2108 = vmatprep.subr.mxu0 0.0
    %2109 = vmatpush1.msra.mxu0 0.0
    %2110 = vmatprep.subr.mxu0 0.0
    %2111 = vmatpush1.msra.mxu0 0.0
    %2112 = vmatprep.subr.mxu0 0.0
    %2113 = vmatpush1.msra.mxu0 0.0
    %2114 = vmatprep.subr.mxu0 0.0
    %2115 = vmatpush1.msra.mxu0 0.0
    %2116 = vmatprep.mubr.f32.mxu0 0.0
    %2117 = vmatmul.mubr.f32.gmra.mrb[0].mxu0 %v2038
    %v2118 = vpop.f32.mrb[0].mxu0
    %v2119 = vadd.f32 %v1962, %v2118
    %v2120 = vpop.f32.mrb[0].mxu0
    %v2121 = vadd.f32 %v1964, %v2120
    %2122 = vdwg.mxu0
    %2123 = vmatprep.subr.mxu0 %v2050
    %2124 = vmatpush1.msra.mxu0 %v2047
    %2125 = vmatprep.subr.mxu0 0.0
    %2126 = vmatpush1.msra.mxu0 0.0
    %2127 = vmatprep.subr.mxu0 0.0
    %2128 = vmatpush1.msra.mxu0 0.0
    %2129 = vmatprep.subr.mxu0 0.0
    %2130 = vmatpush1.msra.mxu0 0.0
    %2131 = vmatprep.subr.mxu0 0.0
    %2132 = vmatpush1.msra.mxu0 0.0
    %2133 = vmatprep.subr.mxu0 0.0
    %2134 = vmatpush1.msra.mxu0 0.0
    %2135 = vmatprep.subr.mxu0 0.0
    %2136 = vmatpush1.msra.mxu0 0.0
    %2137 = vmatprep.subr.mxu0 0.0
    %2138 = vmatpush1.msra.mxu0 0.0
    %2139 = vmatprep.subr.mxu0 0.0
    %2140 = vmatpush1.msra.mxu0 0.0
    %2141 = vmatprep.subr.mxu0 0.0
    %2142 = vmatpush1.msra.mxu0 0.0
    %2143 = vmatprep.subr.mxu0 0.0
    %2144 = vmatpush1.msra.mxu0 0.0
    %2145 = vmatprep.subr.mxu0 0.0
    %2146 = vmatpush1.msra.mxu0 0.0
    %2147 = vmatprep.subr.mxu0 0.0
    %2148 = vmatpush1.msra.mxu0 0.0
    %2149 = vmatprep.subr.mxu0 0.0
    %2150 = vmatpush1.msra.mxu0 0.0
    %2151 = vmatprep.subr.mxu0 0.0
    %2152 = vmatpush1.msra.mxu0 0.0
    %2153 = vmatprep.subr.mxu0 0.0
    %2154 = vmatpush1.msra.mxu0 0.0
    %2155 = vmatprep.subr.mxu0 0.0
    %2156 = vmatpush1.msra.mxu0 0.0
    %2157 = vmatprep.subr.mxu0 0.0
    %2158 = vmatpush1.msra.mxu0 0.0
    %2159 = vmatprep.subr.mxu0 0.0
    %2160 = vmatpush1.msra.mxu0 0.0
    %2161 = vmatprep.subr.mxu0 0.0
    %2162 = vmatpush1.msra.mxu0 0.0
    %2163 = vmatprep.subr.mxu0 0.0
    %2164 = vmatpush1.msra.mxu0 0.0
    %2165 = vmatprep.subr.mxu0 0.0
    %2166 = vmatpush1.msra.mxu0 0.0
    %2167 = vmatprep.subr.mxu0 0.0
    %2168 = vmatpush1.msra.mxu0 0.0
    %2169 = vmatprep.subr.mxu0 0.0
    %2170 = vmatpush1.msra.mxu0 0.0
    %2171 = vmatprep.subr.mxu0 0.0
    %2172 = vmatpush1.msra.mxu0 0.0
    %2173 = vmatprep.subr.mxu0 0.0
    %2174 = vmatpush1.msra.mxu0 0.0
    %2175 = vmatprep.subr.mxu0 0.0
    %2176 = vmatpush1.msra.mxu0 0.0
    %2177 = vmatprep.subr.mxu0 0.0
    %2178 = vmatpush1.msra.mxu0 0.0
    %2179 = vmatprep.subr.mxu0 0.0
    %2180 = vmatpush1.msra.mxu0 0.0
    %2181 = vmatprep.subr.mxu0 0.0
    %2182 = vmatpush1.msra.mxu0 0.0
    %2183 = vmatprep.subr.mxu0 0.0
    %2184 = vmatpush1.msra.mxu0 0.0
    %2185 = vmatprep.subr.mxu0 0.0
    %2186 = vmatpush1.msra.mxu0 0.0
    %2187 = vmatprep.mubr.f32.mxu0 0.0
    %2188 = vmatmul.mubr.f32.gmra.mrb[0].mxu0 %v2038
    %v2189 = vpop.f32.mrb[0].mxu0
    %v2190 = vadd.f32 %v2033, %v2189
    %v2191 = vpop.f32.mrb[0].mxu0
    %v2192 = vadd.f32 %v2035, %v2191
    %2193 = vdwg.mxu0
    %2194 = vrot.lane.b32.xlu0 %v1841, 15
    %v2195 = vpop.permute.xlu0 %2194
    %2196 = vrot.lane.b32.xlu0 %v1842, 15
    %v2197 = vpop.permute.xlu0 %2196
    %2198 = vrot.lane.b32.xlu0 %v1843, 15
    %v2199 = vpop.permute.xlu0 %2198
    %2200 = vrot.lane.b32.xlu0 %v1844, 15
    %v2201 = vpop.permute.xlu0 %2200
    %v2202 = vsel %vm600, %v2199, %v2201
    %v2203 = vsel %vm600, %v2197, %v2199
    %v2204 = vsel %vm600, %v2195, %v2197
    %v2205 = vsel %vm600, %v2201, %v2195
    %v2206 = vsel %vm159, %v2205, 0.0
    %v2207 = vsel %vm160, %v2204, 0.0
    %v2208 = vsel %vm161, %v2203, 0.0
    %v2209 = vsel %vm162, %v2202, 0.0
    %s2210 = scalar_lea.vmem %s3, 8
    %v2211 = vld [vmem:[%s2210] sm:$0xf]
    %v2213 = vsel %vm276, %v2211, 0
    %v2216 = vsel %vm280, %v2206, 0
    %v2219 = vsel %vm280, %v2207, 0
    %v2222 = vsel %vm280, %v2208, 0
    %v2225 = vsel %vm280, %v2209, 0
    %2227 = vmatprep.subr.mxu0 %v2219
    %2228 = vmatpush1.msra.mxu0 %v2216
    %2229 = vmatprep.subr.mxu0 0.0
    %2230 = vmatpush1.msra.mxu0 0.0
    %2231 = vmatprep.subr.mxu0 0.0
    %2232 = vmatpush1.msra.mxu0 0.0
    %2233 = vmatprep.subr.mxu0 0.0
    %2234 = vmatpush1.msra.mxu0 0.0
    %2235 = vmatprep.subr.mxu0 0.0
    %2236 = vmatpush1.msra.mxu0 0.0
    %2237 = vmatprep.subr.mxu0 0.0
    %2238 = vmatpush1.msra.mxu0 0.0
    %2239 = vmatprep.subr.mxu0 0.0
    %2240 = vmatpush1.msra.mxu0 0.0
    %2241 = vmatprep.subr.mxu0 0.0
    %2242 = vmatpush1.msra.mxu0 0.0
    %2243 = vmatprep.subr.mxu0 0.0
    %2244 = vmatpush1.msra.mxu0 0.0
    %2245 = vmatprep.subr.mxu0 0.0
    %2246 = vmatpush1.msra.mxu0 0.0
    %2247 = vmatprep.subr.mxu0 0.0
    %2248 = vmatpush1.msra.mxu0 0.0
    %2249 = vmatprep.subr.mxu0 0.0
    %2250 = vmatpush1.msra.mxu0 0.0
    %2251 = vmatprep.subr.mxu0 0.0
    %2252 = vmatpush1.msra.mxu0 0.0
    %2253 = vmatprep.subr.mxu0 0.0
    %2254 = vmatpush1.msra.mxu0 0.0
    %2255 = vmatprep.subr.mxu0 0.0
    %2256 = vmatpush1.msra.mxu0 0.0
    %2257 = vmatprep.subr.mxu0 0.0
    %2258 = vmatpush1.msra.mxu0 0.0
    %2259 = vmatprep.subr.mxu0 0.0
    %2260 = vmatpush1.msra.mxu0 0.0
    %2261 = vmatprep.subr.mxu0 0.0
    %2262 = vmatpush1.msra.mxu0 0.0
    %2263 = vmatprep.subr.mxu0 0.0
    %2264 = vmatpush1.msra.mxu0 0.0
    %2265 = vmatprep.subr.mxu0 0.0
    %2266 = vmatpush1.msra.mxu0 0.0
    %2267 = vmatprep.subr.mxu0 0.0
    %2268 = vmatpush1.msra.mxu0 0.0
    %2269 = vmatprep.subr.mxu0 0.0
    %2270 = vmatpush1.msra.mxu0 0.0
    %2271 = vmatprep.subr.mxu0 0.0
    %2272 = vmatpush1.msra.mxu0 0.0
    %2273 = vmatprep.subr.mxu0 0.0
    %2274 = vmatpush1.msra.mxu0 0.0
    %2275 = vmatprep.subr.mxu0 0.0
    %2276 = vmatpush1.msra.mxu0 0.0
    %2277 = vmatprep.subr.mxu0 0.0
    %2278 = vmatpush1.msra.mxu0 0.0
    %2279 = vmatprep.subr.mxu0 0.0
    %2280 = vmatpush1.msra.mxu0 0.0
    %2281 = vmatprep.subr.mxu0 0.0
    %2282 = vmatpush1.msra.mxu0 0.0
    %2283 = vmatprep.subr.mxu0 0.0
    %2284 = vmatpush1.msra.mxu0 0.0
    %2285 = vmatprep.subr.mxu0 0.0
    %2286 = vmatpush1.msra.mxu0 0.0
    %2287 = vmatprep.subr.mxu0 0.0
    %2288 = vmatpush1.msra.mxu0 0.0
    %2289 = vmatprep.subr.mxu0 0.0
    %2290 = vmatpush1.msra.mxu0 0.0
    %2291 = vmatprep.mubr.f32.mxu0 0.0
    %2292 = vmatmul.mubr.f32.gmra.mrb[0].mxu0 %v2213
    %v2293 = vpop.f32.mrb[0].mxu0
    %v2294 = vadd.f32 0.0, %v2293
    %v2295 = vpop.f32.mrb[0].mxu0
    %v2296 = vadd.f32 0.0, %v2295
    %2297 = vdwg.mxu0
    %2298 = vmatprep.subr.mxu0 %v2225
    %2299 = vmatpush1.msra.mxu0 %v2222
    %2300 = vmatprep.subr.mxu0 0.0
    %2301 = vmatpush1.msra.mxu0 0.0
    %2302 = vmatprep.subr.mxu0 0.0
    %2303 = vmatpush1.msra.mxu0 0.0
    %2304 = vmatprep.subr.mxu0 0.0
    %2305 = vmatpush1.msra.mxu0 0.0
    %2306 = vmatprep.subr.mxu0 0.0
    %2307 = vmatpush1.msra.mxu0 0.0
    %2308 = vmatprep.subr.mxu0 0.0
    %2309 = vmatpush1.msra.mxu0 0.0
    %2310 = vmatprep.subr.mxu0 0.0
    %2311 = vmatpush1.msra.mxu0 0.0
    %2312 = vmatprep.subr.mxu0 0.0
    %2313 = vmatpush1.msra.mxu0 0.0
    %2314 = vmatprep.subr.mxu0 0.0
    %2315 = vmatpush1.msra.mxu0 0.0
    %2316 = vmatprep.subr.mxu0 0.0
    %2317 = vmatpush1.msra.mxu0 0.0
    %2318 = vmatprep.subr.mxu0 0.0
    %2319 = vmatpush1.msra.mxu0 0.0
    %2320 = vmatprep.subr.mxu0 0.0
    %2321 = vmatpush1.msra.mxu0 0.0
    %2322 = vmatprep.subr.mxu0 0.0
    %2323 = vmatpush1.msra.mxu0 0.0
    %2324 = vmatprep.subr.mxu0 0.0
    %2325 = vmatpush1.msra.mxu0 0.0
    %2326 = vmatprep.subr.mxu0 0.0
    %2327 = vmatpush1.msra.mxu0 0.0
    %2328 = vmatprep.subr.mxu0 0.0
    %2329 = vmatpush1.msra.mxu0 0.0
    %2330 = vmatprep.subr.mxu0 0.0
    %2331 = vmatpush1.msra.mxu0 0.0
    %2332 = vmatprep.subr.mxu0 0.0
    %2333 = vmatpush1.msra.mxu0 0.0
    %2334 = vmatprep.subr.mxu0 0.0
    %2335 = vmatpush1.msra.mxu0 0.0
    %2336 = vmatprep.subr.mxu0 0.0
    %2337 = vmatpush1.msra.mxu0 0.0
    %2338 = vmatprep.subr.mxu0 0.0
    %2339 = vmatpush1.msra.mxu0 0.0
    %2340 = vmatprep.subr.mxu0 0.0
    %2341 = vmatpush1.msra.mxu0 0.0
    %2342 = vmatprep.subr.mxu0 0.0
    %2343 = vmatpush1.msra.mxu0 0.0
    %2344 = vmatprep.subr.mxu0 0.0
    %2345 = vmatpush1.msra.mxu0 0.0
    %2346 = vmatprep.subr.mxu0 0.0
    %2347 = vmatpush1.msra.mxu0 0.0
    %2348 = vmatprep.subr.mxu0 0.0
    %2349 = vmatpush1.msra.mxu0 0.0
    %2350 = vmatprep.subr.mxu0 0.0
    %2351 = vmatpush1.msra.mxu0 0.0
    %2352 = vmatprep.subr.mxu0 0.0
    %2353 = vmatpush1.msra.mxu0 0.0
    %2354 = vmatprep.subr.mxu0 0.0
    %2355 = vmatpush1.msra.mxu0 0.0
    %2356 = vmatprep.subr.mxu0 0.0
    %2357 = vmatpush1.msra.mxu0 0.0
    %2358 = vmatprep.subr.mxu0 0.0
    %2359 = vmatpush1.msra.mxu0 0.0
    %2360 = vmatprep.subr.mxu0 0.0
    %2361 = vmatpush1.msra.mxu0 0.0
    %2362 = vmatprep.mubr.f32.mxu0 0.0
    %2363 = vmatmul.mubr.f32.gmra.mrb[0].mxu0 %v2213
    %v2364 = vpop.f32.mrb[0].mxu0
    %v2365 = vadd.f32 0.0, %v2364
    %v2366 = vpop.f32.mrb[0].mxu0
    %v2367 = vadd.f32 0.0, %v2366
    %2368 = vdwg.mxu0
    %v2369 = vadd.f32 %v2119, %v2294
    %v2370 = vadd.f32 %v2121, %v2296
    %v2371 = vadd.f32 %v2190, %v2365
    %v2372 = vadd.f32 %v2192, %v2367
    %2373 = vrot.lane.b32.xlu0 %v1841, 1
    %v2374 = vpop.permute.xlu0 %2373
    %2375 = vrot.lane.b32.xlu0 %v1842, 1
    %v2376 = vpop.permute.xlu0 %2375
    %2377 = vrot.lane.b32.xlu0 %v1843, 1
    %v2378 = vpop.permute.xlu0 %2377
    %2379 = vrot.lane.b32.xlu0 %v1844, 1
    %v2380 = vpop.permute.xlu0 %2379
    %v2381 = vsel %vm780, %v2378, %v2380
    %v2382 = vsel %vm780, %v2376, %v2378
    %v2383 = vsel %vm780, %v2374, %v2376
    %v2384 = vsel %vm780, %v2380, %v2374
    %v2385 = vsel %vm179, %v2384, 0.0
    %v2386 = vsel %vm180, %v2383, 0.0
    %v2387 = vsel %vm181, %v2382, 0.0
    %v2388 = vsel %vm182, %v2381, 0.0
    %s2389 = scalar_lea.vmem %s3, 12
    %v2390 = vld [vmem:[%s2389] sm:$0xf]
    %v2392 = vsel %vm276, %v2390, 0
    %v2395 = vsel %vm280, %v2385, 0
    %v2398 = vsel %vm280, %v2386, 0
    %v2401 = vsel %vm280, %v2387, 0
    %v2404 = vsel %vm280, %v2388, 0
    %2406 = vmatprep.subr.mxu0 %v2398
    %2407 = vmatpush1.msra.mxu0 %v2395
    %2408 = vmatprep.subr.mxu0 0.0
    %2409 = vmatpush1.msra.mxu0 0.0
    %2410 = vmatprep.subr.mxu0 0.0
    %2411 = vmatpush1.msra.mxu0 0.0
    %2412 = vmatprep.subr.mxu0 0.0
    %2413 = vmatpush1.msra.mxu0 0.0
    %2414 = vmatprep.subr.mxu0 0.0
    %2415 = vmatpush1.msra.mxu0 0.0
    %2416 = vmatprep.subr.mxu0 0.0
    %2417 = vmatpush1.msra.mxu0 0.0
    %2418 = vmatprep.subr.mxu0 0.0
    %2419 = vmatpush1.msra.mxu0 0.0
    %2420 = vmatprep.subr.mxu0 0.0
    %2421 = vmatpush1.msra.mxu0 0.0
    %2422 = vmatprep.subr.mxu0 0.0
    %2423 = vmatpush1.msra.mxu0 0.0
    %2424 = vmatprep.subr.mxu0 0.0
    %2425 = vmatpush1.msra.mxu0 0.0
    %2426 = vmatprep.subr.mxu0 0.0
    %2427 = vmatpush1.msra.mxu0 0.0
    %2428 = vmatprep.subr.mxu0 0.0
    %2429 = vmatpush1.msra.mxu0 0.0
    %2430 = vmatprep.subr.mxu0 0.0
    %2431 = vmatpush1.msra.mxu0 0.0
    %2432 = vmatprep.subr.mxu0 0.0
    %2433 = vmatpush1.msra.mxu0 0.0
    %2434 = vmatprep.subr.mxu0 0.0
    %2435 = vmatpush1.msra.mxu0 0.0
    %2436 = vmatprep.subr.mxu0 0.0
    %2437 = vmatpush1.msra.mxu0 0.0
    %2438 = vmatprep.subr.mxu0 0.0
    %2439 = vmatpush1.msra.mxu0 0.0
    %2440 = vmatprep.subr.mxu0 0.0
    %2441 = vmatpush1.msra.mxu0 0.0
    %2442 = vmatprep.subr.mxu0 0.0
    %2443 = vmatpush1.msra.mxu0 0.0
    %2444 = vmatprep.subr.mxu0 0.0
    %2445 = vmatpush1.msra.mxu0 0.0
    %2446 = vmatprep.subr.mxu0 0.0
    %2447 = vmatpush1.msra.mxu0 0.0
    %2448 = vmatprep.subr.mxu0 0.0
    %2449 = vmatpush1.msra.mxu0 0.0
    %2450 = vmatprep.subr.mxu0 0.0
    %2451 = vmatpush1.msra.mxu0 0.0
    %2452 = vmatprep.subr.mxu0 0.0
    %2453 = vmatpush1.msra.mxu0 0.0
    %2454 = vmatprep.subr.mxu0 0.0
    %2455 = vmatpush1.msra.mxu0 0.0
    %2456 = vmatprep.subr.mxu0 0.0
    %2457 = vmatpush1.msra.mxu0 0.0
    %2458 = vmatprep.subr.mxu0 0.0
    %2459 = vmatpush1.msra.mxu0 0.0
    %2460 = vmatprep.subr.mxu0 0.0
    %2461 = vmatpush1.msra.mxu0 0.0
    %2462 = vmatprep.subr.mxu0 0.0
    %2463 = vmatpush1.msra.mxu0 0.0
    %2464 = vmatprep.subr.mxu0 0.0
    %2465 = vmatpush1.msra.mxu0 0.0
    %2466 = vmatprep.subr.mxu0 0.0
    %2467 = vmatpush1.msra.mxu0 0.0
    %2468 = vmatprep.subr.mxu0 0.0
    %2469 = vmatpush1.msra.mxu0 0.0
    %2470 = vmatprep.mubr.f32.mxu0 0.0
    %2471 = vmatmul.mubr.f32.gmra.mrb[0].mxu0 %v2392
    %v2472 = vpop.f32.mrb[0].mxu0
    %v2473 = vadd.f32 0.0, %v2472
    %v2474 = vpop.f32.mrb[0].mxu0
    %v2475 = vadd.f32 0.0, %v2474
    %2476 = vdwg.mxu0
    %2477 = vmatprep.subr.mxu0 %v2404
    %2478 = vmatpush1.msra.mxu0 %v2401
    %2479 = vmatprep.subr.mxu0 0.0
    %2480 = vmatpush1.msra.mxu0 0.0
    %2481 = vmatprep.subr.mxu0 0.0
    %2482 = vmatpush1.msra.mxu0 0.0
    %2483 = vmatprep.subr.mxu0 0.0
    %2484 = vmatpush1.msra.mxu0 0.0
    %2485 = vmatprep.subr.mxu0 0.0
    %2486 = vmatpush1.msra.mxu0 0.0
    %2487 = vmatprep.subr.mxu0 0.0
    %2488 = vmatpush1.msra.mxu0 0.0
    %2489 = vmatprep.subr.mxu0 0.0
    %2490 = vmatpush1.msra.mxu0 0.0
    %2491 = vmatprep.subr.mxu0 0.0
    %2492 = vmatpush1.msra.mxu0 0.0
    %2493 = vmatprep.subr.mxu0 0.0
    %2494 = vmatpush1.msra.mxu0 0.0
    %2495 = vmatprep.subr.mxu0 0.0
    %2496 = vmatpush1.msra.mxu0 0.0
    %2497 = vmatprep.subr.mxu0 0.0
    %2498 = vmatpush1.msra.mxu0 0.0
    %2499 = vmatprep.subr.mxu0 0.0
    %2500 = vmatpush1.msra.mxu0 0.0
    %2501 = vmatprep.subr.mxu0 0.0
    %2502 = vmatpush1.msra.mxu0 0.0
    %2503 = vmatprep.subr.mxu0 0.0
    %2504 = vmatpush1.msra.mxu0 0.0
    %2505 = vmatprep.subr.mxu0 0.0
    %2506 = vmatpush1.msra.mxu0 0.0
    %2507 = vmatprep.subr.mxu0 0.0
    %2508 = vmatpush1.msra.mxu0 0.0
    %2509 = vmatprep.subr.mxu0 0.0
    %2510 = vmatpush1.msra.mxu0 0.0
    %2511 = vmatprep.subr.mxu0 0.0
    %2512 = vmatpush1.msra.mxu0 0.0
    %2513 = vmatprep.subr.mxu0 0.0
    %2514 = vmatpush1.msra.mxu0 0.0
    %2515 = vmatprep.subr.mxu0 0.0
    %2516 = vmatpush1.msra.mxu0 0.0
    %2517 = vmatprep.subr.mxu0 0.0
    %2518 = vmatpush1.msra.mxu0 0.0
    %2519 = vmatprep.subr.mxu0 0.0
    %2520 = vmatpush1.msra.mxu0 0.0
    %2521 = vmatprep.subr.mxu0 0.0
    %2522 = vmatpush1.msra.mxu0 0.0
    %2523 = vmatprep.subr.mxu0 0.0
    %2524 = vmatpush1.msra.mxu0 0.0
    %2525 = vmatprep.subr.mxu0 0.0
    %2526 = vmatpush1.msra.mxu0 0.0
    %2527 = vmatprep.subr.mxu0 0.0
    %2528 = vmatpush1.msra.mxu0 0.0
    %2529 = vmatprep.subr.mxu0 0.0
    %2530 = vmatpush1.msra.mxu0 0.0
    %2531 = vmatprep.subr.mxu0 0.0
    %2532 = vmatpush1.msra.mxu0 0.0
    %2533 = vmatprep.subr.mxu0 0.0
    %2534 = vmatpush1.msra.mxu0 0.0
    %2535 = vmatprep.subr.mxu0 0.0
    %2536 = vmatpush1.msra.mxu0 0.0
    %2537 = vmatprep.subr.mxu0 0.0
    %2538 = vmatpush1.msra.mxu0 0.0
    %2539 = vmatprep.subr.mxu0 0.0
    %2540 = vmatpush1.msra.mxu0 0.0
    %2541 = vmatprep.mubr.f32.mxu0 0.0
    %2542 = vmatmul.mubr.f32.gmra.mrb[0].mxu0 %v2392
    %v2543 = vpop.f32.mrb[0].mxu0
    %v2544 = vadd.f32 0.0, %v2543
    %v2545 = vpop.f32.mrb[0].mxu0
    %v2546 = vadd.f32 0.0, %v2545
    %2547 = vdwg.mxu0
    %v2548 = vadd.f32 %v2369, %v2473
    %v2549 = vadd.f32 %v2370, %v2475
    %v2550 = vadd.f32 %v2371, %v2544
    %v2551 = vadd.f32 %v2372, %v2546
    %s2552 = scalar_lea.vmem %s3, 16
    %v2553 = vld [vmem:[%s2552] sm:$0xf]
    %v2555 = vsel %vm276, %v2553, 0
    %v2558 = vsel %vm280, %v1841, 0
    %v2561 = vsel %vm280, %v1842, 0
    %v2564 = vsel %vm280, %v1843, 0
    %v2567 = vsel %vm280, %v1844, 0
    %2569 = vmatprep.subr.mxu0 %v2561
    %2570 = vmatpush1.msra.mxu0 %v2558
    %2571 = vmatprep.subr.mxu0 0.0
    %2572 = vmatpush1.msra.mxu0 0.0
    %2573 = vmatprep.subr.mxu0 0.0
    %2574 = vmatpush1.msra.mxu0 0.0
    %2575 = vmatprep.subr.mxu0 0.0
    %2576 = vmatpush1.msra.mxu0 0.0
    %2577 = vmatprep.subr.mxu0 0.0
    %2578 = vmatpush1.msra.mxu0 0.0
    %2579 = vmatprep.subr.mxu0 0.0
    %2580 = vmatpush1.msra.mxu0 0.0
    %2581 = vmatprep.subr.mxu0 0.0
    %2582 = vmatpush1.msra.mxu0 0.0
    %2583 = vmatprep.subr.mxu0 0.0
    %2584 = vmatpush1.msra.mxu0 0.0
    %2585 = vmatprep.subr.mxu0 0.0
    %2586 = vmatpush1.msra.mxu0 0.0
    %2587 = vmatprep.subr.mxu0 0.0
    %2588 = vmatpush1.msra.mxu0 0.0
    %2589 = vmatprep.subr.mxu0 0.0
    %2590 = vmatpush1.msra.mxu0 0.0
    %2591 = vmatprep.subr.mxu0 0.0
    %2592 = vmatpush1.msra.mxu0 0.0
    %2593 = vmatprep.subr.mxu0 0.0
    %2594 = vmatpush1.msra.mxu0 0.0
    %2595 = vmatprep.subr.mxu0 0.0
    %2596 = vmatpush1.msra.mxu0 0.0
    %2597 = vmatprep.subr.mxu0 0.0
    %2598 = vmatpush1.msra.mxu0 0.0
    %2599 = vmatprep.subr.mxu0 0.0
    %2600 = vmatpush1.msra.mxu0 0.0
    %2601 = vmatprep.subr.mxu0 0.0
    %2602 = vmatpush1.msra.mxu0 0.0
    %2603 = vmatprep.subr.mxu0 0.0
    %2604 = vmatpush1.msra.mxu0 0.0
    %2605 = vmatprep.subr.mxu0 0.0
    %2606 = vmatpush1.msra.mxu0 0.0
    %2607 = vmatprep.subr.mxu0 0.0
    %2608 = vmatpush1.msra.mxu0 0.0
    %2609 = vmatprep.subr.mxu0 0.0
    %2610 = vmatpush1.msra.mxu0 0.0
    %2611 = vmatprep.subr.mxu0 0.0
    %2612 = vmatpush1.msra.mxu0 0.0
    %2613 = vmatprep.subr.mxu0 0.0
    %2614 = vmatpush1.msra.mxu0 0.0
    %2615 = vmatprep.subr.mxu0 0.0
    %2616 = vmatpush1.msra.mxu0 0.0
    %2617 = vmatprep.subr.mxu0 0.0
    %2618 = vmatpush1.msra.mxu0 0.0
    %2619 = vmatprep.subr.mxu0 0.0
    %2620 = vmatpush1.msra.mxu0 0.0
    %2621 = vmatprep.subr.mxu0 0.0
    %2622 = vmatpush1.msra.mxu0 0.0
    %2623 = vmatprep.subr.mxu0 0.0
    %2624 = vmatpush1.msra.mxu0 0.0
    %2625 = vmatprep.subr.mxu0 0.0
    %2626 = vmatpush1.msra.mxu0 0.0
    %2627 = vmatprep.subr.mxu0 0.0
    %2628 = vmatpush1.msra.mxu0 0.0
    %2629 = vmatprep.subr.mxu0 0.0
    %2630 = vmatpush1.msra.mxu0 0.0
    %2631 = vmatprep.subr.mxu0 0.0
    %2632 = vmatpush1.msra.mxu0 0.0
    %2633 = vmatprep.mubr.f32.mxu0 0.0
    %2634 = vmatmul.mubr.f32.gmra.mrb[0].mxu0 %v2555
    %v2635 = vpop.f32.mrb[0].mxu0
    %v2636 = vadd.f32 0.0, %v2635
    %v2637 = vpop.f32.mrb[0].mxu0
    %v2638 = vadd.f32 0.0, %v2637
    %2639 = vdwg.mxu0
    %2640 = vmatprep.subr.mxu0 %v2567
    %2641 = vmatpush1.msra.mxu0 %v2564
    %2642 = vmatprep.subr.mxu0 0.0
    %2643 = vmatpush1.msra.mxu0 0.0
    %2644 = vmatprep.subr.mxu0 0.0
    %2645 = vmatpush1.msra.mxu0 0.0
    %2646 = vmatprep.subr.mxu0 0.0
    %2647 = vmatpush1.msra.mxu0 0.0
    %2648 = vmatprep.subr.mxu0 0.0
    %2649 = vmatpush1.msra.mxu0 0.0
    %2650 = vmatprep.subr.mxu0 0.0
    %2651 = vmatpush1.msra.mxu0 0.0
    %2652 = vmatprep.subr.mxu0 0.0
    %2653 = vmatpush1.msra.mxu0 0.0
    %2654 = vmatprep.subr.mxu0 0.0
    %2655 = vmatpush1.msra.mxu0 0.0
    %2656 = vmatprep.subr.mxu0 0.0
    %2657 = vmatpush1.msra.mxu0 0.0
    %2658 = vmatprep.subr.mxu0 0.0
    %2659 = vmatpush1.msra.mxu0 0.0
    %2660 = vmatprep.subr.mxu0 0.0
    %2661 = vmatpush1.msra.mxu0 0.0
    %2662 = vmatprep.subr.mxu0 0.0
    %2663 = vmatpush1.msra.mxu0 0.0
    %2664 = vmatprep.subr.mxu0 0.0
    %2665 = vmatpush1.msra.mxu0 0.0
    %2666 = vmatprep.subr.mxu0 0.0
    %2667 = vmatpush1.msra.mxu0 0.0
    %2668 = vmatprep.subr.mxu0 0.0
    %2669 = vmatpush1.msra.mxu0 0.0
    %2670 = vmatprep.subr.mxu0 0.0
    %2671 = vmatpush1.msra.mxu0 0.0
    %2672 = vmatprep.subr.mxu0 0.0
    %2673 = vmatpush1.msra.mxu0 0.0
    %2674 = vmatprep.subr.mxu0 0.0
    %2675 = vmatpush1.msra.mxu0 0.0
    %2676 = vmatprep.subr.mxu0 0.0
    %2677 = vmatpush1.msra.mxu0 0.0
    %2678 = vmatprep.subr.mxu0 0.0
    %2679 = vmatpush1.msra.mxu0 0.0
    %2680 = vmatprep.subr.mxu0 0.0
    %2681 = vmatpush1.msra.mxu0 0.0
    %2682 = vmatprep.subr.mxu0 0.0
    %2683 = vmatpush1.msra.mxu0 0.0
    %2684 = vmatprep.subr.mxu0 0.0
    %2685 = vmatpush1.msra.mxu0 0.0
    %2686 = vmatprep.subr.mxu0 0.0
    %2687 = vmatpush1.msra.mxu0 0.0
    %2688 = vmatprep.subr.mxu0 0.0
    %2689 = vmatpush1.msra.mxu0 0.0
    %2690 = vmatprep.subr.mxu0 0.0
    %2691 = vmatpush1.msra.mxu0 0.0
    %2692 = vmatprep.subr.mxu0 0.0
    %2693 = vmatpush1.msra.mxu0 0.0
    %2694 = vmatprep.subr.mxu0 0.0
    %2695 = vmatpush1.msra.mxu0 0.0
    %2696 = vmatprep.subr.mxu0 0.0
    %2697 = vmatpush1.msra.mxu0 0.0
    %2698 = vmatprep.subr.mxu0 0.0
    %2699 = vmatpush1.msra.mxu0 0.0
    %2700 = vmatprep.subr.mxu0 0.0
    %2701 = vmatpush1.msra.mxu0 0.0
    %2702 = vmatprep.subr.mxu0 0.0
    %2703 = vmatpush1.msra.mxu0 0.0
    %2704 = vmatprep.mubr.f32.mxu0 0.0
    %2705 = vmatmul.mubr.f32.gmra.mrb[0].mxu0 %v2555
    %v2706 = vpop.f32.mrb[0].mxu0
    %v2707 = vadd.f32 0.0, %v2706
    %v2708 = vpop.f32.mrb[0].mxu0
    %v2709 = vadd.f32 0.0, %v2708
    %2710 = vdwg.mxu0
    %v2711 = vadd.f32 %v2548, %v2636
    %v2712 = vadd.f32 %v2549, %v2638
    %v2713 = vadd.f32 %v2550, %v2707
    %v2714 = vadd.f32 %v2551, %v2709
    %2715 = vrot.lane.b32.xlu0 %v1841, 127
    %v2716 = vpop.permute.xlu0 %2715
    %2717 = vrot.lane.b32.xlu0 %v1842, 127
    %v2718 = vpop.permute.xlu0 %2717
    %2719 = vrot.lane.b32.xlu0 %v1843, 127
    %v2720 = vpop.permute.xlu0 %2719
    %2721 = vrot.lane.b32.xlu0 %v1844, 127
    %v2722 = vpop.permute.xlu0 %2721
    %v2723 = vsel %vm1119, %v2720, %v2722
    %v2724 = vsel %vm1119, %v2718, %v2720
    %v2725 = vsel %vm1119, %v2716, %v2718
    %v2726 = vsel %vm1119, %v2722, %v2716
    %v2727 = vsel %vm187, %v2725, 0.0
    %v2728 = vsel %vm188, %v2724, 0.0
    %v2729 = vsel %vm189, %v2723, 0.0
    %v2730 = vsel %vm190, %v2726, 0.0
    %s2731 = scalar_lea.vmem %s3, 20
    %v2732 = vld [vmem:[%s2731] sm:$0xf]
    %v2734 = vsel %vm276, %v2732, 0
    %v2737 = vsel %vm280, %v2727, 0
    %v2740 = vsel %vm280, %v2728, 0
    %v2743 = vsel %vm280, %v2729, 0
    %v2746 = vsel %vm280, %v2730, 0
    %2748 = vmatprep.subr.mxu0 %v2740
    %2749 = vmatpush1.msra.mxu0 %v2737
    %2750 = vmatprep.subr.mxu0 0.0
    %2751 = vmatpush1.msra.mxu0 0.0
    %2752 = vmatprep.subr.mxu0 0.0
    %2753 = vmatpush1.msra.mxu0 0.0
    %2754 = vmatprep.subr.mxu0 0.0
    %2755 = vmatpush1.msra.mxu0 0.0
    %2756 = vmatprep.subr.mxu0 0.0
    %2757 = vmatpush1.msra.mxu0 0.0
    %2758 = vmatprep.subr.mxu0 0.0
    %2759 = vmatpush1.msra.mxu0 0.0
    %2760 = vmatprep.subr.mxu0 0.0
    %2761 = vmatpush1.msra.mxu0 0.0
    %2762 = vmatprep.subr.mxu0 0.0
    %2763 = vmatpush1.msra.mxu0 0.0
    %2764 = vmatprep.subr.mxu0 0.0
    %2765 = vmatpush1.msra.mxu0 0.0
    %2766 = vmatprep.subr.mxu0 0.0
    %2767 = vmatpush1.msra.mxu0 0.0
    %2768 = vmatprep.subr.mxu0 0.0
    %2769 = vmatpush1.msra.mxu0 0.0
    %2770 = vmatprep.subr.mxu0 0.0
    %2771 = vmatpush1.msra.mxu0 0.0
    %2772 = vmatprep.subr.mxu0 0.0
    %2773 = vmatpush1.msra.mxu0 0.0
    %2774 = vmatprep.subr.mxu0 0.0
    %2775 = vmatpush1.msra.mxu0 0.0
    %2776 = vmatprep.subr.mxu0 0.0
    %2777 = vmatpush1.msra.mxu0 0.0
    %2778 = vmatprep.subr.mxu0 0.0
    %2779 = vmatpush1.msra.mxu0 0.0
    %2780 = vmatprep.subr.mxu0 0.0
    %2781 = vmatpush1.msra.mxu0 0.0
    %2782 = vmatprep.subr.mxu0 0.0
    %2783 = vmatpush1.msra.mxu0 0.0
    %2784 = vmatprep.subr.mxu0 0.0
    %2785 = vmatpush1.msra.mxu0 0.0
    %2786 = vmatprep.subr.mxu0 0.0
    %2787 = vmatpush1.msra.mxu0 0.0
    %2788 = vmatprep.subr.mxu0 0.0
    %2789 = vmatpush1.msra.mxu0 0.0
    %2790 = vmatprep.subr.mxu0 0.0
    %2791 = vmatpush1.msra.mxu0 0.0
    %2792 = vmatprep.subr.mxu0 0.0
    %2793 = vmatpush1.msra.mxu0 0.0
    %2794 = vmatprep.subr.mxu0 0.0
    %2795 = vmatpush1.msra.mxu0 0.0
    %2796 = vmatprep.subr.mxu0 0.0
    %2797 = vmatpush1.msra.mxu0 0.0
    %2798 = vmatprep.subr.mxu0 0.0
    %2799 = vmatpush1.msra.mxu0 0.0
    %2800 = vmatprep.subr.mxu0 0.0
    %2801 = vmatpush1.msra.mxu0 0.0
    %2802 = vmatprep.subr.mxu0 0.0
    %2803 = vmatpush1.msra.mxu0 0.0
    %2804 = vmatprep.subr.mxu0 0.0
    %2805 = vmatpush1.msra.mxu0 0.0
    %2806 = vmatprep.subr.mxu0 0.0
    %2807 = vmatpush1.msra.mxu0 0.0
    %2808 = vmatprep.subr.mxu0 0.0
    %2809 = vmatpush1.msra.mxu0 0.0
    %2810 = vmatprep.subr.mxu0 0.0
    %2811 = vmatpush1.msra.mxu0 0.0
    %2812 = vmatprep.mubr.f32.mxu0 0.0
    %2813 = vmatmul.mubr.f32.gmra.mrb[0].mxu0 %v2734
    %v2814 = vpop.f32.mrb[0].mxu0
    %v2815 = vadd.f32 0.0, %v2814
    %v2816 = vpop.f32.mrb[0].mxu0
    %v2817 = vadd.f32 0.0, %v2816
    %2818 = vdwg.mxu0
    %2819 = vmatprep.subr.mxu0 %v2746
    %2820 = vmatpush1.msra.mxu0 %v2743
    %2821 = vmatprep.subr.mxu0 0.0
    %2822 = vmatpush1.msra.mxu0 0.0
    %2823 = vmatprep.subr.mxu0 0.0
    %2824 = vmatpush1.msra.mxu0 0.0
    %2825 = vmatprep.subr.mxu0 0.0
    %2826 = vmatpush1.msra.mxu0 0.0
    %2827 = vmatprep.subr.mxu0 0.0
    %2828 = vmatpush1.msra.mxu0 0.0
    %2829 = vmatprep.subr.mxu0 0.0
    %2830 = vmatpush1.msra.mxu0 0.0
    %2831 = vmatprep.subr.mxu0 0.0
    %2832 = vmatpush1.msra.mxu0 0.0
    %2833 = vmatprep.subr.mxu0 0.0
    %2834 = vmatpush1.msra.mxu0 0.0
    %2835 = vmatprep.subr.mxu0 0.0
    %2836 = vmatpush1.msra.mxu0 0.0
    %2837 = vmatprep.subr.mxu0 0.0
    %2838 = vmatpush1.msra.mxu0 0.0
    %2839 = vmatprep.subr.mxu0 0.0
    %2840 = vmatpush1.msra.mxu0 0.0
    %2841 = vmatprep.subr.mxu0 0.0
    %2842 = vmatpush1.msra.mxu0 0.0
    %2843 = vmatprep.subr.mxu0 0.0
    %2844 = vmatpush1.msra.mxu0 0.0
    %2845 = vmatprep.subr.mxu0 0.0
    %2846 = vmatpush1.msra.mxu0 0.0
    %2847 = vmatprep.subr.mxu0 0.0
    %2848 = vmatpush1.msra.mxu0 0.0
    %2849 = vmatprep.subr.mxu0 0.0
    %2850 = vmatpush1.msra.mxu0 0.0
    %2851 = vmatprep.subr.mxu0 0.0
    %2852 = vmatpush1.msra.mxu0 0.0
    %2853 = vmatprep.subr.mxu0 0.0
    %2854 = vmatpush1.msra.mxu0 0.0
    %2855 = vmatprep.subr.mxu0 0.0
    %2856 = vmatpush1.msra.mxu0 0.0
    %2857 = vmatprep.subr.mxu0 0.0
    %2858 = vmatpush1.msra.mxu0 0.0
    %2859 = vmatprep.subr.mxu0 0.0
    %2860 = vmatpush1.msra.mxu0 0.0
    %2861 = vmatprep.subr.mxu0 0.0
    %2862 = vmatpush1.msra.mxu0 0.0
    %2863 = vmatprep.subr.mxu0 0.0
    %2864 = vmatpush1.msra.mxu0 0.0
    %2865 = vmatprep.subr.mxu0 0.0
    %2866 = vmatpush1.msra.mxu0 0.0
    %2867 = vmatprep.subr.mxu0 0.0
    %2868 = vmatpush1.msra.mxu0 0.0
    %2869 = vmatprep.subr.mxu0 0.0
    %2870 = vmatpush1.msra.mxu0 0.0
    %2871 = vmatprep.subr.mxu0 0.0
    %2872 = vmatpush1.msra.mxu0 0.0
    %2873 = vmatprep.subr.mxu0 0.0
    %2874 = vmatpush1.msra.mxu0 0.0
    %2875 = vmatprep.subr.mxu0 0.0
    %2876 = vmatpush1.msra.mxu0 0.0
    %2877 = vmatprep.subr.mxu0 0.0
    %2878 = vmatpush1.msra.mxu0 0.0
    %2879 = vmatprep.subr.mxu0 0.0
    %2880 = vmatpush1.msra.mxu0 0.0
    %2881 = vmatprep.subr.mxu0 0.0
    %2882 = vmatpush1.msra.mxu0 0.0
    %2883 = vmatprep.mubr.f32.mxu0 0.0
    %2884 = vmatmul.mubr.f32.gmra.mrb[0].mxu0 %v2734
    %v2885 = vpop.f32.mrb[0].mxu0
    %v2886 = vadd.f32 0.0, %v2885
    %v2887 = vpop.f32.mrb[0].mxu0
    %v2888 = vadd.f32 0.0, %v2887
    %2889 = vdwg.mxu0
    %v2890 = vadd.f32 %v2711, %v2815
    %v2891 = vadd.f32 %v2712, %v2817
    %v2892 = vadd.f32 %v2713, %v2886
    %v2893 = vadd.f32 %v2714, %v2888
    %2894 = vrot.lane.b32.xlu0 %v1841, 113
    %v2895 = vpop.permute.xlu0 %2894
    %2896 = vrot.lane.b32.xlu0 %v1842, 113
    %v2897 = vpop.permute.xlu0 %2896
    %2898 = vrot.lane.b32.xlu0 %v1843, 113
    %v2899 = vpop.permute.xlu0 %2898
    %2900 = vrot.lane.b32.xlu0 %v1844, 113
    %v2901 = vpop.permute.xlu0 %2900
    %v2902 = vsel %vm1299, %v2899, %v2901
    %v2903 = vsel %vm1299, %v2897, %v2899
    %v2904 = vsel %vm1299, %v2895, %v2897
    %v2905 = vsel %vm1299, %v2901, %v2895
    %v2906 = vsel %vm211, %v2904, 0.0
    %v2907 = vsel %vm212, %v2903, 0.0
    %v2908 = vsel %vm213, %v2902, 0.0
    %v2909 = vsel %vm214, %v2905, 0.0
    %s2910 = scalar_lea.vmem %s3, 24
    %v2911 = vld [vmem:[%s2910] sm:$0xf]
    %v2913 = vsel %vm276, %v2911, 0
    %v2916 = vsel %vm280, %v2906, 0
    %v2919 = vsel %vm280, %v2907, 0
    %v2922 = vsel %vm280, %v2908, 0
    %v2925 = vsel %vm280, %v2909, 0
    %2927 = vmatprep.subr.mxu0 %v2919
    %2928 = vmatpush1.msra.mxu0 %v2916
    %2929 = vmatprep.subr.mxu0 0.0
    %2930 = vmatpush1.msra.mxu0 0.0
    %2931 = vmatprep.subr.mxu0 0.0
    %2932 = vmatpush1.msra.mxu0 0.0
    %2933 = vmatprep.subr.mxu0 0.0
    %2934 = vmatpush1.msra.mxu0 0.0
    %2935 = vmatprep.subr.mxu0 0.0
    %2936 = vmatpush1.msra.mxu0 0.0
    %2937 = vmatprep.subr.mxu0 0.0
    %2938 = vmatpush1.msra.mxu0 0.0
    %2939 = vmatprep.subr.mxu0 0.0
    %2940 = vmatpush1.msra.mxu0 0.0
    %2941 = vmatprep.subr.mxu0 0.0
    %2942 = vmatpush1.msra.mxu0 0.0
    %2943 = vmatprep.subr.mxu0 0.0
    %2944 = vmatpush1.msra.mxu0 0.0
    %2945 = vmatprep.subr.mxu0 0.0
    %2946 = vmatpush1.msra.mxu0 0.0
    %2947 = vmatprep.subr.mxu0 0.0
    %2948 = vmatpush1.msra.mxu0 0.0
    %2949 = vmatprep.subr.mxu0 0.0
    %2950 = vmatpush1.msra.mxu0 0.0
    %2951 = vmatprep.subr.mxu0 0.0
    %2952 = vmatpush1.msra.mxu0 0.0
    %2953 = vmatprep.subr.mxu0 0.0
    %2954 = vmatpush1.msra.mxu0 0.0
    %2955 = vmatprep.subr.mxu0 0.0
    %2956 = vmatpush1.msra.mxu0 0.0
    %2957 = vmatprep.subr.mxu0 0.0
    %2958 = vmatpush1.msra.mxu0 0.0
    %2959 = vmatprep.subr.mxu0 0.0
    %2960 = vmatpush1.msra.mxu0 0.0
    %2961 = vmatprep.subr.mxu0 0.0
    %2962 = vmatpush1.msra.mxu0 0.0
    %2963 = vmatprep.subr.mxu0 0.0
    %2964 = vmatpush1.msra.mxu0 0.0
    %2965 = vmatprep.subr.mxu0 0.0
    %2966 = vmatpush1.msra.mxu0 0.0
    %2967 = vmatprep.subr.mxu0 0.0
    %2968 = vmatpush1.msra.mxu0 0.0
    %2969 = vmatprep.subr.mxu0 0.0
    %2970 = vmatpush1.msra.mxu0 0.0
    %2971 = vmatprep.subr.mxu0 0.0
    %2972 = vmatpush1.msra.mxu0 0.0
    %2973 = vmatprep.subr.mxu0 0.0
    %2974 = vmatpush1.msra.mxu0 0.0
    %2975 = vmatprep.subr.mxu0 0.0
    %2976 = vmatpush1.msra.mxu0 0.0
    %2977 = vmatprep.subr.mxu0 0.0
    %2978 = vmatpush1.msra.mxu0 0.0
    %2979 = vmatprep.subr.mxu0 0.0
    %2980 = vmatpush1.msra.mxu0 0.0
    %2981 = vmatprep.subr.mxu0 0.0
    %2982 = vmatpush1.msra.mxu0 0.0
    %2983 = vmatprep.subr.mxu0 0.0
    %2984 = vmatpush1.msra.mxu0 0.0
    %2985 = vmatprep.subr.mxu0 0.0
    %2986 = vmatpush1.msra.mxu0 0.0
    %2987 = vmatprep.subr.mxu0 0.0
    %2988 = vmatpush1.msra.mxu0 0.0
    %2989 = vmatprep.subr.mxu0 0.0
    %2990 = vmatpush1.msra.mxu0 0.0
    %2991 = vmatprep.mubr.f32.mxu0 0.0
    %2992 = vmatmul.mubr.f32.gmra.mrb[0].mxu0 %v2913
    %v2993 = vpop.f32.mrb[0].mxu0
    %v2994 = vadd.f32 0.0, %v2993
    %v2995 = vpop.f32.mrb[0].mxu0
    %v2996 = vadd.f32 0.0, %v2995
    %2997 = vdwg.mxu0
    %2998 = vmatprep.subr.mxu0 %v2925
    %2999 = vmatpush1.msra.mxu0 %v2922
    %3000 = vmatprep.subr.mxu0 0.0
    %3001 = vmatpush1.msra.mxu0 0.0
    %3002 = vmatprep.subr.mxu0 0.0
    %3003 = vmatpush1.msra.mxu0 0.0
    %3004 = vmatprep.subr.mxu0 0.0
    %3005 = vmatpush1.msra.mxu0 0.0
    %3006 = vmatprep.subr.mxu0 0.0
    %3007 = vmatpush1.msra.mxu0 0.0
    %3008 = vmatprep.subr.mxu0 0.0
    %3009 = vmatpush1.msra.mxu0 0.0
    %3010 = vmatprep.subr.mxu0 0.0
    %3011 = vmatpush1.msra.mxu0 0.0
    %3012 = vmatprep.subr.mxu0 0.0
    %3013 = vmatpush1.msra.mxu0 0.0
    %3014 = vmatprep.subr.mxu0 0.0
    %3015 = vmatpush1.msra.mxu0 0.0
    %3016 = vmatprep.subr.mxu0 0.0
    %3017 = vmatpush1.msra.mxu0 0.0
    %3018 = vmatprep.subr.mxu0 0.0
    %3019 = vmatpush1.msra.mxu0 0.0
    %3020 = vmatprep.subr.mxu0 0.0
    %3021 = vmatpush1.msra.mxu0 0.0
    %3022 = vmatprep.subr.mxu0 0.0
    %3023 = vmatpush1.msra.mxu0 0.0
    %3024 = vmatprep.subr.mxu0 0.0
    %3025 = vmatpush1.msra.mxu0 0.0
    %3026 = vmatprep.subr.mxu0 0.0
    %3027 = vmatpush1.msra.mxu0 0.0
    %3028 = vmatprep.subr.mxu0 0.0
    %3029 = vmatpush1.msra.mxu0 0.0
    %3030 = vmatprep.subr.mxu0 0.0
    %3031 = vmatpush1.msra.mxu0 0.0
    %3032 = vmatprep.subr.mxu0 0.0
    %3033 = vmatpush1.msra.mxu0 0.0
    %3034 = vmatprep.subr.mxu0 0.0
    %3035 = vmatpush1.msra.mxu0 0.0
    %3036 = vmatprep.subr.mxu0 0.0
    %3037 = vmatpush1.msra.mxu0 0.0
    %3038 = vmatprep.subr.mxu0 0.0
    %3039 = vmatpush1.msra.mxu0 0.0
    %3040 = vmatprep.subr.mxu0 0.0
    %3041 = vmatpush1.msra.mxu0 0.0
    %3042 = vmatprep.subr.mxu0 0.0
    %3043 = vmatpush1.msra.mxu0 0.0
    %3044 = vmatprep.subr.mxu0 0.0
    %3045 = vmatpush1.msra.mxu0 0.0
    %3046 = vmatprep.subr.mxu0 0.0
    %3047 = vmatpush1.msra.mxu0 0.0
    %3048 = vmatprep.subr.mxu0 0.0
    %3049 = vmatpush1.msra.mxu0 0.0
    %3050 = vmatprep.subr.mxu0 0.0
    %3051 = vmatpush1.msra.mxu0 0.0
    %3052 = vmatprep.subr.mxu0 0.0
    %3053 = vmatpush1.msra.mxu0 0.0
    %3054 = vmatprep.subr.mxu0 0.0
    %3055 = vmatpush1.msra.mxu0 0.0
    %3056 = vmatprep.subr.mxu0 0.0
    %3057 = vmatpush1.msra.mxu0 0.0
    %3058 = vmatprep.subr.mxu0 0.0
    %3059 = vmatpush1.msra.mxu0 0.0
    %3060 = vmatprep.subr.mxu0 0.0
    %3061 = vmatpush1.msra.mxu0 0.0
    %3062 = vmatprep.mubr.f32.mxu0 0.0
    %3063 = vmatmul.mubr.f32.gmra.mrb[0].mxu0 %v2913
    %v3064 = vpop.f32.mrb[0].mxu0
    %v3065 = vadd.f32 0.0, %v3064
    %v3066 = vpop.f32.mrb[0].mxu0
    %v3067 = vadd.f32 0.0, %v3066
    %3068 = vdwg.mxu0
    %v3069 = vadd.f32 %v2890, %v2994
    %v3070 = vadd.f32 %v2891, %v2996
    %v3071 = vadd.f32 %v2892, %v3065
    %v3072 = vadd.f32 %v2893, %v3067
    %3073 = vrot.lane.b32.xlu0 %v1841, 112
    %v3074 = vpop.permute.xlu0 %3073
    %3075 = vrot.lane.b32.xlu0 %v1842, 112
    %v3076 = vpop.permute.xlu0 %3075
    %3077 = vrot.lane.b32.xlu0 %v1843, 112
    %v3078 = vpop.permute.xlu0 %3077
    %3079 = vrot.lane.b32.xlu0 %v1844, 112
    %v3080 = vpop.permute.xlu0 %3079
    %v3081 = vsel %vm1479, %v3078, %v3080
    %v3082 = vsel %vm1479, %v3076, %v3078
    %v3083 = vsel %vm1479, %v3074, %v3076
    %v3084 = vsel %vm1479, %v3080, %v3074
    %v3085 = vsel %vm219, %v3083, 0.0
    %v3086 = vsel %vm220, %v3082, 0.0
    %v3087 = vsel %vm221, %v3081, 0.0
    %v3088 = vsel %vm222, %v3084, 0.0
    %s3089 = scalar_lea.vmem %s3, 28
    %v3090 = vld [vmem:[%s3089] sm:$0xf]
    %v3092 = vsel %vm276, %v3090, 0
    %v3095 = vsel %vm280, %v3085, 0
    %v3098 = vsel %vm280, %v3086, 0
    %v3101 = vsel %vm280, %v3087, 0
    %v3104 = vsel %vm280, %v3088, 0
    %3106 = vmatprep.subr.mxu0 %v3098
    %3107 = vmatpush1.msra.mxu0 %v3095
    %3108 = vmatprep.subr.mxu0 0.0
    %3109 = vmatpush1.msra.mxu0 0.0
    %3110 = vmatprep.subr.mxu0 0.0
    %3111 = vmatpush1.msra.mxu0 0.0
    %3112 = vmatprep.subr.mxu0 0.0
    %3113 = vmatpush1.msra.mxu0 0.0
    %3114 = vmatprep.subr.mxu0 0.0
    %3115 = vmatpush1.msra.mxu0 0.0
    %3116 = vmatprep.subr.mxu0 0.0
    %3117 = vmatpush1.msra.mxu0 0.0
    %3118 = vmatprep.subr.mxu0 0.0
    %3119 = vmatpush1.msra.mxu0 0.0
    %3120 = vmatprep.subr.mxu0 0.0
    %3121 = vmatpush1.msra.mxu0 0.0
    %3122 = vmatprep.subr.mxu0 0.0
    %3123 = vmatpush1.msra.mxu0 0.0
    %3124 = vmatprep.subr.mxu0 0.0
    %3125 = vmatpush1.msra.mxu0 0.0
    %3126 = vmatprep.subr.mxu0 0.0
    %3127 = vmatpush1.msra.mxu0 0.0
    %3128 = vmatprep.subr.mxu0 0.0
    %3129 = vmatpush1.msra.mxu0 0.0
    %3130 = vmatprep.subr.mxu0 0.0
    %3131 = vmatpush1.msra.mxu0 0.0
    %3132 = vmatprep.subr.mxu0 0.0
    %3133 = vmatpush1.msra.mxu0 0.0
    %3134 = vmatprep.subr.mxu0 0.0
    %3135 = vmatpush1.msra.mxu0 0.0
    %3136 = vmatprep.subr.mxu0 0.0
    %3137 = vmatpush1.msra.mxu0 0.0
    %3138 = vmatprep.subr.mxu0 0.0
    %3139 = vmatpush1.msra.mxu0 0.0
    %3140 = vmatprep.subr.mxu0 0.0
    %3141 = vmatpush1.msra.mxu0 0.0
    %3142 = vmatprep.subr.mxu0 0.0
    %3143 = vmatpush1.msra.mxu0 0.0
    %3144 = vmatprep.subr.mxu0 0.0
    %3145 = vmatpush1.msra.mxu0 0.0
    %3146 = vmatprep.subr.mxu0 0.0
    %3147 = vmatpush1.msra.mxu0 0.0
    %3148 = vmatprep.subr.mxu0 0.0
    %3149 = vmatpush1.msra.mxu0 0.0
    %3150 = vmatprep.subr.mxu0 0.0
    %3151 = vmatpush1.msra.mxu0 0.0
    %3152 = vmatprep.subr.mxu0 0.0
    %3153 = vmatpush1.msra.mxu0 0.0
    %3154 = vmatprep.subr.mxu0 0.0
    %3155 = vmatpush1.msra.mxu0 0.0
    %3156 = vmatprep.subr.mxu0 0.0
    %3157 = vmatpush1.msra.mxu0 0.0
    %3158 = vmatprep.subr.mxu0 0.0
    %3159 = vmatpush1.msra.mxu0 0.0
    %3160 = vmatprep.subr.mxu0 0.0
    %3161 = vmatpush1.msra.mxu0 0.0
    %3162 = vmatprep.subr.mxu0 0.0
    %3163 = vmatpush1.msra.mxu0 0.0
    %3164 = vmatprep.subr.mxu0 0.0
    %3165 = vmatpush1.msra.mxu0 0.0
    %3166 = vmatprep.subr.mxu0 0.0
    %3167 = vmatpush1.msra.mxu0 0.0
    %3168 = vmatprep.subr.mxu0 0.0
    %3169 = vmatpush1.msra.mxu0 0.0
    %3170 = vmatprep.mubr.f32.mxu0 0.0
    %3171 = vmatmul.mubr.f32.gmra.mrb[0].mxu0 %v3092
    %v3172 = vpop.f32.mrb[0].mxu0
    %v3173 = vadd.f32 0.0, %v3172
    %v3174 = vpop.f32.mrb[0].mxu0
    %v3175 = vadd.f32 0.0, %v3174
    %3176 = vdwg.mxu0
    %3177 = vmatprep.subr.mxu0 %v3104
    %3178 = vmatpush1.msra.mxu0 %v3101
    %3179 = vmatprep.subr.mxu0 0.0
    %3180 = vmatpush1.msra.mxu0 0.0
    %3181 = vmatprep.subr.mxu0 0.0
    %3182 = vmatpush1.msra.mxu0 0.0
    %3183 = vmatprep.subr.mxu0 0.0
    %3184 = vmatpush1.msra.mxu0 0.0
    %3185 = vmatprep.subr.mxu0 0.0
    %3186 = vmatpush1.msra.mxu0 0.0
    %3187 = vmatprep.subr.mxu0 0.0
    %3188 = vmatpush1.msra.mxu0 0.0
    %3189 = vmatprep.subr.mxu0 0.0
    %3190 = vmatpush1.msra.mxu0 0.0
    %3191 = vmatprep.subr.mxu0 0.0
    %3192 = vmatpush1.msra.mxu0 0.0
    %3193 = vmatprep.subr.mxu0 0.0
    %3194 = vmatpush1.msra.mxu0 0.0
    %3195 = vmatprep.subr.mxu0 0.0
    %3196 = vmatpush1.msra.mxu0 0.0
    %3197 = vmatprep.subr.mxu0 0.0
    %3198 = vmatpush1.msra.mxu0 0.0
    %3199 = vmatprep.subr.mxu0 0.0
    %3200 = vmatpush1.msra.mxu0 0.0
    %3201 = vmatprep.subr.mxu0 0.0
    %3202 = vmatpush1.msra.mxu0 0.0
    %3203 = vmatprep.subr.mxu0 0.0
    %3204 = vmatpush1.msra.mxu0 0.0
    %3205 = vmatprep.subr.mxu0 0.0
    %3206 = vmatpush1.msra.mxu0 0.0
    %3207 = vmatprep.subr.mxu0 0.0
    %3208 = vmatpush1.msra.mxu0 0.0
    %3209 = vmatprep.subr.mxu0 0.0
    %3210 = vmatpush1.msra.mxu0 0.0
    %3211 = vmatprep.subr.mxu0 0.0
    %3212 = vmatpush1.msra.mxu0 0.0
    %3213 = vmatprep.subr.mxu0 0.0
    %3214 = vmatpush1.msra.mxu0 0.0
    %3215 = vmatprep.subr.mxu0 0.0
    %3216 = vmatpush1.msra.mxu0 0.0
    %3217 = vmatprep.subr.mxu0 0.0
    %3218 = vmatpush1.msra.mxu0 0.0
    %3219 = vmatprep.subr.mxu0 0.0
    %3220 = vmatpush1.msra.mxu0 0.0
    %3221 = vmatprep.subr.mxu0 0.0
    %3222 = vmatpush1.msra.mxu0 0.0
    %3223 = vmatprep.subr.mxu0 0.0
    %3224 = vmatpush1.msra.mxu0 0.0
    %3225 = vmatprep.subr.mxu0 0.0
    %3226 = vmatpush1.msra.mxu0 0.0
    %3227 = vmatprep.subr.mxu0 0.0
    %3228 = vmatpush1.msra.mxu0 0.0
    %3229 = vmatprep.subr.mxu0 0.0
    %3230 = vmatpush1.msra.mxu0 0.0
    %3231 = vmatprep.subr.mxu0 0.0
    %3232 = vmatpush1.msra.mxu0 0.0
    %3233 = vmatprep.subr.mxu0 0.0
    %3234 = vmatpush1.msra.mxu0 0.0
    %3235 = vmatprep.subr.mxu0 0.0
    %3236 = vmatpush1.msra.mxu0 0.0
    %3237 = vmatprep.subr.mxu0 0.0
    %3238 = vmatpush1.msra.mxu0 0.0
    %3239 = vmatprep.subr.mxu0 0.0
    %3240 = vmatpush1.msra.mxu0 0.0
    %3241 = vmatprep.mubr.f32.mxu0 0.0
    %3242 = vmatmul.mubr.f32.gmra.mrb[0].mxu0 %v3092
    %v3243 = vpop.f32.mrb[0].mxu0
    %v3244 = vadd.f32 0.0, %v3243
    %v3245 = vpop.f32.mrb[0].mxu0
    %v3246 = vadd.f32 0.0, %v3245
    %3247 = vdwg.mxu0
    %v3248 = vadd.f32 %v3069, %v3173
    %v3249 = vadd.f32 %v3070, %v3175
    %v3250 = vadd.f32 %v3071, %v3244
    %v3251 = vadd.f32 %v3072, %v3246
    %3252 = vrot.lane.b32.xlu0 %v1841, 111
    %v3253 = vpop.permute.xlu0 %3252
    %3254 = vrot.lane.b32.xlu0 %v1842, 111
    %v3255 = vpop.permute.xlu0 %3254
    %3256 = vrot.lane.b32.xlu0 %v1843, 111
    %v3257 = vpop.permute.xlu0 %3256
    %3258 = vrot.lane.b32.xlu0 %v1844, 111
    %v3259 = vpop.permute.xlu0 %3258
    %v3260 = vsel %vm1659, %v3257, %v3259
    %v3261 = vsel %vm1659, %v3255, %v3257
    %v3262 = vsel %vm1659, %v3253, %v3255
    %v3263 = vsel %vm1659, %v3259, %v3253
    %v3264 = vsel %vm227, %v3262, 0.0
    %v3265 = vsel %vm228, %v3261, 0.0
    %v3266 = vsel %vm229, %v3260, 0.0
    %v3267 = vsel %vm230, %v3263, 0.0
    %s3268 = scalar_lea.vmem %s3, 32
    %v3269 = vld [vmem:[%s3268] sm:$0xf]
    %v3271 = vsel %vm276, %v3269, 0
    %v3274 = vsel %vm280, %v3264, 0
    %v3277 = vsel %vm280, %v3265, 0
    %v3280 = vsel %vm280, %v3266, 0
    %v3283 = vsel %vm280, %v3267, 0
    %3285 = vmatprep.subr.mxu0 %v3277
    %3286 = vmatpush1.msra.mxu0 %v3274
    %3287 = vmatprep.subr.mxu0 0.0
    %3288 = vmatpush1.msra.mxu0 0.0
    %3289 = vmatprep.subr.mxu0 0.0
    %3290 = vmatpush1.msra.mxu0 0.0
    %3291 = vmatprep.subr.mxu0 0.0
    %3292 = vmatpush1.msra.mxu0 0.0
    %3293 = vmatprep.subr.mxu0 0.0
    %3294 = vmatpush1.msra.mxu0 0.0
    %3295 = vmatprep.subr.mxu0 0.0
    %3296 = vmatpush1.msra.mxu0 0.0
    %3297 = vmatprep.subr.mxu0 0.0
    %3298 = vmatpush1.msra.mxu0 0.0
    %3299 = vmatprep.subr.mxu0 0.0
    %3300 = vmatpush1.msra.mxu0 0.0
    %3301 = vmatprep.subr.mxu0 0.0
    %3302 = vmatpush1.msra.mxu0 0.0
    %3303 = vmatprep.subr.mxu0 0.0
    %3304 = vmatpush1.msra.mxu0 0.0
    %3305 = vmatprep.subr.mxu0 0.0
    %3306 = vmatpush1.msra.mxu0 0.0
    %3307 = vmatprep.subr.mxu0 0.0
    %3308 = vmatpush1.msra.mxu0 0.0
    %3309 = vmatprep.subr.mxu0 0.0
    %3310 = vmatpush1.msra.mxu0 0.0
    %3311 = vmatprep.subr.mxu0 0.0
    %3312 = vmatpush1.msra.mxu0 0.0
    %3313 = vmatprep.subr.mxu0 0.0
    %3314 = vmatpush1.msra.mxu0 0.0
    %3315 = vmatprep.subr.mxu0 0.0
    %3316 = vmatpush1.msra.mxu0 0.0
    %3317 = vmatprep.subr.mxu0 0.0
    %3318 = vmatpush1.msra.mxu0 0.0
    %3319 = vmatprep.subr.mxu0 0.0
    %3320 = vmatpush1.msra.mxu0 0.0
    %3321 = vmatprep.subr.mxu0 0.0
    %3322 = vmatpush1.msra.mxu0 0.0
    %3323 = vmatprep.subr.mxu0 0.0
    %3324 = vmatpush1.msra.mxu0 0.0
    %3325 = vmatprep.subr.mxu0 0.0
    %3326 = vmatpush1.msra.mxu0 0.0
    %3327 = vmatprep.subr.mxu0 0.0
    %3328 = vmatpush1.msra.mxu0 0.0
    %3329 = vmatprep.subr.mxu0 0.0
    %3330 = vmatpush1.msra.mxu0 0.0
    %3331 = vmatprep.subr.mxu0 0.0
    %3332 = vmatpush1.msra.mxu0 0.0
    %3333 = vmatprep.subr.mxu0 0.0
    %3334 = vmatpush1.msra.mxu0 0.0
    %3335 = vmatprep.subr.mxu0 0.0
    %3336 = vmatpush1.msra.mxu0 0.0
    %3337 = vmatprep.subr.mxu0 0.0
    %3338 = vmatpush1.msra.mxu0 0.0
    %3339 = vmatprep.subr.mxu0 0.0
    %3340 = vmatpush1.msra.mxu0 0.0
    %3341 = vmatprep.subr.mxu0 0.0
    %3342 = vmatpush1.msra.mxu0 0.0
    %3343 = vmatprep.subr.mxu0 0.0
    %3344 = vmatpush1.msra.mxu0 0.0
    %3345 = vmatprep.subr.mxu0 0.0
    %3346 = vmatpush1.msra.mxu0 0.0
    %3347 = vmatprep.subr.mxu0 0.0
    %3348 = vmatpush1.msra.mxu0 0.0
    %3349 = vmatprep.mubr.f32.mxu0 0.0
    %3350 = vmatmul.mubr.f32.gmra.mrb[0].mxu0 %v3271
    %v3351 = vpop.f32.mrb[0].mxu0
    %v3352 = vadd.f32 0.0, %v3351
    %v3353 = vpop.f32.mrb[0].mxu0
    %v3354 = vadd.f32 0.0, %v3353
    %3355 = vdwg.mxu0
    %3356 = vmatprep.subr.mxu0 %v3283
    %3357 = vmatpush1.msra.mxu0 %v3280
    %3358 = vmatprep.subr.mxu0 0.0
    %3359 = vmatpush1.msra.mxu0 0.0
    %3360 = vmatprep.subr.mxu0 0.0
    %3361 = vmatpush1.msra.mxu0 0.0
    %3362 = vmatprep.subr.mxu0 0.0
    %3363 = vmatpush1.msra.mxu0 0.0
    %3364 = vmatprep.subr.mxu0 0.0
    %3365 = vmatpush1.msra.mxu0 0.0
    %3366 = vmatprep.subr.mxu0 0.0
    %3367 = vmatpush1.msra.mxu0 0.0
    %3368 = vmatprep.subr.mxu0 0.0
    %3369 = vmatpush1.msra.mxu0 0.0
    %3370 = vmatprep.subr.mxu0 0.0
    %3371 = vmatpush1.msra.mxu0 0.0
    %3372 = vmatprep.subr.mxu0 0.0
    %3373 = vmatpush1.msra.mxu0 0.0
    %3374 = vmatprep.subr.mxu0 0.0
    %3375 = vmatpush1.msra.mxu0 0.0
    %3376 = vmatprep.subr.mxu0 0.0
    %3377 = vmatpush1.msra.mxu0 0.0
    %3378 = vmatprep.subr.mxu0 0.0
    %3379 = vmatpush1.msra.mxu0 0.0
    %3380 = vmatprep.subr.mxu0 0.0
    %3381 = vmatpush1.msra.mxu0 0.0
    %3382 = vmatprep.subr.mxu0 0.0
    %3383 = vmatpush1.msra.mxu0 0.0
    %3384 = vmatprep.subr.mxu0 0.0
    %3385 = vmatpush1.msra.mxu0 0.0
    %3386 = vmatprep.subr.mxu0 0.0
    %3387 = vmatpush1.msra.mxu0 0.0
    %3388 = vmatprep.subr.mxu0 0.0
    %3389 = vmatpush1.msra.mxu0 0.0
    %3390 = vmatprep.subr.mxu0 0.0
    %3391 = vmatpush1.msra.mxu0 0.0
    %3392 = vmatprep.subr.mxu0 0.0
    %3393 = vmatpush1.msra.mxu0 0.0
    %3394 = vmatprep.subr.mxu0 0.0
    %3395 = vmatpush1.msra.mxu0 0.0
    %3396 = vmatprep.subr.mxu0 0.0
    %3397 = vmatpush1.msra.mxu0 0.0
    %3398 = vmatprep.subr.mxu0 0.0
    %3399 = vmatpush1.msra.mxu0 0.0
    %3400 = vmatprep.subr.mxu0 0.0
    %3401 = vmatpush1.msra.mxu0 0.0
    %3402 = vmatprep.subr.mxu0 0.0
    %3403 = vmatpush1.msra.mxu0 0.0
    %3404 = vmatprep.subr.mxu0 0.0
    %3405 = vmatpush1.msra.mxu0 0.0
    %3406 = vmatprep.subr.mxu0 0.0
    %3407 = vmatpush1.msra.mxu0 0.0
    %3408 = vmatprep.subr.mxu0 0.0
    %3409 = vmatpush1.msra.mxu0 0.0
    %3410 = vmatprep.subr.mxu0 0.0
    %3411 = vmatpush1.msra.mxu0 0.0
    %3412 = vmatprep.subr.mxu0 0.0
    %3413 = vmatpush1.msra.mxu0 0.0
    %3414 = vmatprep.subr.mxu0 0.0
    %3415 = vmatpush1.msra.mxu0 0.0
    %3416 = vmatprep.subr.mxu0 0.0
    %3417 = vmatpush1.msra.mxu0 0.0
    %3418 = vmatprep.subr.mxu0 0.0
    %3419 = vmatpush1.msra.mxu0 0.0
    %3420 = vmatprep.mubr.f32.mxu0 0.0
    %3421 = vmatmul.mubr.f32.gmra.mrb[0].mxu0 %v3271
    %v3422 = vpop.f32.mrb[0].mxu0
    %v3423 = vadd.f32 0.0, %v3422
    %v3424 = vpop.f32.mrb[0].mxu0
    %v3425 = vadd.f32 0.0, %v3424
    %3426 = vdwg.mxu0
    %v3427 = vadd.f32 %v3248, %v3352
    %v3428 = vadd.f32 %v3249, %v3354
    %v3429 = vadd.f32 %v3250, %v3423
    %v3430 = vadd.f32 %v3251, %v3425
    %v3431 = vld [vmem:[%s4] sm:$0xf]
    %3433 = vset.pattern.permute.xlu0 0
    %3434 = vperm.xlu0 %3433, %v3431
    %v3435 = vpop.permute.xlu0 %3434
    %v3437 = vadd.f32 %v3427, %v3435
    %v3438 = vadd.f32 %v3428, %v3435
    %v3439 = vadd.f32 %v3429, %v3435
    %v3440 = vadd.f32 %v3430, %v3435
    %v3445 = vcombine.low %v3437, %v3438
    %v3446 = vcombine.low %v3439, %v3440
    %v3449 = vadd.f32 %v24, %v3445
    %v3450 = vadd.f32 %v25, %v3446
    %v3451 = vmax.f32 %v3449, 0.0
    %v3452 = vmax.f32 %v3450, 0.0
    %3453 = vst [vmem:[#allocation2] sm:$0xff] %v3451
    %3454 = vst [vmem:[#allocation2 + $0x8] sm:$0xff] %v3452
    // Predicated region
    $region26: #{tpu_custom_call.1} parent=1 // pred_check
      _
    $region27: #{tpu_custom_call.1} parent=1 // pred_check_branch
      %3456 = sbr.rel (0) target = $region29
    $region28: #{tpu_custom_call.1} parent=1 // pred_region
      %s3458 = ssub.s32 256, 256
      %3459 = vsyncadd [#allocation3], %s3458
      %s3461 = sshll.u32 [#allocation2], 4
      %s3462 = int_to_ptr.vmem [resolvable:$true] %s3461
      %3464 = dma.vmem_to_hbm [thread:$0]  %s3462, 256, %s6, [#allocation3]
    $region29: #{tpu_custom_call.1} parent=1 // pred_fallthru
      _
    // Predicated region
    $region30: #{tpu_custom_call.1} parent=1 // pred_check
      _
    $region31: #{tpu_custom_call.1} parent=1 // pred_check_branch
      %3466 = sbr.rel (0) target = $region33
    $region32: #{tpu_custom_call.1} parent=1 // pred_region
      %3467 = dma.done [#allocation3], 256
    $region33: #{tpu_custom_call.1} parent=1 // pred_fallthru
      _
    %3468 = vsyncpa [#allocation3], 1

</llo_original>
